<compile_context>
chip_gen: v5e
topology: v5e:2x2
jax: 0.10.0
libtpu: 0.0.40
codegen_flags: <defaults>
</compile_context>

<pallas_src>
import functools
import math

import jax
import jax.numpy as jnp
from jax import lax
from jax.experimental import pallas as pl
from jax.experimental.pallas import tpu as pltpu

EPS = 1e-5  # nn.LayerNorm default eps


def _erf(x):
    # Abramowitz & Stegun 7.1.26 rational approximation, |abs err| < 1.5e-7.
    # Keeps torch's exact-GELU semantics within f32 noise using only exp/abs.
    p = 0.3275911
    a1, a2, a3, a4, a5 = (0.254829592, -0.284496736, 1.421413741,
                          -1.453152027, 1.061405429)
    sgn = jnp.where(x >= 0.0, 1.0, -1.0)
    ax = jnp.abs(x)
    t = 1.0 / (1.0 + p * ax)
    poly = ((((a5 * t + a4) * t + a3) * t + a2) * t + a1) * t
    return sgn * (1.0 - poly * jnp.exp(-ax * ax))


def _gelu_exact(x):
    return 0.5 * x * (1.0 + _erf(x * (1.0 / math.sqrt(2.0))))


def _layernorm(x, w, b):
    mu = jnp.mean(x, axis=-1, keepdims=True)
    xc = x - mu
    var = jnp.mean(xc * xc, axis=-1, keepdims=True)
    return xc * lax.rsqrt(var + EPS) * w + b


# ------------------------------- fused kernel --------------------------------

def spatl_fused_kernel(num_heads, B, N,
                       x_ref,
                       ln1w_ref, ln1b_ref,
                       wqkv_ref, bqkv_ref,
                       wproj_ref, bproj_ref,
                       ln2w_ref, ln2b_ref,
                       w1_ref, b1_ref, w2_ref, b2_ref,
                       out_ref,
                       act_ref):
    l = pl.program_id(0)
    D = wproj_ref.shape[0]
    hd = D // num_heads

    # Layer 0: fold the NCHW -> token transpose into the kernel (XLU has slack);
    # the [B*N, D] activation then stays VMEM-resident across all layers.
    @pl.when(l == 0)
    def _():
        for b in range(B):                        # B is tiny & static
            act_ref[b * N:(b + 1) * N, :] = x_ref[b].astype(jnp.float32).T

    x = act_ref[...]                              # [B*N, D] f32

    # ---- attention branch:  x = attn(norm1(x)) + x ----
    xn = _layernorm(x, ln1w_ref[...], ln1b_ref[...])
    # Fused QKV projection: one [B*N, D] @ [D, 3D] MXU matmul.
    # The softmax scale hd^-0.5 is pre-folded into the Q part of wqkv/bqkv.
    qkv = jnp.dot(xn, wqkv_ref[...], preferred_element_type=jnp.float32) + bqkv_ref[...]
    q3 = qkv[:, 0 * D:1 * D].reshape(B, N, D)
    k3 = qkv[:, 1 * D:2 * D].reshape(B, N, D)
    v3 = qkv[:, 2 * D:3 * D].reshape(B, N, D)

    # Per-head layout only for the score / AV stage (static hd-wide slices,
    # batched einsums over B).  At H=4 this static unroll is vreg-safe.
    heads_out = []
    for h in range(num_heads):
        sl = slice(h * hd, (h + 1) * hd)
        qh, kh, vh = q3[:, :, sl], k3[:, :, sl], v3[:, :, sl]
        s = jnp.einsum('bnd,bmd->bnm', qh, kh,
                       preferred_element_type=jnp.float32)        # [B, N, N]
        s = s - jnp.max(s, axis=-1, keepdims=True)
        e = jnp.exp(s)
        a = e * pl.reciprocal(jnp.sum(e, axis=-1, keepdims=True))  # exact recip
        heads_out.append(jnp.einsum('bnm,bmd->bnd', a, vh,
                                    preferred_element_type=jnp.float32))
    o = jnp.concatenate(heads_out, axis=-1).reshape(B * N, D)
    attn = jnp.dot(o, wproj_ref[...], preferred_element_type=jnp.float32) + bproj_ref[...]
    x1 = x + attn

    # ---- conv-mlp branch:  x = mlp(norm2(x)) + x  (1x1 convs == linears) ----
    xn2 = _layernorm(x1, ln2w_ref[...], ln2b_ref[...])
    h1 = _gelu_exact(
        jnp.dot(xn2, w1_ref[...], preferred_element_type=jnp.float32) + b1_ref[...])
    h2 = jnp.dot(h1, w2_ref[...], preferred_element_type=jnp.float32) + b2_ref[...]
    x2 = x1 + h2

    act_ref[...] = x2                             # carry to the next layer

    # Last layer: fold the token -> NCHW transpose into the kernel and store.
    @pl.when(l == pl.num_programs(0) - 1)
    def _():
        for b in range(B):
            out_ref[b] = x2[b * N:(b + 1) * N, :].T.astype(out_ref.dtype)


# --------------------------------- wrapper ------------------------------------

def spatl_forward(x_nchw, packed, num_heads):
    """SpaTL.forward.  x_nchw: [B, D, H, W] -> [B, D, H, W]."""
    B, D, H, W = x_nchw.shape
    N = H * W
    L = packed["ln1_w"].shape[0]
    Dh = packed["w1"].shape[-1]
    D3 = 3 * D

    # Free reshape only — the NCHW<->token transposes live inside the kernel.
    x_bdn = x_nchw.reshape(B, D, N)

    def wspec(shape):
        nd = len(shape)
        return pl.BlockSpec((None,) + tuple(shape),
                            lambda l, nd=nd: (l,) + (0,) * nd)

    # Advisory cost estimate (helps XLA schedule around the custom call).
    per_tok_mm = 2 * D * D3 + 2 * D * D + 2 * D * Dh + 2 * Dh * D
    attn_mm = 4 * N * N * D
    flops = L * B * (N * per_tok_mm + attn_mm)
    transcendentals = L * B * (num_heads * N * N + N * Dh)
    w_elems = 2 * D + D * D3 + D3 + D * D + D + 2 * D + D * Dh + Dh + Dh * D + D
    bytes_accessed = 4 * (2 * B * D * N + L * w_elems)

    kernel = functools.partial(spatl_fused_kernel, num_heads, B, N)
    out_bdn = pl.pallas_call(
        kernel,
        out_shape=jax.ShapeDtypeStruct((B, D, N), x_bdn.dtype),
        grid=(L,),
        in_specs=[
            pl.BlockSpec((B, D, N), lambda l: (0, 0, 0)),   # x (VMEM-resident)
            wspec((1, D)), wspec((1, D)),                   # ln1 w, b
            wspec((D, D3)), wspec((1, D3)),                 # fused qkv w, b
            wspec((D, D)), wspec((1, D)),                   # proj w, b
            wspec((1, D)), wspec((1, D)),                   # ln2 w, b
            wspec((D, Dh)), wspec((1, Dh)),                 # mlp conv1 w, b
            wspec((Dh, D)), wspec((1, D)),                  # mlp conv2 w, b
        ],
        out_specs=pl.BlockSpec((B, D, N), lambda l: (0, 0, 0)),
        scratch_shapes=[pltpu.VMEM((B * N, D), jnp.float32)],
        compiler_params=pltpu.CompilerParams(
            dimension_semantics=("arbitrary",),
            vmem_limit_bytes=64 * 1024 * 1024),
        cost_estimate=pl.CostEstimate(flops=flops,
                                      transcendentals=transcendentals,
                                      bytes_accessed=bytes_accessed),
    )(x_bdn,
      packed["ln1_w"], packed["ln1_b"],
      packed["wqkv"], packed["bqkv"],
      packed["wproj"], packed["bproj"],
      packed["ln2_w"], packed["ln2_b"],
      packed["w1"], packed["b1"], packed["w2"], packed["b2"])

    return out_bdn.reshape(B, D, H, W)


# ----------------------------- parameters -------------------------------------

def init_params(key, embed_dim, mult, num_layers):
    """Canonical (PyTorch-layout) per-layer parameters."""
    layers = []
    for _ in range(num_layers):
        key, *ks = jax.random.split(key, 13)
        D, Dh = embed_dim, embed_dim * mult
        f = jnp.float32
        p = {
            "ln1_w": (1.0 + 0.02 * jax.random.normal(ks[0], (1, D))).astype(f),
            "ln1_b": (0.02 * jax.random.normal(ks[1], (1, D))).astype(f),
            "wqkv": (jax.random.normal(ks[2], (D, 3 * D)) / math.sqrt(D)).astype(f),
            "bqkv": (0.02 * jax.random.normal(ks[3], (1, 3 * D))).astype(f),
            "wproj": (jax.random.normal(ks[4], (D, D)) / math.sqrt(D)).astype(f),
            "bproj": (0.02 * jax.random.normal(ks[5], (1, D))).astype(f),
            "ln2_w": (1.0 + 0.02 * jax.random.normal(ks[6], (1, D))).astype(f),
            "ln2_b": (0.02 * jax.random.normal(ks[7], (1, D))).astype(f),
            "w1": (jax.random.normal(ks[8], (D, Dh)) / math.sqrt(D)).astype(f),
            "b1": (0.02 * jax.random.normal(ks[9], (1, Dh))).astype(f),
            "w2": (jax.random.normal(ks[10], (Dh, D)) / math.sqrt(Dh)).astype(f),
            "b2": (0.02 * jax.random.normal(ks[11], (1, D))).astype(f),
        }
        layers.append(p)
    return layers


def pack_params(layers, heads):
    """Stack per-layer params [L, ...]; fold the softmax scale into Q on host."""
    D = layers[0]["wqkv"].shape[0]
    hd = D // heads
    scale = hd ** (-0.5)

    def stack(fn):
        return jnp.stack([fn(p) for p in layers], axis=0)

    return {
        "ln1_w": stack(lambda p: p["ln1_w"]),
        "ln1_b": stack(lambda p: p["ln1_b"]),
        # qkv output channels are ordered (3, heads, hd) — torch reshape order;
        # the first D columns are Q -> pre-scale them by hd^-0.5.
        "wqkv": stack(lambda p: p["wqkv"].at[:, :D].multiply(scale)),
        "bqkv": stack(lambda p: p["bqkv"].at[:, :D].multiply(scale)),
        "wproj": stack(lambda p: p["wproj"]),
        "bproj": stack(lambda p: p["bproj"]),
        "ln2_w": stack(lambda p: p["ln2_w"]),
        "ln2_b": stack(lambda p: p["ln2_b"]),
        "w1": stack(lambda p: p["w1"]),
        "b1": stack(lambda p: p["b1"]),
        "w2": stack(lambda p: p["w2"]),
        "b2": stack(lambda p: p["b2"]),
    }


# ----------------------------- pure-JAX reference -----------------------------

def _ref_block(x, p, num_heads):
    B, N, D = x.shape
    hd = D // num_heads

    def ln(z, w, b):
        mu = z.mean(-1, keepdims=True)
        var = ((z - mu) ** 2).mean(-1, keepdims=True)
        return (z - mu) / jnp.sqrt(var + EPS) * w[0] + b[0]

    xn = ln(x, p["ln1_w"], p["ln1_b"])
    qkv = xn @ p["wqkv"] + p["bqkv"][0]
    qkv = qkv.reshape(B, N, 3, num_heads, hd).transpose(2, 0, 3, 1, 4)
    q, k, v = qkv[0], qkv[1], qkv[2]
    s = (q @ jnp.swapaxes(k, -1, -2)) * (hd ** -0.5)
    a = jax.nn.softmax(s, axis=-1)
    o = (a @ v).transpose(0, 2, 1, 3).reshape(B, N, D)
    o = o @ p["wproj"] + p["bproj"][0]
    x1 = x + o
    xn2 = ln(x1, p["ln2_w"], p["ln2_b"])
    h1 = jax.nn.gelu(xn2 @ p["w1"] + p["b1"][0], approximate=False)
    h2 = h1 @ p["w2"] + p["b2"][0]
    return x1 + h2


def ref_forward(x_nchw, layer_params, num_heads):
    B, D, H, W = x_nchw.shape
    x = jnp.transpose(x_nchw, (0, 2, 3, 1)).reshape(B, H * W, D)
    for p in layer_params:
        x = _ref_block(x, p, num_heads)
    return jnp.transpose(x.reshape(B, H, W, D), (0, 3, 1, 2))


# ----------------------------------- main --------------------------------------

if __name__ == "__main__":
    B, D, H, W = 2, 32, 8, 8
    heads, num_layers, mult = 4, 2, 4

    key = jax.random.PRNGKey(0)
    kx, kp = jax.random.split(key)
    x = jax.random.normal(kx, (B, D, H, W), dtype=jnp.float32)
    layers = init_params(kp, D, mult, num_layers)
    packed = pack_params(layers, heads)

    fwd = jax.jit(lambda xx, pp: spatl_forward(xx, pp, heads))
    out = jax.block_until_ready(fwd(x, packed))
    ref = jax.block_until_ready(ref_forward(x, layers, heads))

    assert out.shape == (B, D, H, W)
    err = float(jnp.max(jnp.abs(out - ref)))
    # Exact softmax reciprocal + f32 matmuls: only reduction-order and the
    # erf-polynomial (<1.5e-7) differ from the reference, so a tight tolerance.
    assert err < 2e-3, err
    print("KERNEL_OK")
</pallas_src>

<mosaic_0001>
module attributes {stable_mosaic.version = 11 : i64} {
  func.func @spatl_fused_kernel(%arg0: i32, %arg1: memref<2x32x64xf32, #tpu.memory_space<vmem>>, %arg2: memref<1x1x32xf32, #tpu.memory_space<vmem>>, %arg3: memref<1x1x32xf32, #tpu.memory_space<vmem>>, %arg4: memref<1x32x96xf32, #tpu.memory_space<vmem>>, %arg5: memref<1x1x96xf32, #tpu.memory_space<vmem>>, %arg6: memref<1x32x32xf32, #tpu.memory_space<vmem>>, %arg7: memref<1x1x32xf32, #tpu.memory_space<vmem>>, %arg8: memref<1x1x32xf32, #tpu.memory_space<vmem>>, %arg9: memref<1x1x32xf32, #tpu.memory_space<vmem>>, %arg10: memref<1x32x128xf32, #tpu.memory_space<vmem>>, %arg11: memref<1x1x128xf32, #tpu.memory_space<vmem>>, %arg12: memref<1x128x32xf32, #tpu.memory_space<vmem>>, %arg13: memref<1x1x32xf32, #tpu.memory_space<vmem>>, %arg14: memref<2x32x64xf32, #tpu.memory_space<vmem>>, %arg15: memref<128x32xf32, #tpu.memory_space<vmem>>) attributes {dimension_semantics = [#tpu.dimension_semantics<arbitrary>], iteration_bounds = array<i64: 2>, scalar_prefetch = 0 : i64, scratch_operands = 1 : i64, tpu.core_type = #tpu.core_type<tc>, window_params = [{pipeline_mode = #tpu.pipeline_mode<synchronous>, transform_indices = @transform_0, window_bounds = array<i64: 2, 32, 64>}, {transform_indices = @transform_1, window_bounds = array<i64: 1, 1, 32>}, {transform_indices = @transform_2, window_bounds = array<i64: 1, 1, 32>}, {transform_indices = @transform_3, window_bounds = array<i64: 1, 32, 96>}, {transform_indices = @transform_4, window_bounds = array<i64: 1, 1, 96>}, {transform_indices = @transform_5, window_bounds = array<i64: 1, 32, 32>}, {transform_indices = @transform_6, window_bounds = array<i64: 1, 1, 32>}, {transform_indices = @transform_7, window_bounds = array<i64: 1, 1, 32>}, {transform_indices = @transform_8, window_bounds = array<i64: 1, 1, 32>}, {transform_indices = @transform_9, window_bounds = array<i64: 1, 32, 128>}, {transform_indices = @transform_10, window_bounds = array<i64: 1, 1, 128>}, {transform_indices = @transform_11, window_bounds = array<i64: 1, 128, 32>}, {transform_indices = @transform_12, window_bounds = array<i64: 1, 1, 32>}, {pipeline_mode = #tpu.pipeline_mode<synchronous>, transform_indices = @transform_13, window_bounds = array<i64: 2, 32, 64>}]} {
    %c0_i32 = arith.constant 0 : i32
    %0 = arith.cmpi eq, %arg0, %c0_i32 : i32
    %1 = arith.extui %0 : i1 to i32
    %c0_i32_0 = arith.constant 0 : i32
    %2 = arith.cmpi ne, %1, %c0_i32_0 : i32
    scf.if %2 {
      %c0_86 = arith.constant 0 : index
      %c0_87 = arith.constant 0 : index
      %c0_88 = arith.constant 0 : index
      %195 = vector.load %arg1[%c0_86, %c0_87, %c0_88] : memref<2x32x64xf32, #tpu.memory_space<vmem>>, vector<1x32x64xf32>
      %196 = vector.shape_cast %195 : vector<1x32x64xf32> to vector<32x64xf32>
      %197 = tpu.transpose %196, [1, 0] : vector<32x64xf32> -> vector<64x32xf32>
      %c0_89 = arith.constant 0 : index
      %c0_90 = arith.constant 0 : index
      %198 = vector.load %arg15[%c0_89, %c0_90] : memref<128x32xf32, #tpu.memory_space<vmem>>, vector<64x32xf32>
      tpu.vector_store %arg15[%c0_89, %c0_90], %197 {strides = array<i32>} : memref<128x32xf32, #tpu.memory_space<vmem>>, vector<64x32xf32>,
      %c1 = arith.constant 1 : index
      %c0_91 = arith.constant 0 : index
      %c0_92 = arith.constant 0 : index
      %199 = vector.load %arg1[%c1, %c0_91, %c0_92] : memref<2x32x64xf32, #tpu.memory_space<vmem>>, vector<1x32x64xf32>
      %200 = vector.shape_cast %199 : vector<1x32x64xf32> to vector<32x64xf32>
      %201 = tpu.transpose %200, [1, 0] : vector<32x64xf32> -> vector<64x32xf32>
      %c64 = arith.constant 64 : index
      %c0_93 = arith.constant 0 : index
      %202 = vector.load %arg15[%c64, %c0_93] : memref<128x32xf32, #tpu.memory_space<vmem>>, vector<64x32xf32>
      tpu.vector_store %arg15[%c64, %c0_93], %201 {strides = array<i32>} : memref<128x32xf32, #tpu.memory_space<vmem>>, vector<64x32xf32>,
    } else {
    }
    %c0 = arith.constant 0 : index
    %c0_1 = arith.constant 0 : index
    %3 = vector.load %arg15[%c0, %c0_1] : memref<128x32xf32, #tpu.memory_space<vmem>>, vector<128x32xf32>
    %c0_2 = arith.constant 0 : index
    %c0_3 = arith.constant 0 : index
    %c0_4 = arith.constant 0 : index
    %4 = vector.load %arg2[%c0_2, %c0_3, %c0_4] : memref<1x1x32xf32, #tpu.memory_space<vmem>>, vector<1x1x32xf32>
    %5 = vector.shape_cast %4 : vector<1x1x32xf32> to vector<1x32xf32>
    %c0_5 = arith.constant 0 : index
    %c0_6 = arith.constant 0 : index
    %c0_7 = arith.constant 0 : index
    %6 = vector.load %arg3[%c0_5, %c0_6, %c0_7] : memref<1x1x32xf32, #tpu.memory_space<vmem>>, vector<1x1x32xf32>
    %7 = vector.shape_cast %6 : vector<1x1x32xf32> to vector<1x32xf32>
    %cst = arith.constant dense<0.000000e+00> : vector<128xf32>
    %8 = vector.multi_reduction <add>, %3, %cst [1] : vector<128x32xf32> to vector<128xf32>
    %9 = vector.shape_cast %8 : vector<128xf32> to vector<128x1xf32>
    %cst_8 = arith.constant 3.200000e+01 : f32
    %10 = vector.broadcast %cst_8 : f32 to vector<128x1xf32>
    %11 = arith.divf %9, %10 : vector<128x1xf32>
    %12 = vector.broadcast %11 : vector<128x1xf32> to vector<128x32xf32>
    %13 = arith.subf %3, %12 : vector<128x32xf32>
    %14 = arith.mulf %13, %13 : vector<128x32xf32>
    %cst_9 = arith.constant dense<0.000000e+00> : vector<128xf32>
    %15 = vector.multi_reduction <add>, %14, %cst_9 [1] : vector<128x32xf32> to vector<128xf32>
    %16 = vector.shape_cast %15 : vector<128xf32> to vector<128x1xf32>
    %cst_10 = arith.constant 3.200000e+01 : f32
    %17 = vector.broadcast %cst_10 : f32 to vector<128x1xf32>
    %18 = arith.divf %16, %17 : vector<128x1xf32>
    %cst_11 = arith.constant 9.99999974E-6 : f32
    %19 = vector.broadcast %cst_11 : f32 to vector<128x1xf32>
    %20 = arith.addf %18, %19 : vector<128x1xf32>
    %21 = math.rsqrt %20 : vector<128x1xf32>
    %22 = vector.broadcast %21 : vector<128x1xf32> to vector<128x32xf32>
    %23 = arith.mulf %13, %22 : vector<128x32xf32>
    %24 = vector.broadcast %5 : vector<1x32xf32> to vector<128x32xf32>
    %25 = arith.mulf %23, %24 : vector<128x32xf32>
    %26 = vector.broadcast %7 : vector<1x32xf32> to vector<128x32xf32>
    %27 = arith.addf %25, %26 : vector<128x32xf32>
    %c0_12 = arith.constant 0 : index
    %c0_13 = arith.constant 0 : index
    %c0_14 = arith.constant 0 : index
    %28 = vector.load %arg4[%c0_12, %c0_13, %c0_14] : memref<1x32x96xf32, #tpu.memory_space<vmem>>, vector<1x32x96xf32>
    %29 = vector.shape_cast %28 : vector<1x32x96xf32> to vector<32x96xf32>
    %cst_15 = arith.constant dense<0.000000e+00> : vector<128x96xf32>
    %30 = tpu.matmul %27, %29, %cst_15 {dimension_numbers = #tpu.dot_dimension_numbers<[1], [0], [0], [1], [0, 0, 1, 1], [], []>} : vector<128x32xf32>, vector<32x96xf32>, vector<128x96xf32> -> vector<128x96xf32>
    %c0_16 = arith.constant 0 : index
    %c0_17 = arith.constant 0 : index
    %c0_18 = arith.constant 0 : index
    %31 = vector.load %arg5[%c0_16, %c0_17, %c0_18] : memref<1x1x96xf32, #tpu.memory_space<vmem>>, vector<1x1x96xf32>
    %32 = vector.shape_cast %31 : vector<1x1x96xf32> to vector<1x96xf32>
    %33 = vector.broadcast %32 : vector<1x96xf32> to vector<128x96xf32>
    %34 = arith.addf %30, %33 : vector<128x96xf32>
    %35 = vector.extract_strided_slice %34 {offsets = [0, 0], sizes = [128, 32], strides = [1, 1]} : vector<128x96xf32> to vector<128x32xf32>
    %36 = vector.shape_cast %35 : vector<128x32xf32> to vector<2x64x32xf32>
    %37 = vector.extract_strided_slice %34 {offsets = [0, 32], sizes = [128, 32], strides = [1, 1]} : vector<128x96xf32> to vector<128x32xf32>
    %38 = vector.shape_cast %37 : vector<128x32xf32> to vector<2x64x32xf32>
    %39 = vector.extract_strided_slice %34 {offsets = [0, 64], sizes = [128, 32], strides = [1, 1]} : vector<128x96xf32> to vector<128x32xf32>
    %40 = vector.shape_cast %39 : vector<128x32xf32> to vector<2x64x32xf32>
    %41 = vector.extract_strided_slice %36 {offsets = [0, 0, 0], sizes = [2, 64, 8], strides = [1, 1, 1]} : vector<2x64x32xf32> to vector<2x64x8xf32>
    %42 = vector.extract_strided_slice %38 {offsets = [0, 0, 0], sizes = [2, 64, 8], strides = [1, 1, 1]} : vector<2x64x32xf32> to vector<2x64x8xf32>
    %43 = vector.extract_strided_slice %40 {offsets = [0, 0, 0], sizes = [2, 64, 8], strides = [1, 1, 1]} : vector<2x64x32xf32> to vector<2x64x8xf32>
    "tpu.trace_start"() <{level = 10 : i32, message = "bnd,bmd->bnm"}> : () -> ()
    %cst_19 = arith.constant dense<0.000000e+00> : vector<2x64x64xf32>
    %44 = tpu.matmul %41, %42, %cst_19 {dimension_numbers = #tpu.dot_dimension_numbers<[2], [2], [1], [1], [0, 0, 0, 1, 1, 1], [0], [0]>} : vector<2x64x8xf32>, vector<2x64x8xf32>, vector<2x64x64xf32> -> vector<2x64x64xf32>
    "tpu.trace_stop"() : () -> ()
    %cst_20 = arith.constant dense<0xFF800000> : vector<2x64xf32>
    %45 = vector.multi_reduction <maximumf>, %44, %cst_20 [2] : vector<2x64x64xf32> to vector<2x64xf32>
    %46 = vector.shape_cast %45 : vector<2x64xf32> to vector<2x64x1xf32>
    %47 = vector.broadcast %46 : vector<2x64x1xf32> to vector<2x64x64xf32>
    %48 = arith.subf %44, %47 : vector<2x64x64xf32>
    %49 = math.exp %48 : vector<2x64x64xf32>
    %cst_21 = arith.constant dense<0.000000e+00> : vector<2x64xf32>
    %50 = vector.multi_reduction <add>, %49, %cst_21 [2] : vector<2x64x64xf32> to vector<2x64xf32>
    %51 = vector.shape_cast %50 : vector<2x64xf32> to vector<2x64x1xf32>
    %52 = tpu.reciprocal %51 : vector<2x64x1xf32> -> vector<2x64x1xf32>
    %53 = vector.broadcast %52 : vector<2x64x1xf32> to vector<2x64x64xf32>
    %54 = arith.mulf %49, %53 : vector<2x64x64xf32>
    "tpu.trace_start"() <{level = 10 : i32, message = "bnm,bmd->bnd"}> : () -> ()
    %cst_22 = arith.constant dense<0.000000e+00> : vector<2x64x8xf32>
    %55 = tpu.matmul %54, %43, %cst_22 {dimension_numbers = #tpu.dot_dimension_numbers<[2], [1], [1], [2], [0, 0, 0, 1, 1, 2], [0], [0]>} : vector<2x64x64xf32>, vector<2x64x8xf32>, vector<2x64x8xf32> -> vector<2x64x8xf32>
    "tpu.trace_stop"() : () -> ()
    %56 = vector.extract_strided_slice %36 {offsets = [0, 0, 8], sizes = [2, 64, 8], strides = [1, 1, 1]} : vector<2x64x32xf32> to vector<2x64x8xf32>
    %57 = vector.extract_strided_slice %38 {offsets = [0, 0, 8], sizes = [2, 64, 8], strides = [1, 1, 1]} : vector<2x64x32xf32> to vector<2x64x8xf32>
    %58 = vector.extract_strided_slice %40 {offsets = [0, 0, 8], sizes = [2, 64, 8], strides = [1, 1, 1]} : vector<2x64x32xf32> to vector<2x64x8xf32>
    "tpu.trace_start"() <{level = 10 : i32, message = "bnd,bmd->bnm"}> : () -> ()
    %cst_23 = arith.constant dense<0.000000e+00> : vector<2x64x64xf32>
    %59 = tpu.matmul %56, %57, %cst_23 {dimension_numbers = #tpu.dot_dimension_numbers<[2], [2], [1], [1], [0, 0, 0, 1, 1, 1], [0], [0]>} : vector<2x64x8xf32>, vector<2x64x8xf32>, vector<2x64x64xf32> -> vector<2x64x64xf32>
    "tpu.trace_stop"() : () -> ()
    %cst_24 = arith.constant dense<0xFF800000> : vector<2x64xf32>
    %60 = vector.multi_reduction <maximumf>, %59, %cst_24 [2] : vector<2x64x64xf32> to vector<2x64xf32>
    %61 = vector.shape_cast %60 : vector<2x64xf32> to vector<2x64x1xf32>
    %62 = vector.broadcast %61 : vector<2x64x1xf32> to vector<2x64x64xf32>
    %63 = arith.subf %59, %62 : vector<2x64x64xf32>
    %64 = math.exp %63 : vector<2x64x64xf32>
    %cst_25 = arith.constant dense<0.000000e+00> : vector<2x64xf32>
    %65 = vector.multi_reduction <add>, %64, %cst_25 [2] : vector<2x64x64xf32> to vector<2x64xf32>
    %66 = vector.shape_cast %65 : vector<2x64xf32> to vector<2x64x1xf32>
    %67 = tpu.reciprocal %66 : vector<2x64x1xf32> -> vector<2x64x1xf32>
    %68 = vector.broadcast %67 : vector<2x64x1xf32> to vector<2x64x64xf32>
    %69 = arith.mulf %64, %68 : vector<2x64x64xf32>
    "tpu.trace_start"() <{level = 10 : i32, message = "bnm,bmd->bnd"}> : () -> ()
    %cst_26 = arith.constant dense<0.000000e+00> : vector<2x64x8xf32>
    %70 = tpu.matmul %69, %58, %cst_26 {dimension_numbers = #tpu.dot_dimension_numbers<[2], [1], [1], [2], [0, 0, 0, 1, 1, 2], [0], [0]>} : vector<2x64x64xf32>, vector<2x64x8xf32>, vector<2x64x8xf32> -> vector<2x64x8xf32>
    "tpu.trace_stop"() : () -> ()
    %71 = vector.extract_strided_slice %36 {offsets = [0, 0, 16], sizes = [2, 64, 8], strides = [1, 1, 1]} : vector<2x64x32xf32> to vector<2x64x8xf32>
    %72 = vector.extract_strided_slice %38 {offsets = [0, 0, 16], sizes = [2, 64, 8], strides = [1, 1, 1]} : vector<2x64x32xf32> to vector<2x64x8xf32>
    %73 = vector.extract_strided_slice %40 {offsets = [0, 0, 16], sizes = [2, 64, 8], strides = [1, 1, 1]} : vector<2x64x32xf32> to vector<2x64x8xf32>
    "tpu.trace_start"() <{level = 10 : i32, message = "bnd,bmd->bnm"}> : () -> ()
    %cst_27 = arith.constant dense<0.000000e+00> : vector<2x64x64xf32>
    %74 = tpu.matmul %71, %72, %cst_27 {dimension_numbers = #tpu.dot_dimension_numbers<[2], [2], [1], [1], [0, 0, 0, 1, 1, 1], [0], [0]>} : vector<2x64x8xf32>, vector<2x64x8xf32>, vector<2x64x64xf32> -> vector<2x64x64xf32>
    "tpu.trace_stop"() : () -> ()
    %cst_28 = arith.constant dense<0xFF800000> : vector<2x64xf32>
    %75 = vector.multi_reduction <maximumf>, %74, %cst_28 [2] : vector<2x64x64xf32> to vector<2x64xf32>
    %76 = vector.shape_cast %75 : vector<2x64xf32> to vector<2x64x1xf32>
    %77 = vector.broadcast %76 : vector<2x64x1xf32> to vector<2x64x64xf32>
    %78 = arith.subf %74, %77 : vector<2x64x64xf32>
    %79 = math.exp %78 : vector<2x64x64xf32>
    %cst_29 = arith.constant dense<0.000000e+00> : vector<2x64xf32>
    %80 = vector.multi_reduction <add>, %79, %cst_29 [2] : vector<2x64x64xf32> to vector<2x64xf32>
    %81 = vector.shape_cast %80 : vector<2x64xf32> to vector<2x64x1xf32>
    %82 = tpu.reciprocal %81 : vector<2x64x1xf32> -> vector<2x64x1xf32>
    %83 = vector.broadcast %82 : vector<2x64x1xf32> to vector<2x64x64xf32>
    %84 = arith.mulf %79, %83 : vector<2x64x64xf32>
    "tpu.trace_start"() <{level = 10 : i32, message = "bnm,bmd->bnd"}> : () -> ()
    %cst_30 = arith.constant dense<0.000000e+00> : vector<2x64x8xf32>
    %85 = tpu.matmul %84, %73, %cst_30 {dimension_numbers = #tpu.dot_dimension_numbers<[2], [1], [1], [2], [0, 0, 0, 1, 1, 2], [0], [0]>} : vector<2x64x64xf32>, vector<2x64x8xf32>, vector<2x64x8xf32> -> vector<2x64x8xf32>
    "tpu.trace_stop"() : () -> ()
    %86 = vector.extract_strided_slice %36 {offsets = [0, 0, 24], sizes = [2, 64, 8], strides = [1, 1, 1]} : vector<2x64x32xf32> to vector<2x64x8xf32>
    %87 = vector.extract_strided_slice %38 {offsets = [0, 0, 24], sizes = [2, 64, 8], strides = [1, 1, 1]} : vector<2x64x32xf32> to vector<2x64x8xf32>
    %88 = vector.extract_strided_slice %40 {offsets = [0, 0, 24], sizes = [2, 64, 8], strides = [1, 1, 1]} : vector<2x64x32xf32> to vector<2x64x8xf32>
    "tpu.trace_start"() <{level = 10 : i32, message = "bnd,bmd->bnm"}> : () -> ()
    %cst_31 = arith.constant dense<0.000000e+00> : vector<2x64x64xf32>
    %89 = tpu.matmul %86, %87, %cst_31 {dimension_numbers = #tpu.dot_dimension_numbers<[2], [2], [1], [1], [0, 0, 0, 1, 1, 1], [0], [0]>} : vector<2x64x8xf32>, vector<2x64x8xf32>, vector<2x64x64xf32> -> vector<2x64x64xf32>
    "tpu.trace_stop"() : () -> ()
    %cst_32 = arith.constant dense<0xFF800000> : vector<2x64xf32>
    %90 = vector.multi_reduction <maximumf>, %89, %cst_32 [2] : vector<2x64x64xf32> to vector<2x64xf32>
    %91 = vector.shape_cast %90 : vector<2x64xf32> to vector<2x64x1xf32>
    %92 = vector.broadcast %91 : vector<2x64x1xf32> to vector<2x64x64xf32>
    %93 = arith.subf %89, %92 : vector<2x64x64xf32>
    %94 = math.exp %93 : vector<2x64x64xf32>
    %cst_33 = arith.constant dense<0.000000e+00> : vector<2x64xf32>
    %95 = vector.multi_reduction <add>, %94, %cst_33 [2] : vector<2x64x64xf32> to vector<2x64xf32>
    %96 = vector.shape_cast %95 : vector<2x64xf32> to vector<2x64x1xf32>
    %97 = tpu.reciprocal %96 : vector<2x64x1xf32> -> vector<2x64x1xf32>
    %98 = vector.broadcast %97 : vector<2x64x1xf32> to vector<2x64x64xf32>
    %99 = arith.mulf %94, %98 : vector<2x64x64xf32>
    "tpu.trace_start"() <{level = 10 : i32, message = "bnm,bmd->bnd"}> : () -> ()
    %cst_34 = arith.constant dense<0.000000e+00> : vector<2x64x8xf32>
    %100 = tpu.matmul %99, %88, %cst_34 {dimension_numbers = #tpu.dot_dimension_numbers<[2], [1], [1], [2], [0, 0, 0, 1, 1, 2], [0], [0]>} : vector<2x64x64xf32>, vector<2x64x8xf32>, vector<2x64x8xf32> -> vector<2x64x8xf32>
    "tpu.trace_stop"() : () -> ()
    %101 = tpu.concatenate %55, %70, %85, %100 in 2 : vector<2x64x8xf32>, vector<2x64x8xf32>, vector<2x64x8xf32>, vector<2x64x8xf32> -> vector<2x64x32xf32>
    %102 = vector.shape_cast %101 : vector<2x64x32xf32> to vector<128x32xf32>
    %c0_35 = arith.constant 0 : index
    %c0_36 = arith.constant 0 : index
    %c0_37 = arith.constant 0 : index
    %103 = vector.load %arg6[%c0_35, %c0_36, %c0_37] : memref<1x32x32xf32, #tpu.memory_space<vmem>>, vector<1x32x32xf32>
    %104 = vector.shape_cast %103 : vector<1x32x32xf32> to vector<32x32xf32>
    %cst_38 = arith.constant dense<0.000000e+00> : vector<128x32xf32>
    %105 = tpu.matmul %102, %104, %cst_38 {dimension_numbers = #tpu.dot_dimension_numbers<[1], [0], [0], [1], [0, 0, 1, 1], [], []>} : vector<128x32xf32>, vector<32x32xf32>, vector<128x32xf32> -> vector<128x32xf32>
    %c0_39 = arith.constant 0 : index
    %c0_40 = arith.constant 0 : index
    %c0_41 = arith.constant 0 : index
    %106 = vector.load %arg7[%c0_39, %c0_40, %c0_41] : memref<1x1x32xf32, #tpu.memory_space<vmem>>, vector<1x1x32xf32>
    %107 = vector.shape_cast %106 : vector<1x1x32xf32> to vector<1x32xf32>
    %108 = vector.broadcast %107 : vector<1x32xf32> to vector<128x32xf32>
    %109 = arith.addf %105, %108 : vector<128x32xf32>
    %110 = arith.addf %3, %109 : vector<128x32xf32>
    %c0_42 = arith.constant 0 : index
    %c0_43 = arith.constant 0 : index
    %c0_44 = arith.constant 0 : index
    %111 = vector.load %arg8[%c0_42, %c0_43, %c0_44] : memref<1x1x32xf32, #tpu.memory_space<vmem>>, vector<1x1x32xf32>
    %112 = vector.shape_cast %111 : vector<1x1x32xf32> to vector<1x32xf32>
    %c0_45 = arith.constant 0 : index
    %c0_46 = arith.constant 0 : index
    %c0_47 = arith.constant 0 : index
    %113 = vector.load %arg9[%c0_45, %c0_46, %c0_47] : memref<1x1x32xf32, #tpu.memory_space<vmem>>, vector<1x1x32xf32>
    %114 = vector.shape_cast %113 : vector<1x1x32xf32> to vector<1x32xf32>
    %cst_48 = arith.constant dense<0.000000e+00> : vector<128xf32>
    %115 = vector.multi_reduction <add>, %110, %cst_48 [1] : vector<128x32xf32> to vector<128xf32>
    %116 = vector.shape_cast %115 : vector<128xf32> to vector<128x1xf32>
    %cst_49 = arith.constant 3.200000e+01 : f32
    %117 = vector.broadcast %cst_49 : f32 to vector<128x1xf32>
    %118 = arith.divf %116, %117 : vector<128x1xf32>
    %119 = vector.broadcast %118 : vector<128x1xf32> to vector<128x32xf32>
    %120 = arith.subf %110, %119 : vector<128x32xf32>
    %121 = arith.mulf %120, %120 : vector<128x32xf32>
    %cst_50 = arith.constant dense<0.000000e+00> : vector<128xf32>
    %122 = vector.multi_reduction <add>, %121, %cst_50 [1] : vector<128x32xf32> to vector<128xf32>
    %123 = vector.shape_cast %122 : vector<128xf32> to vector<128x1xf32>
    %cst_51 = arith.constant 3.200000e+01 : f32
    %124 = vector.broadcast %cst_51 : f32 to vector<128x1xf32>
    %125 = arith.divf %123, %124 : vector<128x1xf32>
    %cst_52 = arith.constant 9.99999974E-6 : f32
    %126 = vector.broadcast %cst_52 : f32 to vector<128x1xf32>
    %127 = arith.addf %125, %126 : vector<128x1xf32>
    %128 = math.rsqrt %127 : vector<128x1xf32>
    %129 = vector.broadcast %128 : vector<128x1xf32> to vector<128x32xf32>
    %130 = arith.mulf %120, %129 : vector<128x32xf32>
    %131 = vector.broadcast %112 : vector<1x32xf32> to vector<128x32xf32>
    %132 = arith.mulf %130, %131 : vector<128x32xf32>
    %133 = vector.broadcast %114 : vector<1x32xf32> to vector<128x32xf32>
    %134 = arith.addf %132, %133 : vector<128x32xf32>
    %c0_53 = arith.constant 0 : index
    %c0_54 = arith.constant 0 : index
    %c0_55 = arith.constant 0 : index
    %135 = vector.load %arg10[%c0_53, %c0_54, %c0_55] : memref<1x32x128xf32, #tpu.memory_space<vmem>>, vector<1x32x128xf32>
    %136 = vector.shape_cast %135 : vector<1x32x128xf32> to vector<32x128xf32>
    %cst_56 = arith.constant dense<0.000000e+00> : vector<128x128xf32>
    %137 = tpu.matmul %134, %136, %cst_56 {dimension_numbers = #tpu.dot_dimension_numbers<[1], [0], [0], [1], [0, 0, 1, 1], [], []>} : vector<128x32xf32>, vector<32x128xf32>, vector<128x128xf32> -> vector<128x128xf32>
    %c0_57 = arith.constant 0 : index
    %c0_58 = arith.constant 0 : index
    %c0_59 = arith.constant 0 : index
    %138 = vector.load %arg11[%c0_57, %c0_58, %c0_59] : memref<1x1x128xf32, #tpu.memory_space<vmem>>, vector<1x1x128xf32>
    %139 = vector.shape_cast %138 : vector<1x1x128xf32> to vector<1x128xf32>
    %140 = vector.broadcast %139 : vector<1x128xf32> to vector<128x128xf32>
    %141 = arith.addf %137, %140 : vector<128x128xf32>
    %cst_60 = arith.constant 5.000000e-01 : f32
    %142 = vector.broadcast %cst_60 : f32 to vector<128x128xf32>
    %143 = arith.mulf %142, %141 : vector<128x128xf32>
    %cst_61 = arith.constant 0.707106769 : f32
    %144 = vector.broadcast %cst_61 : f32 to vector<128x128xf32>
    %145 = arith.mulf %141, %144 : vector<128x128xf32>
    %cst_62 = arith.constant 0.000000e+00 : f32
    %146 = vector.broadcast %cst_62 : f32 to vector<128x128xf32>
    %147 = arith.cmpf oge, %145, %146 : vector<128x128xf32>
    %cst_63 = arith.constant 1.000000e+00 : f32
    %cst_64 = arith.constant -1.000000e+00 : f32
    %148 = vector.broadcast %cst_63 : f32 to vector<128x128xf32>
    %149 = vector.broadcast %cst_64 : f32 to vector<128x128xf32>
    %150 = arith.select %147, %148, %149 : vector<128x128xi1>, vector<128x128xf32>
    %151 = math.absf %145 : vector<128x128xf32>
    %cst_65 = arith.constant 0.327591091 : f32
    %152 = vector.broadcast %cst_65 : f32 to vector<128x128xf32>
    %153 = arith.mulf %152, %151 : vector<128x128xf32>
    %cst_66 = arith.constant 1.000000e+00 : f32
    %154 = vector.broadcast %cst_66 : f32 to vector<128x128xf32>
    %155 = arith.addf %154, %153 : vector<128x128xf32>
    %cst_67 = arith.constant 1.000000e+00 : f32
    %156 = vector.broadcast %cst_67 : f32 to vector<128x128xf32>
    %157 = arith.divf %156, %155 : vector<128x128xf32>
    %cst_68 = arith.constant 1.06140542 : f32
    %158 = vector.broadcast %cst_68 : f32 to vector<128x128xf32>
    %159 = arith.mulf %158, %157 : vector<128x128xf32>
    %cst_69 = arith.constant -1.45315206 : f32
    %160 = vector.broadcast %cst_69 : f32 to vector<128x128xf32>
    %161 = arith.addf %159, %160 : vector<128x128xf32>
    %162 = arith.mulf %161, %157 : vector<128x128xf32>
    %cst_70 = arith.constant 1.42141378 : f32
    %163 = vector.broadcast %cst_70 : f32 to vector<128x128xf32>
    %164 = arith.addf %162, %163 : vector<128x128xf32>
    %165 = arith.mulf %164, %157 : vector<128x128xf32>
    %cst_71 = arith.constant -0.284496725 : f32
    %166 = vector.broadcast %cst_71 : f32 to vector<128x128xf32>
    %167 = arith.addf %165, %166 : vector<128x128xf32>
    %168 = arith.mulf %167, %157 : vector<128x128xf32>
    %cst_72 = arith.constant 0.254829586 : f32
    %169 = vector.broadcast %cst_72 : f32 to vector<128x128xf32>
    %170 = arith.addf %168, %169 : vector<128x128xf32>
    %171 = arith.mulf %170, %157 : vector<128x128xf32>
    %cst_73 = arith.constant 0.000000e+00 : f32
    %172 = vector.broadcast %cst_73 : f32 to vector<128x128xf32>
    %173 = arith.subf %172, %151 : vector<128x128xf32>
    %174 = arith.mulf %173, %151 : vector<128x128xf32>
    %175 = math.exp %174 : vector<128x128xf32>
    %176 = arith.mulf %171, %175 : vector<128x128xf32>
    %cst_74 = arith.constant 1.000000e+00 : f32
    %177 = vector.broadcast %cst_74 : f32 to vector<128x128xf32>
    %178 = arith.subf %177, %176 : vector<128x128xf32>
    %179 = arith.mulf %150, %178 : vector<128x128xf32>
    %cst_75 = arith.constant 1.000000e+00 : f32
    %180 = vector.broadcast %cst_75 : f32 to vector<128x128xf32>
    %181 = arith.addf %180, %179 : vector<128x128xf32>
    %182 = arith.mulf %143, %181 : vector<128x128xf32>
    %c0_76 = arith.constant 0 : index
    %c0_77 = arith.constant 0 : index
    %c0_78 = arith.constant 0 : index
    %183 = vector.load %arg12[%c0_76, %c0_77, %c0_78] : memref<1x128x32xf32, #tpu.memory_space<vmem>>, vector<1x128x32xf32>
    %184 = vector.shape_cast %183 : vector<1x128x32xf32> to vector<128x32xf32>
    %cst_79 = arith.constant dense<0.000000e+00> : vector<128x32xf32>
    %185 = tpu.matmul %182, %184, %cst_79 {dimension_numbers = #tpu.dot_dimension_numbers<[1], [0], [0], [1], [0, 0, 1, 1], [], []>} : vector<128x128xf32>, vector<128x32xf32>, vector<128x32xf32> -> vector<128x32xf32>
    %c0_80 = arith.constant 0 : index
    %c0_81 = arith.constant 0 : index
    %c0_82 = arith.constant 0 : index
    %186 = vector.load %arg13[%c0_80, %c0_81, %c0_82] : memref<1x1x32xf32, #tpu.memory_space<vmem>>, vector<1x1x32xf32>
    %187 = vector.shape_cast %186 : vector<1x1x32xf32> to vector<1x32xf32>
    %188 = vector.broadcast %187 : vector<1x32xf32> to vector<128x32xf32>
    %189 = arith.addf %185, %188 : vector<128x32xf32>
    %190 = arith.addf %110, %189 : vector<128x32xf32>
    %c0_83 = arith.constant 0 : index
    %c0_84 = arith.constant 0 : index
    %191 = vector.load %arg15[%c0_83, %c0_84] : memref<128x32xf32, #tpu.memory_space<vmem>>, vector<128x32xf32>
    tpu.vector_store %arg15[%c0_83, %c0_84], %190 {strides = array<i32>} : memref<128x32xf32, #tpu.memory_space<vmem>>, vector<128x32xf32>,
    %c1_i32 = arith.constant 1 : i32
    %192 = arith.cmpi eq, %arg0, %c1_i32 : i32
    %193 = arith.extui %192 : i1 to i32
    %c0_i32_85 = arith.constant 0 : i32
    %194 = arith.cmpi ne, %193, %c0_i32_85 : i32
    scf.if %194 {
      %195 = vector.extract_strided_slice %190 {offsets = [0, 0], sizes = [64, 32], strides = [1, 1]} : vector<128x32xf32> to vector<64x32xf32>
      %196 = tpu.transpose %195, [1, 0] : vector<64x32xf32> -> vector<32x64xf32>
      %c0_86 = arith.constant 0 : index
      %c0_87 = arith.constant 0 : index
      %c0_88 = arith.constant 0 : index
      %197 = vector.load %arg14[%c0_86, %c0_87, %c0_88] : memref<2x32x64xf32, #tpu.memory_space<vmem>>, vector<1x32x64xf32>
      %198 = vector.shape_cast %197 : vector<1x32x64xf32> to vector<32x64xf32>
      %199 = vector.shape_cast %196 : vector<32x64xf32> to vector<1x32x64xf32>
      tpu.vector_store %arg14[%c0_86, %c0_87, %c0_88], %199 {strides = array<i32>} : memref<2x32x64xf32, #tpu.memory_space<vmem>>, vector<1x32x64xf32>,
      %200 = vector.extract_strided_slice %190 {offsets = [64, 0], sizes = [64, 32], strides = [1, 1]} : vector<128x32xf32> to vector<64x32xf32>
      %201 = tpu.transpose %200, [1, 0] : vector<64x32xf32> -> vector<32x64xf32>
      %c1 = arith.constant 1 : index
      %c0_89 = arith.constant 0 : index
      %c0_90 = arith.constant 0 : index
      %202 = vector.load %arg14[%c1, %c0_89, %c0_90] : memref<2x32x64xf32, #tpu.memory_space<vmem>>, vector<1x32x64xf32>
      %203 = vector.shape_cast %202 : vector<1x32x64xf32> to vector<32x64xf32>
      %204 = vector.shape_cast %201 : vector<32x64xf32> to vector<1x32x64xf32>
      tpu.vector_store %arg14[%c1, %c0_89, %c0_90], %204 {strides = array<i32>} : memref<2x32x64xf32, #tpu.memory_space<vmem>>, vector<1x32x64xf32>,
    } else {
    }
    return
  }
  func.func @transform_0(%arg0: i32) -> (i32, i32, i32) {
    %c0_i32 = arith.constant 0 : i32
    %c0_i32_0 = arith.constant 0 : i32
    %c0_i32_1 = arith.constant 0 : i32
    %c0_i32_2 = arith.constant 0 : i32
    return %c0_i32, %c0_i32_0, %c0_i32_1 : i32, i32, i32
  }
  func.func @transform_1(%arg0: i32) -> (i32, i32, i32) {
    %c0_i32 = arith.constant 0 : i32
    %c0_i32_0 = arith.constant 0 : i32
    %c0_i32_1 = arith.constant 0 : i32
    return %arg0, %c0_i32, %c0_i32_0 : i32, i32, i32
  }
  func.func @transform_2(%arg0: i32) -> (i32, i32, i32) {
    %c0_i32 = arith.constant 0 : i32
    %c0_i32_0 = arith.constant 0 : i32
    %c0_i32_1 = arith.constant 0 : i32
    return %arg0, %c0_i32, %c0_i32_0 : i32, i32, i32
  }
  func.func @transform_3(%arg0: i32) -> (i32, i32, i32) {
    %c0_i32 = arith.constant 0 : i32
    %c0_i32_0 = arith.constant 0 : i32
    %c0_i32_1 = arith.constant 0 : i32
    return %arg0, %c0_i32, %c0_i32_0 : i32, i32, i32
  }
  func.func @transform_4(%arg0: i32) -> (i32, i32, i32) {
    %c0_i32 = arith.constant 0 : i32
    %c0_i32_0 = arith.constant 0 : i32
    %c0_i32_1 = arith.constant 0 : i32
    return %arg0, %c0_i32, %c0_i32_0 : i32, i32, i32
  }
  func.func @transform_5(%arg0: i32) -> (i32, i32, i32) {
    %c0_i32 = arith.constant 0 : i32
    %c0_i32_0 = arith.constant 0 : i32
    %c0_i32_1 = arith.constant 0 : i32
    return %arg0, %c0_i32, %c0_i32_0 : i32, i32, i32
  }
  func.func @transform_6(%arg0: i32) -> (i32, i32, i32) {
    %c0_i32 = arith.constant 0 : i32
    %c0_i32_0 = arith.constant 0 : i32
    %c0_i32_1 = arith.constant 0 : i32
    return %arg0, %c0_i32, %c0_i32_0 : i32, i32, i32
  }
  func.func @transform_7(%arg0: i32) -> (i32, i32, i32) {
    %c0_i32 = arith.constant 0 : i32
    %c0_i32_0 = arith.constant 0 : i32
    %c0_i32_1 = arith.constant 0 : i32
    return %arg0, %c0_i32, %c0_i32_0 : i32, i32, i32
  }
  func.func @transform_8(%arg0: i32) -> (i32, i32, i32) {
    %c0_i32 = arith.constant 0 : i32
    %c0_i32_0 = arith.constant 0 : i32
    %c0_i32_1 = arith.constant 0 : i32
    return %arg0, %c0_i32, %c0_i32_0 : i32, i32, i32
  }
  func.func @transform_9(%arg0: i32) -> (i32, i32, i32) {
    %c0_i32 = arith.constant 0 : i32
    %c0_i32_0 = arith.constant 0 : i32
    %c0_i32_1 = arith.constant 0 : i32
    return %arg0, %c0_i32, %c0_i32_0 : i32, i32, i32
  }
  func.func @transform_10(%arg0: i32) -> (i32, i32, i32) {
    %c0_i32 = arith.constant 0 : i32
    %c0_i32_0 = arith.constant 0 : i32
    %c0_i32_1 = arith.constant 0 : i32
    return %arg0, %c0_i32, %c0_i32_0 : i32, i32, i32
  }
  func.func @transform_11(%arg0: i32) -> (i32, i32, i32) {
    %c0_i32 = arith.constant 0 : i32
    %c0_i32_0 = arith.constant 0 : i32
    %c0_i32_1 = arith.constant 0 : i32
    return %arg0, %c0_i32, %c0_i32_0 : i32, i32, i32
  }
  func.func @transform_12(%arg0: i32) -> (i32, i32, i32) {
    %c0_i32 = arith.constant 0 : i32
    %c0_i32_0 = arith.constant 0 : i32
    %c0_i32_1 = arith.constant 0 : i32
    return %arg0, %c0_i32, %c0_i32_0 : i32, i32, i32
  }
  func.func @transform_13(%arg0: i32) -> (i32, i32, i32) {
    %c0_i32 = arith.constant 0 : i32
    %c0_i32_0 = arith.constant 0 : i32
    %c0_i32_1 = arith.constant 0 : i32
    %c0_i32_2 = arith.constant 0 : i32
    return %c0_i32, %c0_i32_0, %c0_i32_1 : i32, i32, i32
  }
}

</mosaic_0001>

<llo_original>
// kernel: _lambda_.1
$region0: #{_lambda_.1}
  #allocation0 [shape = 'u32[]', space=smem, size = 0x4, offset = 0x4, fixed_abs, tag = 'smem constant byte address 0x4 - core index']
  #allocation1 [shape = 'u32[72,128]{1,0:T(1,128)}', space=vmem, size = 0x9000, scoped, tag = 'internal scratch']
  #allocation2 [shape = 'f32[128,32]{1,0:T(8,128)}', space=vmem, size = 0x10000, scoped, tag = 'scratch operand']
  %s0 = inlined_call_operand.vmem [shape: f32[2,32,64], index: 0, kind: input, shape index: {}]
  %s1 = inlined_call_operand.vmem [shape: f32[2,1,32], index: 1, kind: input, shape index: {}]
  %s2 = inlined_call_operand.vmem [shape: f32[2,1,32], index: 2, kind: input, shape index: {}]
  %s3 = inlined_call_operand.vmem [shape: f32[2,32,96], index: 3, kind: input, shape index: {}]
  %s4 = inlined_call_operand.vmem [shape: f32[2,1,96], index: 4, kind: input, shape index: {}]
  %s5 = inlined_call_operand.vmem [shape: f32[2,32,32], index: 5, kind: input, shape index: {}]
  %s6 = inlined_call_operand.vmem [shape: f32[2,1,32], index: 6, kind: input, shape index: {}]
  %s7 = inlined_call_operand.vmem [shape: f32[2,1,32], index: 7, kind: input, shape index: {}]
  %s8 = inlined_call_operand.vmem [shape: f32[2,1,32], index: 8, kind: input, shape index: {}]
  %s9 = inlined_call_operand.vmem [shape: f32[2,32,128], index: 9, kind: input, shape index: {}]
  %s10 = inlined_call_operand.vmem [shape: f32[2,1,128], index: 10, kind: input, shape index: {}]
  %s11 = inlined_call_operand.vmem [shape: f32[2,128,32], index: 11, kind: input, shape index: {}]
  %s12 = inlined_call_operand.vmem [shape: f32[2,1,32], index: 12, kind: input, shape index: {}]
  %s13 = inlined_call_operand.vmem [shape: f32[2,32,64], index: 13, kind: output, shape index: {}]
  %s14 = sld [smem:[#allocation0]]
  $region93: #{_lambda_.1} parent=0
    _
  %s16 = ssub.s32 1, %s14
  %s17 = scalar_select 0, %s16, %s14
  loop: start=0, step=1, limit=4
  $region2: #{_lambda_.1} parent=0 // loop_pre_header
    _
  $region3: #{_lambda_.1} parent=0 // loop_header
    %s19 = sphi 0, %s23
    %p20 = scmp.ge.s32.totalorder %s19, 4
    %s27 = sphi 0, %s27
    %s29 = sphi 0, %s27
    %s30 = sphi 0, %s29
    %s44 = sphi 0, %s30
    %s50 = sphi 0, %s52
    %s53 = sphi 0, %s50
    %s54 = sphi 0, %s53
    %s70 = sphi 0, %s54
    %s76 = sphi 0, %s78
    %s79 = sphi 0, %s76
    %s80 = sphi 0, %s79
    %s96 = sphi 0, %s80
    %s102 = sphi 0, %s104
    %s105 = sphi 0, %s102
    %s106 = sphi 0, %s105
    %s122 = sphi 0, %s106
    %s128 = sphi 0, %s130
    %s131 = sphi 0, %s128
    %s132 = sphi 0, %s131
    %s148 = sphi 0, %s132
    %s154 = sphi 0, %s156
    %s157 = sphi 0, %s154
    %s158 = sphi 0, %s157
    %s174 = sphi 0, %s158
    %s180 = sphi 0, %s182
    %s183 = sphi 0, %s180
    %s184 = sphi 0, %s183
    %s200 = sphi 0, %s184
    %s206 = sphi 0, %s208
    %s209 = sphi 0, %s206
    %s210 = sphi 0, %s209
    %s226 = sphi 0, %s210
    %s232 = sphi 0, %s234
    %s235 = sphi 0, %s232
    %s236 = sphi 0, %s235
    %s252 = sphi 0, %s236
    %s258 = sphi 0, %s260
    %s261 = sphi 0, %s258
    %s262 = sphi 0, %s261
    %s278 = sphi 0, %s262
    %s284 = sphi 0, %s286
    %s287 = sphi 0, %s284
    %s288 = sphi 0, %s287
    %s304 = sphi 0, %s288
    %s310 = sphi 0, %s312
    %s313 = sphi 0, %s310
    %s314 = sphi 0, %s313
    %s330 = sphi 0, %s314
    %s336 = sphi 0, %s338
    %s339 = sphi 0, %s336
    %s340 = sphi 0, %s339
    %s356 = sphi 0, %s340
    %s360 = sphi 0, %s360
    %s362 = sphi 0, %s360
    %s363 = sphi 0, %s362
    %s377 = sphi 0, %s363
  $region4: #{_lambda_.1} parent=0 // loop_header_branch
    %22 = sbr.rel (%p20) target = $region8
  $region5: #{_lambda_.1} parent=0 // loop_body
    %s24 = ssub.s32 %s19, 1
    %s25 = ssub.s32 %s19, 2
    %s26 = sadd.s32 %s19, 1
    %s28 = sadd.s32 %s27, 1
    %p31 = scmp.eq.s32.totalorder %s19, 1
    %p32 = scmp.ne.s32.totalorder %s27, %s29
    %p33 = scmp.eq.s32.totalorder %s19, 0
    %p34 = por %p32, %p33
    %p35 = scmp.ne.s32.totalorder %s27, %s29
    %p36 = scmp.eq.s32.totalorder %s24, 1
    %p37 = por %p35, %p36
    %p38 = scmp.ne.s32.totalorder %s29, %s30
    %p39 = scmp.eq.s32.totalorder %s24, 0
    %p40 = por %p38, %p39
    %p41 = scmp.ne.s32.totalorder %s29, %s30
    %p42 = scmp.eq.s32.totalorder %s25, 1
    %p43 = por %p41, %p42
    %p45 = scmp.ne.s32.totalorder %s30, %s44
    %p46 = scmp.eq.s32.totalorder %s25, 0
    %p47 = por %p45, %p46
    %s48 = ssub.s32 %s19, %s26
    %p49 = scmp.eq.s32.totalorder %s48, 0
    %s51 = sadd.s32 %s50, 1
    %s52 = scalar_select %p49, %s50, %s51
    %p55 = pneg %p49
    %p56 = scmp.eq.s32.totalorder %s19, 1
    %p57 = por %p55, %p56
    %p58 = scmp.ne.s32.totalorder %s50, %s53
    %p59 = scmp.eq.s32.totalorder %s19, 0
    %p60 = por %p58, %p59
    %p61 = scmp.ne.s32.totalorder %s50, %s53
    %p62 = scmp.eq.s32.totalorder %s24, 1
    %p63 = por %p61, %p62
    %p64 = scmp.ne.s32.totalorder %s53, %s54
    %p65 = scmp.eq.s32.totalorder %s24, 0
    %p66 = por %p64, %p65
    %p67 = scmp.ne.s32.totalorder %s53, %s54
    %p68 = scmp.eq.s32.totalorder %s25, 1
    %p69 = por %p67, %p68
    %p71 = scmp.ne.s32.totalorder %s54, %s70
    %p72 = scmp.eq.s32.totalorder %s25, 0
    %p73 = por %p71, %p72
    %s74 = ssub.s32 %s19, %s26
    %p75 = scmp.eq.s32.totalorder %s74, 0
    %s77 = sadd.s32 %s76, 1
    %s78 = scalar_select %p75, %s76, %s77
    %p81 = pneg %p75
    %p82 = scmp.eq.s32.totalorder %s19, 1
    %p83 = por %p81, %p82
    %p84 = scmp.ne.s32.totalorder %s76, %s79
    %p85 = scmp.eq.s32.totalorder %s19, 0
    %p86 = por %p84, %p85
    %p87 = scmp.ne.s32.totalorder %s76, %s79
    %p88 = scmp.eq.s32.totalorder %s24, 1
    %p89 = por %p87, %p88
    %p90 = scmp.ne.s32.totalorder %s79, %s80
    %p91 = scmp.eq.s32.totalorder %s24, 0
    %p92 = por %p90, %p91
    %p93 = scmp.ne.s32.totalorder %s79, %s80
    %p94 = scmp.eq.s32.totalorder %s25, 1
    %p95 = por %p93, %p94
    %p97 = scmp.ne.s32.totalorder %s80, %s96
    %p98 = scmp.eq.s32.totalorder %s25, 0
    %p99 = por %p97, %p98
    %s100 = ssub.s32 %s19, %s26
    %p101 = scmp.eq.s32.totalorder %s100, 0
    %s103 = sadd.s32 %s102, 1
    %s104 = scalar_select %p101, %s102, %s103
    %p107 = pneg %p101
    %p108 = scmp.eq.s32.totalorder %s19, 1
    %p109 = por %p107, %p108
    %p110 = scmp.ne.s32.totalorder %s102, %s105
    %p111 = scmp.eq.s32.totalorder %s19, 0
    %p112 = por %p110, %p111
    %p113 = scmp.ne.s32.totalorder %s102, %s105
    %p114 = scmp.eq.s32.totalorder %s24, 1
    %p115 = por %p113, %p114
    %p116 = scmp.ne.s32.totalorder %s105, %s106
    %p117 = scmp.eq.s32.totalorder %s24, 0
    %p118 = por %p116, %p117
    %p119 = scmp.ne.s32.totalorder %s105, %s106
    %p120 = scmp.eq.s32.totalorder %s25, 1
    %p121 = por %p119, %p120
    %p123 = scmp.ne.s32.totalorder %s106, %s122
    %p124 = scmp.eq.s32.totalorder %s25, 0
    %p125 = por %p123, %p124
    %s126 = ssub.s32 %s19, %s26
    %p127 = scmp.eq.s32.totalorder %s126, 0
    %s129 = sadd.s32 %s128, 1
    %s130 = scalar_select %p127, %s128, %s129
    %p133 = pneg %p127
    %p134 = scmp.eq.s32.totalorder %s19, 1
    %p135 = por %p133, %p134
    %p136 = scmp.ne.s32.totalorder %s128, %s131
    %p137 = scmp.eq.s32.totalorder %s19, 0
    %p138 = por %p136, %p137
    %p139 = scmp.ne.s32.totalorder %s128, %s131
    %p140 = scmp.eq.s32.totalorder %s24, 1
    %p141 = por %p139, %p140
    %p142 = scmp.ne.s32.totalorder %s131, %s132
    %p143 = scmp.eq.s32.totalorder %s24, 0
    %p144 = por %p142, %p143
    %p145 = scmp.ne.s32.totalorder %s131, %s132
    %p146 = scmp.eq.s32.totalorder %s25, 1
    %p147 = por %p145, %p146
    %p149 = scmp.ne.s32.totalorder %s132, %s148
    %p150 = scmp.eq.s32.totalorder %s25, 0
    %p151 = por %p149, %p150
    %s152 = ssub.s32 %s19, %s26
    %p153 = scmp.eq.s32.totalorder %s152, 0
    %s155 = sadd.s32 %s154, 1
    %s156 = scalar_select %p153, %s154, %s155
    %p159 = pneg %p153
    %p160 = scmp.eq.s32.totalorder %s19, 1
    %p161 = por %p159, %p160
    %p162 = scmp.ne.s32.totalorder %s154, %s157
    %p163 = scmp.eq.s32.totalorder %s19, 0
    %p164 = por %p162, %p163
    %p165 = scmp.ne.s32.totalorder %s154, %s157
    %p166 = scmp.eq.s32.totalorder %s24, 1
    %p167 = por %p165, %p166
    %p168 = scmp.ne.s32.totalorder %s157, %s158
    %p169 = scmp.eq.s32.totalorder %s24, 0
    %p170 = por %p168, %p169
    %p171 = scmp.ne.s32.totalorder %s157, %s158
    %p172 = scmp.eq.s32.totalorder %s25, 1
    %p173 = por %p171, %p172
    %p175 = scmp.ne.s32.totalorder %s158, %s174
    %p176 = scmp.eq.s32.totalorder %s25, 0
    %p177 = por %p175, %p176
    %s178 = ssub.s32 %s19, %s26
    %p179 = scmp.eq.s32.totalorder %s178, 0
    %s181 = sadd.s32 %s180, 1
    %s182 = scalar_select %p179, %s180, %s181
    %p185 = pneg %p179
    %p186 = scmp.eq.s32.totalorder %s19, 1
    %p187 = por %p185, %p186
    %p188 = scmp.ne.s32.totalorder %s180, %s183
    %p189 = scmp.eq.s32.totalorder %s19, 0
    %p190 = por %p188, %p189
    %p191 = scmp.ne.s32.totalorder %s180, %s183
    %p192 = scmp.eq.s32.totalorder %s24, 1
    %p193 = por %p191, %p192
    %p194 = scmp.ne.s32.totalorder %s183, %s184
    %p195 = scmp.eq.s32.totalorder %s24, 0
    %p196 = por %p194, %p195
    %p197 = scmp.ne.s32.totalorder %s183, %s184
    %p198 = scmp.eq.s32.totalorder %s25, 1
    %p199 = por %p197, %p198
    %p201 = scmp.ne.s32.totalorder %s184, %s200
    %p202 = scmp.eq.s32.totalorder %s25, 0
    %p203 = por %p201, %p202
    %s204 = ssub.s32 %s19, %s26
    %p205 = scmp.eq.s32.totalorder %s204, 0
    %s207 = sadd.s32 %s206, 1
    %s208 = scalar_select %p205, %s206, %s207
    %p211 = pneg %p205
    %p212 = scmp.eq.s32.totalorder %s19, 1
    %p213 = por %p211, %p212
    %p214 = scmp.ne.s32.totalorder %s206, %s209
    %p215 = scmp.eq.s32.totalorder %s19, 0
    %p216 = por %p214, %p215
    %p217 = scmp.ne.s32.totalorder %s206, %s209
    %p218 = scmp.eq.s32.totalorder %s24, 1
    %p219 = por %p217, %p218
    %p220 = scmp.ne.s32.totalorder %s209, %s210
    %p221 = scmp.eq.s32.totalorder %s24, 0
    %p222 = por %p220, %p221
    %p223 = scmp.ne.s32.totalorder %s209, %s210
    %p224 = scmp.eq.s32.totalorder %s25, 1
    %p225 = por %p223, %p224
    %p227 = scmp.ne.s32.totalorder %s210, %s226
    %p228 = scmp.eq.s32.totalorder %s25, 0
    %p229 = por %p227, %p228
    %s230 = ssub.s32 %s19, %s26
    %p231 = scmp.eq.s32.totalorder %s230, 0
    %s233 = sadd.s32 %s232, 1
    %s234 = scalar_select %p231, %s232, %s233
    %p237 = pneg %p231
    %p238 = scmp.eq.s32.totalorder %s19, 1
    %p239 = por %p237, %p238
    %p240 = scmp.ne.s32.totalorder %s232, %s235
    %p241 = scmp.eq.s32.totalorder %s19, 0
    %p242 = por %p240, %p241
    %p243 = scmp.ne.s32.totalorder %s232, %s235
    %p244 = scmp.eq.s32.totalorder %s24, 1
    %p245 = por %p243, %p244
    %p246 = scmp.ne.s32.totalorder %s235, %s236
    %p247 = scmp.eq.s32.totalorder %s24, 0
    %p248 = por %p246, %p247
    %p249 = scmp.ne.s32.totalorder %s235, %s236
    %p250 = scmp.eq.s32.totalorder %s25, 1
    %p251 = por %p249, %p250
    %p253 = scmp.ne.s32.totalorder %s236, %s252
    %p254 = scmp.eq.s32.totalorder %s25, 0
    %p255 = por %p253, %p254
    %s256 = ssub.s32 %s19, %s26
    %p257 = scmp.eq.s32.totalorder %s256, 0
    %s259 = sadd.s32 %s258, 1
    %s260 = scalar_select %p257, %s258, %s259
    %p263 = pneg %p257
    %p264 = scmp.eq.s32.totalorder %s19, 1
    %p265 = por %p263, %p264
    %p266 = scmp.ne.s32.totalorder %s258, %s261
    %p267 = scmp.eq.s32.totalorder %s19, 0
    %p268 = por %p266, %p267
    %p269 = scmp.ne.s32.totalorder %s258, %s261
    %p270 = scmp.eq.s32.totalorder %s24, 1
    %p271 = por %p269, %p270
    %p272 = scmp.ne.s32.totalorder %s261, %s262
    %p273 = scmp.eq.s32.totalorder %s24, 0
    %p274 = por %p272, %p273
    %p275 = scmp.ne.s32.totalorder %s261, %s262
    %p276 = scmp.eq.s32.totalorder %s25, 1
    %p277 = por %p275, %p276
    %p279 = scmp.ne.s32.totalorder %s262, %s278
    %p280 = scmp.eq.s32.totalorder %s25, 0
    %p281 = por %p279, %p280
    %s282 = ssub.s32 %s19, %s26
    %p283 = scmp.eq.s32.totalorder %s282, 0
    %s285 = sadd.s32 %s284, 1
    %s286 = scalar_select %p283, %s284, %s285
    %p289 = pneg %p283
    %p290 = scmp.eq.s32.totalorder %s19, 1
    %p291 = por %p289, %p290
    %p292 = scmp.ne.s32.totalorder %s284, %s287
    %p293 = scmp.eq.s32.totalorder %s19, 0
    %p294 = por %p292, %p293
    %p295 = scmp.ne.s32.totalorder %s284, %s287
    %p296 = scmp.eq.s32.totalorder %s24, 1
    %p297 = por %p295, %p296
    %p298 = scmp.ne.s32.totalorder %s287, %s288
    %p299 = scmp.eq.s32.totalorder %s24, 0
    %p300 = por %p298, %p299
    %p301 = scmp.ne.s32.totalorder %s287, %s288
    %p302 = scmp.eq.s32.totalorder %s25, 1
    %p303 = por %p301, %p302
    %p305 = scmp.ne.s32.totalorder %s288, %s304
    %p306 = scmp.eq.s32.totalorder %s25, 0
    %p307 = por %p305, %p306
    %s308 = ssub.s32 %s19, %s26
    %p309 = scmp.eq.s32.totalorder %s308, 0
    %s311 = sadd.s32 %s310, 1
    %s312 = scalar_select %p309, %s310, %s311
    %p315 = pneg %p309
    %p316 = scmp.eq.s32.totalorder %s19, 1
    %p317 = por %p315, %p316
    %p318 = scmp.ne.s32.totalorder %s310, %s313
    %p319 = scmp.eq.s32.totalorder %s19, 0
    %p320 = por %p318, %p319
    %p321 = scmp.ne.s32.totalorder %s310, %s313
    %p322 = scmp.eq.s32.totalorder %s24, 1
    %p323 = por %p321, %p322
    %p324 = scmp.ne.s32.totalorder %s313, %s314
    %p325 = scmp.eq.s32.totalorder %s24, 0
    %p326 = por %p324, %p325
    %p327 = scmp.ne.s32.totalorder %s313, %s314
    %p328 = scmp.eq.s32.totalorder %s25, 1
    %p329 = por %p327, %p328
    %p331 = scmp.ne.s32.totalorder %s314, %s330
    %p332 = scmp.eq.s32.totalorder %s25, 0
    %p333 = por %p331, %p332
    %s334 = ssub.s32 %s19, %s26
    %p335 = scmp.eq.s32.totalorder %s334, 0
    %s337 = sadd.s32 %s336, 1
    %s338 = scalar_select %p335, %s336, %s337
    %p341 = pneg %p335
    %p342 = scmp.eq.s32.totalorder %s19, 1
    %p343 = por %p341, %p342
    %p344 = scmp.ne.s32.totalorder %s336, %s339
    %p345 = scmp.eq.s32.totalorder %s19, 0
    %p346 = por %p344, %p345
    %p347 = scmp.ne.s32.totalorder %s336, %s339
    %p348 = scmp.eq.s32.totalorder %s24, 1
    %p349 = por %p347, %p348
    %p350 = scmp.ne.s32.totalorder %s339, %s340
    %p351 = scmp.eq.s32.totalorder %s24, 0
    %p352 = por %p350, %p351
    %p353 = scmp.ne.s32.totalorder %s339, %s340
    %p354 = scmp.eq.s32.totalorder %s25, 1
    %p355 = por %p353, %p354
    %p357 = scmp.ne.s32.totalorder %s340, %s356
    %p358 = scmp.eq.s32.totalorder %s25, 0
    %p359 = por %p357, %p358
    %s361 = sadd.s32 %s360, 1
    %p364 = scmp.eq.s32.totalorder %s19, 1
    %p365 = scmp.ne.s32.totalorder %s360, %s362
    %p366 = scmp.eq.s32.totalorder %s19, 0
    %p367 = por %p365, %p366
    %p368 = scmp.ne.s32.totalorder %s360, %s362
    %p369 = scmp.eq.s32.totalorder %s24, 1
    %p370 = por %p368, %p369
    %p371 = scmp.ne.s32.totalorder %s362, %s363
    %p372 = scmp.eq.s32.totalorder %s24, 0
    %p373 = por %p371, %p372
    %p374 = scmp.ne.s32.totalorder %s362, %s363
    %p375 = scmp.eq.s32.totalorder %s25, 1
    %p376 = por %p374, %p375
    %p378 = scmp.ne.s32.totalorder %s363, %s377
    %p379 = scmp.eq.s32.totalorder %s25, 0
    %p380 = por %p378, %p379
    %p381 = scmp.le.s32.totalorder 1, %s19
    %p382 = scmp.lt.s32.totalorder %s19, 3
    %p383 = pnand %p381, %p382
    %p384 = pneg %p383
    // Predicated region
    $region9: #{_lambda_.1} parent=5 // pred_check
      _
    $region10: #{_lambda_.1} parent=5 // pred_check_branch
      %386 = sbr.rel (%p383) target = $region12
    $region11: #{_lambda_.1} parent=5 // pred_region
      %s387 = ssub.s32 %s19, 1
      // Predicated region
      $region13: #{_lambda_.1} parent=11 // pred_check
        %p388 = pneg %p40
      $region14: #{_lambda_.1} parent=11 // pred_check_branch
        %390 = sbr.rel (%p388) target = $region16
      $region15: #{_lambda_.1} parent=11 // pred_region
        _
      $region16: #{_lambda_.1} parent=11 // pred_fallthru
        _
    $region12: #{_lambda_.1} parent=5 // pred_fallthru
      _
    %p391 = scmp.lt.s32.totalorder %s19, 2
    // Predicated region
    $region17: #{_lambda_.1} parent=5 // pred_check
      %p392 = pneg %p391
    $region18: #{_lambda_.1} parent=5 // pred_check_branch
      %394 = sbr.rel (%p392) target = $region20
    $region19: #{_lambda_.1} parent=5 // pred_region
      // Predicated region
      $region21: #{_lambda_.1} parent=19 // pred_check
        %p395 = pneg %p60
      $region22: #{_lambda_.1} parent=19 // pred_check_branch
        %397 = sbr.rel (%p395) target = $region24
      $region23: #{_lambda_.1} parent=19 // pred_region
        %p398 = scmp.lt.s32.totalorder %s19, 1
        %s399 = scalar_select %p398, %s19, 1
        %s400 = scalar_lea.vmem %s1, %s399
      $region24: #{_lambda_.1} parent=19 // pred_fallthru
        _
      // Predicated region
      $region25: #{_lambda_.1} parent=19 // pred_check
        %p401 = pneg %p86
      $region26: #{_lambda_.1} parent=19 // pred_check_branch
        %403 = sbr.rel (%p401) target = $region28
      $region27: #{_lambda_.1} parent=19 // pred_region
        %p404 = scmp.lt.s32.totalorder %s19, 1
        %s405 = scalar_select %p404, %s19, 1
        %s406 = scalar_lea.vmem %s2, %s405
      $region28: #{_lambda_.1} parent=19 // pred_fallthru
        _
      // Predicated region
      $region29: #{_lambda_.1} parent=19 // pred_check
        %p407 = pneg %p112
      $region30: #{_lambda_.1} parent=19 // pred_check_branch
        %409 = sbr.rel (%p407) target = $region32
      $region31: #{_lambda_.1} parent=19 // pred_region
        %p410 = scmp.lt.s32.totalorder %s19, 1
        %s411 = scalar_select %p410, %s19, 1
        %s412 = smul.addr %s411, 4
        %s413 = smul.addr %s412, 8
        %s414 = scalar_lea.vmem %s3, %s413
      $region32: #{_lambda_.1} parent=19 // pred_fallthru
        _
      // Predicated region
      $region33: #{_lambda_.1} parent=19 // pred_check
        %p415 = pneg %p138
      $region34: #{_lambda_.1} parent=19 // pred_check_branch
        %417 = sbr.rel (%p415) target = $region36
      $region35: #{_lambda_.1} parent=19 // pred_region
        %p418 = scmp.lt.s32.totalorder %s19, 1
        %s419 = scalar_select %p418, %s19, 1
        %s420 = scalar_lea.vmem %s4, %s419
      $region36: #{_lambda_.1} parent=19 // pred_fallthru
        _
      // Predicated region
      $region37: #{_lambda_.1} parent=19 // pred_check
        %p421 = pneg %p164
      $region38: #{_lambda_.1} parent=19 // pred_check_branch
        %423 = sbr.rel (%p421) target = $region40
      $region39: #{_lambda_.1} parent=19 // pred_region
        %p424 = scmp.lt.s32.totalorder %s19, 1
        %s425 = scalar_select %p424, %s19, 1
        %s426 = smul.addr %s425, 4
        %s427 = smul.addr %s426, 8
        %s428 = scalar_lea.vmem %s5, %s427
      $region40: #{_lambda_.1} parent=19 // pred_fallthru
        _
      // Predicated region
      $region41: #{_lambda_.1} parent=19 // pred_check
        %p429 = pneg %p190
      $region42: #{_lambda_.1} parent=19 // pred_check_branch
        %431 = sbr.rel (%p429) target = $region44
      $region43: #{_lambda_.1} parent=19 // pred_region
        %p432 = scmp.lt.s32.totalorder %s19, 1
        %s433 = scalar_select %p432, %s19, 1
        %s434 = scalar_lea.vmem %s6, %s433
      $region44: #{_lambda_.1} parent=19 // pred_fallthru
        _
      // Predicated region
      $region45: #{_lambda_.1} parent=19 // pred_check
        %p435 = pneg %p216
      $region46: #{_lambda_.1} parent=19 // pred_check_branch
        %437 = sbr.rel (%p435) target = $region48
      $region47: #{_lambda_.1} parent=19 // pred_region
        %p438 = scmp.lt.s32.totalorder %s19, 1
        %s439 = scalar_select %p438, %s19, 1
        %s440 = scalar_lea.vmem %s7, %s439
      $region48: #{_lambda_.1} parent=19 // pred_fallthru
        _
      // Predicated region
      $region49: #{_lambda_.1} parent=19 // pred_check
        %p441 = pneg %p242
      $region50: #{_lambda_.1} parent=19 // pred_check_branch
        %443 = sbr.rel (%p441) target = $region52
      $region51: #{_lambda_.1} parent=19 // pred_region
        %p444 = scmp.lt.s32.totalorder %s19, 1
        %s445 = scalar_select %p444, %s19, 1
        %s446 = scalar_lea.vmem %s8, %s445
      $region52: #{_lambda_.1} parent=19 // pred_fallthru
        _
      // Predicated region
      $region53: #{_lambda_.1} parent=19 // pred_check
        %p447 = pneg %p268
      $region54: #{_lambda_.1} parent=19 // pred_check_branch
        %449 = sbr.rel (%p447) target = $region56
      $region55: #{_lambda_.1} parent=19 // pred_region
        %p450 = scmp.lt.s32.totalorder %s19, 1
        %s451 = scalar_select %p450, %s19, 1
        %s452 = smul.addr %s451, 4
        %s453 = smul.addr %s452, 8
        %s454 = scalar_lea.vmem %s9, %s453
      $region56: #{_lambda_.1} parent=19 // pred_fallthru
        _
      // Predicated region
      $region57: #{_lambda_.1} parent=19 // pred_check
        %p455 = pneg %p294
      $region58: #{_lambda_.1} parent=19 // pred_check_branch
        %457 = sbr.rel (%p455) target = $region60
      $region59: #{_lambda_.1} parent=19 // pred_region
        %p458 = scmp.lt.s32.totalorder %s19, 1
        %s459 = scalar_select %p458, %s19, 1
        %s460 = scalar_lea.vmem %s10, %s459
      $region60: #{_lambda_.1} parent=19 // pred_fallthru
        _
      // Predicated region
      $region61: #{_lambda_.1} parent=19 // pred_check
        %p461 = pneg %p320
      $region62: #{_lambda_.1} parent=19 // pred_check_branch
        %463 = sbr.rel (%p461) target = $region64
      $region63: #{_lambda_.1} parent=19 // pred_region
        %p464 = scmp.lt.s32.totalorder %s19, 1
        %s465 = scalar_select %p464, %s19, 1
        %s466 = smul.addr %s465, 16
        %s467 = smul.addr %s466, 8
        %s468 = scalar_lea.vmem %s11, %s467
      $region64: #{_lambda_.1} parent=19 // pred_fallthru
        _
      // Predicated region
      $region65: #{_lambda_.1} parent=19 // pred_check
        %p469 = pneg %p346
      $region66: #{_lambda_.1} parent=19 // pred_check_branch
        %471 = sbr.rel (%p469) target = $region68
      $region67: #{_lambda_.1} parent=19 // pred_region
        %p472 = scmp.lt.s32.totalorder %s19, 1
        %s473 = scalar_select %p472, %s19, 1
        %s474 = scalar_lea.vmem %s12, %s473
      $region68: #{_lambda_.1} parent=19 // pred_fallthru
        _
    $region20: #{_lambda_.1} parent=5 // pred_fallthru
      _
    %p475 = scmp.le.s32.totalorder 1, %s19
    %p476 = scmp.lt.s32.totalorder %s19, 3
    %p477 = pnand %p475, %p476
    %p478 = pneg %p477
    // Predicated region
    $region69: #{_lambda_.1} parent=5 // pred_check
      _
    $region70: #{_lambda_.1} parent=5 // pred_check_branch
      %480 = sbr.rel (%p477) target = $region72
    $region71: #{_lambda_.1} parent=5 // pred_region
      %s481 = ssub.s32 %s19, 1
      %p482 = pneg %p40
      %p483 = pneg %p37
      %p484 = scmp.lt.s32.totalorder %s24, 1
      %s485 = scalar_select %p484, %s24, 1
      %s486 = scalar_lea.vmem %s1, %s485
      %p487 = pneg %p66
      %p488 = pneg %p63
      %p489 = scmp.lt.s32.totalorder %s24, 1
      %s490 = scalar_select %p489, %s24, 1
      %s491 = scalar_lea.vmem %s2, %s490
      %p492 = pneg %p92
      %p493 = pneg %p89
      %p494 = scmp.lt.s32.totalorder %s24, 1
      %s495 = scalar_select %p494, %s24, 1
      %s496 = smul.addr %s495, 4
      %s497 = smul.addr %s496, 8
      %s498 = scalar_lea.vmem %s3, %s497
      %p499 = pneg %p118
      %p500 = pneg %p115
      %p501 = scmp.lt.s32.totalorder %s24, 1
      %s502 = scalar_select %p501, %s24, 1
      %s503 = scalar_lea.vmem %s4, %s502
      %p504 = pneg %p144
      %p505 = pneg %p141
      %p506 = scmp.lt.s32.totalorder %s24, 1
      %s507 = scalar_select %p506, %s24, 1
      %s508 = smul.addr %s507, 4
      %s509 = smul.addr %s508, 8
      %s510 = scalar_lea.vmem %s5, %s509
      %p511 = pneg %p170
      %p512 = pneg %p167
      %p513 = scmp.lt.s32.totalorder %s24, 1
      %s514 = scalar_select %p513, %s24, 1
      %s515 = scalar_lea.vmem %s6, %s514
      %p516 = pneg %p196
      %p517 = pneg %p193
      %p518 = scmp.lt.s32.totalorder %s24, 1
      %s519 = scalar_select %p518, %s24, 1
      %s520 = scalar_lea.vmem %s7, %s519
      %p521 = pneg %p222
      %p522 = pneg %p219
      %p523 = scmp.lt.s32.totalorder %s24, 1
      %s524 = scalar_select %p523, %s24, 1
      %s525 = scalar_lea.vmem %s8, %s524
      %p526 = pneg %p248
      %p527 = pneg %p245
      %p528 = scmp.lt.s32.totalorder %s24, 1
      %s529 = scalar_select %p528, %s24, 1
      %s530 = smul.addr %s529, 4
      %s531 = smul.addr %s530, 8
      %s532 = scalar_lea.vmem %s9, %s531
      %p533 = pneg %p274
      %p534 = pneg %p271
      %p535 = scmp.lt.s32.totalorder %s24, 1
      %s536 = scalar_select %p535, %s24, 1
      %s537 = scalar_lea.vmem %s10, %s536
      %p538 = pneg %p300
      %p539 = pneg %p297
      %p540 = scmp.lt.s32.totalorder %s24, 1
      %s541 = scalar_select %p540, %s24, 1
      %s542 = smul.addr %s541, 16
      %s543 = smul.addr %s542, 8
      %s544 = scalar_lea.vmem %s11, %s543
      %p545 = pneg %p326
      %p546 = pneg %p323
      %p547 = scmp.lt.s32.totalorder %s24, 1
      %s548 = scalar_select %p547, %s24, 1
      %s549 = scalar_lea.vmem %s12, %s548
      %p550 = pneg %p352
      %p551 = pneg %p349
      %p552 = pneg %p373
      %p553 = pneg %p370
      %p554 = scmp.lt.s32.totalorder %s24, 1
      %s555 = scalar_select %p554, %s24, 1
      %s556 = scalar_lea.vmem %s1, %s555
      %p557 = scmp.lt.s32.totalorder %s24, 1
      %s558 = scalar_select %p557, %s24, 1
      %s559 = scalar_lea.vmem %s2, %s558
      %p560 = scmp.lt.s32.totalorder %s24, 1
      %s561 = scalar_select %p560, %s24, 1
      %s562 = smul.addr %s561, 4
      %s563 = smul.addr %s562, 8
      %s564 = scalar_lea.vmem %s3, %s563
      %p565 = scmp.lt.s32.totalorder %s24, 1
      %s566 = scalar_select %p565, %s24, 1
      %s567 = scalar_lea.vmem %s4, %s566
      %p568 = scmp.lt.s32.totalorder %s24, 1
      %s569 = scalar_select %p568, %s24, 1
      %s570 = smul.addr %s569, 4
      %s571 = smul.addr %s570, 8
      %s572 = scalar_lea.vmem %s5, %s571
      %p573 = scmp.lt.s32.totalorder %s24, 1
      %s574 = scalar_select %p573, %s24, 1
      %s575 = scalar_lea.vmem %s6, %s574
      %p576 = scmp.lt.s32.totalorder %s24, 1
      %s577 = scalar_select %p576, %s24, 1
      %s578 = scalar_lea.vmem %s7, %s577
      %p579 = scmp.lt.s32.totalorder %s24, 1
      %s580 = scalar_select %p579, %s24, 1
      %s581 = scalar_lea.vmem %s8, %s580
      %p582 = scmp.lt.s32.totalorder %s24, 1
      %s583 = scalar_select %p582, %s24, 1
      %s584 = smul.addr %s583, 4
      %s585 = smul.addr %s584, 8
      %s586 = scalar_lea.vmem %s9, %s585
      %p587 = scmp.lt.s32.totalorder %s24, 1
      %s588 = scalar_select %p587, %s24, 1
      %s589 = scalar_lea.vmem %s10, %s588
      %p590 = scmp.lt.s32.totalorder %s24, 1
      %s591 = scalar_select %p590, %s24, 1
      %s592 = smul.addr %s591, 16
      %s593 = smul.addr %s592, 8
      %s594 = scalar_lea.vmem %s11, %s593
      %p595 = scmp.lt.s32.totalorder %s24, 1
      %s596 = scalar_select %p595, %s24, 1
      %s597 = scalar_lea.vmem %s12, %s596
      %p598 = scmp.eq.s32.totalorder %s24, 0
      // Predicated region
      $region73: #{_lambda_.1} parent=71 // pred_check
        %p599 = pneg %p598
      $region74: #{_lambda_.1} parent=71 // pred_check_branch
        %601 = sbr.rel (%p599) target = $region76
      $region75: #{_lambda_.1} parent=71 // pred_region
        %v602 = vld [vmem:[%s0] sm:$0xff]
        %v603 = vld [vmem:[%s0 + $0x8] sm:$0xff]
        %v604 = vld [vmem:[%s0 + $0x10] sm:$0xff]
        %v605 = vld [vmem:[%s0 + $0x18] sm:$0xff]
        %606 = vxpose.xlu0.b32.start [1/16] %v602, 128
        %607 = vxpose.xlu0.b32.cont [2/16] %v603, 128
        %608 = vxpose.xlu0.b32.cont [3/16] %v604, 128
        %609 = vxpose.xlu0.b32.cont [4/16] %v605, 128
        %610 = vxpose.xlu0.b32.cont [5/16] 0.0, 128
        %611 = vxpose.xlu0.b32.cont [6/16] 0.0, 128
        %612 = vxpose.xlu0.b32.cont [7/16] 0.0, 128
        %613 = vxpose.xlu0.b32.cont [8/16] 0.0, 128
        %614 = vxpose.xlu0.b32.cont [9/16] 0.0, 128
        %615 = vxpose.xlu0.b32.cont [10/16] 0.0, 128
        %616 = vxpose.xlu0.b32.cont [11/16] 0.0, 128
        %617 = vxpose.xlu0.b32.cont [12/16] 0.0, 128
        %618 = vxpose.xlu0.b32.cont [13/16] 0.0, 128
        %619 = vxpose.xlu0.b32.cont [14/16] 0.0, 128
        %620 = vxpose.xlu0.b32.cont [15/16] 0.0, 128
        %621 = vxpose.xlu0.b32.end [16/16] 0.0, 128
        %v622 = vpop.trf.xlu0
        %v623 = vpop.trf.xlu0
        %v624 = vpop.trf.xlu0
        %v625 = vpop.trf.xlu0
        %v626 = vpop.trf.xlu0
        %v627 = vpop.trf.xlu0
        %v628 = vpop.trf.xlu0
        %v629 = vpop.trf.xlu0
        %v630 = vpop.trf.xlu0
        %v631 = vpop.trf.xlu0
        %v632 = vpop.trf.xlu0
        %v633 = vpop.trf.xlu0
        %v634 = vpop.trf.xlu0
        %v635 = vpop.trf.xlu0
        %v636 = vpop.trf.xlu0
        %v637 = vpop.trf.xlu0
        %vm638 = vcmask 261120
        %639 = vst.msk [vmem:[#allocation2] sm:$0xff] %vm638, %v622
        %640 = vst.msk [vmem:[#allocation2 + $0x8] sm:$0xff] %vm638, %v623
        %641 = vst.msk [vmem:[#allocation2 + $0x10] sm:$0xff] %vm638, %v624
        %642 = vst.msk [vmem:[#allocation2 + $0x18] sm:$0xff] %vm638, %v625
        %643 = vst.msk [vmem:[#allocation2 + $0x20] sm:$0xff] %vm638, %v626
        %644 = vst.msk [vmem:[#allocation2 + $0x28] sm:$0xff] %vm638, %v627
        %645 = vst.msk [vmem:[#allocation2 + $0x30] sm:$0xff] %vm638, %v628
        %646 = vst.msk [vmem:[#allocation2 + $0x38] sm:$0xff] %vm638, %v629
        %s647 = scalar_lea.vmem %s0, 32
        %v648 = vld [vmem:[%s647] sm:$0xff]
        %v649 = vld [vmem:[%s647 + $0x8] sm:$0xff]
        %v650 = vld [vmem:[%s647 + $0x10] sm:$0xff]
        %v651 = vld [vmem:[%s647 + $0x18] sm:$0xff]
        %652 = vxpose.xlu0.b32.start [1/16] %v648, 128
        %653 = vxpose.xlu0.b32.cont [2/16] %v649, 128
        %654 = vxpose.xlu0.b32.cont [3/16] %v650, 128
        %655 = vxpose.xlu0.b32.cont [4/16] %v651, 128
        %656 = vxpose.xlu0.b32.cont [5/16] 0.0, 128
        %657 = vxpose.xlu0.b32.cont [6/16] 0.0, 128
        %658 = vxpose.xlu0.b32.cont [7/16] 0.0, 128
        %659 = vxpose.xlu0.b32.cont [8/16] 0.0, 128
        %660 = vxpose.xlu0.b32.cont [9/16] 0.0, 128
        %661 = vxpose.xlu0.b32.cont [10/16] 0.0, 128
        %662 = vxpose.xlu0.b32.cont [11/16] 0.0, 128
        %663 = vxpose.xlu0.b32.cont [12/16] 0.0, 128
        %664 = vxpose.xlu0.b32.cont [13/16] 0.0, 128
        %665 = vxpose.xlu0.b32.cont [14/16] 0.0, 128
        %666 = vxpose.xlu0.b32.cont [15/16] 0.0, 128
        %667 = vxpose.xlu0.b32.end [16/16] 0.0, 128
        %v668 = vpop.trf.xlu0
        %v669 = vpop.trf.xlu0
        %v670 = vpop.trf.xlu0
        %v671 = vpop.trf.xlu0
        %v672 = vpop.trf.xlu0
        %v673 = vpop.trf.xlu0
        %v674 = vpop.trf.xlu0
        %v675 = vpop.trf.xlu0
        %v676 = vpop.trf.xlu0
        %v677 = vpop.trf.xlu0
        %v678 = vpop.trf.xlu0
        %v679 = vpop.trf.xlu0
        %v680 = vpop.trf.xlu0
        %v681 = vpop.trf.xlu0
        %v682 = vpop.trf.xlu0
        %v683 = vpop.trf.xlu0
        %684 = vst.msk [vmem:[#allocation2 + $0x40] sm:$0xff] %vm638, %v668
        %685 = vst.msk [vmem:[#allocation2 + $0x48] sm:$0xff] %vm638, %v669
        %686 = vst.msk [vmem:[#allocation2 + $0x50] sm:$0xff] %vm638, %v670
        %687 = vst.msk [vmem:[#allocation2 + $0x58] sm:$0xff] %vm638, %v671
        %688 = vst.msk [vmem:[#allocation2 + $0x60] sm:$0xff] %vm638, %v672
        %689 = vst.msk [vmem:[#allocation2 + $0x68] sm:$0xff] %vm638, %v673
        %690 = vst.msk [vmem:[#allocation2 + $0x70] sm:$0xff] %vm638, %v674
        %691 = vst.msk [vmem:[#allocation2 + $0x78] sm:$0xff] %vm638, %v675
      $region76: #{_lambda_.1} parent=71 // pred_fallthru
        _
      %v692 = vld [vmem:[#allocation2] sm:$0xff]
      %v693 = vld [vmem:[#allocation2 + $0x8] sm:$0xff]
      %v694 = vld [vmem:[#allocation2 + $0x10] sm:$0xff]
      %v695 = vld [vmem:[#allocation2 + $0x18] sm:$0xff]
      %v696 = vld [vmem:[#allocation2 + $0x20] sm:$0xff]
      %v697 = vld [vmem:[#allocation2 + $0x28] sm:$0xff]
      %v698 = vld [vmem:[#allocation2 + $0x30] sm:$0xff]
      %v699 = vld [vmem:[#allocation2 + $0x38] sm:$0xff]
      %v700 = vld [vmem:[#allocation2 + $0x40] sm:$0xff]
      %v701 = vld [vmem:[#allocation2 + $0x48] sm:$0xff]
      %v702 = vld [vmem:[#allocation2 + $0x50] sm:$0xff]
      %v703 = vld [vmem:[#allocation2 + $0x58] sm:$0xff]
      %v704 = vld [vmem:[#allocation2 + $0x60] sm:$0xff]
      %v705 = vld [vmem:[#allocation2 + $0x68] sm:$0xff]
      %v706 = vld [vmem:[#allocation2 + $0x70] sm:$0xff]
      %v707 = vld [vmem:[#allocation2 + $0x78] sm:$0xff]
      %v708 = vld [vmem:[%s556] sm:$0x1]
      %v709 = vld [vmem:[%s559] sm:$0x1]
      %vm710 = vcmask 261120
      %v711 = vsel %vm710, %v692, 0.0
      %712 = vadd.xlane.f32.xlu0 %v711
      %v713 = vpop.xlane.xlu0 %712
      %v714 = vsel %vm710, %v693, 0.0
      %715 = vadd.xlane.f32.xlu0 %v714
      %v716 = vpop.xlane.xlu0 %715
      %v717 = vsel %vm710, %v694, 0.0
      %718 = vadd.xlane.f32.xlu0 %v717
      %v719 = vpop.xlane.xlu0 %718
      %v720 = vsel %vm710, %v695, 0.0
      %721 = vadd.xlane.f32.xlu0 %v720
      %v722 = vpop.xlane.xlu0 %721
      %v723 = vsel %vm710, %v696, 0.0
      %724 = vadd.xlane.f32.xlu0 %v723
      %v725 = vpop.xlane.xlu0 %724
      %v726 = vsel %vm710, %v697, 0.0
      %727 = vadd.xlane.f32.xlu0 %v726
      %v728 = vpop.xlane.xlu0 %727
      %v729 = vsel %vm710, %v698, 0.0
      %730 = vadd.xlane.f32.xlu0 %v729
      %v731 = vpop.xlane.xlu0 %730
      %v732 = vsel %vm710, %v699, 0.0
      %733 = vadd.xlane.f32.xlu0 %v732
      %v734 = vpop.xlane.xlu0 %733
      %v735 = vsel %vm710, %v700, 0.0
      %736 = vadd.xlane.f32.xlu0 %v735
      %v737 = vpop.xlane.xlu0 %736
      %v738 = vsel %vm710, %v701, 0.0
      %739 = vadd.xlane.f32.xlu0 %v738
      %v740 = vpop.xlane.xlu0 %739
      %v741 = vsel %vm710, %v702, 0.0
      %742 = vadd.xlane.f32.xlu0 %v741
      %v743 = vpop.xlane.xlu0 %742
      %v744 = vsel %vm710, %v703, 0.0
      %745 = vadd.xlane.f32.xlu0 %v744
      %v746 = vpop.xlane.xlu0 %745
      %v747 = vsel %vm710, %v704, 0.0
      %748 = vadd.xlane.f32.xlu0 %v747
      %v749 = vpop.xlane.xlu0 %748
      %v750 = vsel %vm710, %v705, 0.0
      %751 = vadd.xlane.f32.xlu0 %v750
      %v752 = vpop.xlane.xlu0 %751
      %v753 = vsel %vm710, %v706, 0.0
      %754 = vadd.xlane.f32.xlu0 %v753
      %v755 = vpop.xlane.xlu0 %754
      %v756 = vsel %vm710, %v707, 0.0
      %757 = vadd.xlane.f32.xlu0 %v756
      %v758 = vpop.xlane.xlu0 %757
      %v759 = vrcp.pop 32.0
      %v760 = vmul.f32 32.0, %v759
      %v761 = vsub.f32 1.0, %v760
      %v762 = vmul.f32 %v759, %v761
      %v763 = vadd.f32 %v759, %v762
      %vm764 = vweird.f32 %v759
      %v765 = vsel %vm764, %v759, %v763
      %v766 = vmul.f32 %v713, %v765
      %v767 = vmul.f32 %v716, %v765
      %v768 = vmul.f32 %v719, %v765
      %v769 = vmul.f32 %v722, %v765
      %v770 = vmul.f32 %v725, %v765
      %v771 = vmul.f32 %v728, %v765
      %v772 = vmul.f32 %v731, %v765
      %v773 = vmul.f32 %v734, %v765
      %v774 = vmul.f32 %v737, %v765
      %v775 = vmul.f32 %v740, %v765
      %v776 = vmul.f32 %v743, %v765
      %v777 = vmul.f32 %v746, %v765
      %v778 = vmul.f32 %v749, %v765
      %v779 = vmul.f32 %v752, %v765
      %v780 = vmul.f32 %v755, %v765
      %v781 = vmul.f32 %v758, %v765
      %v782 = vsub.f32 %v692, %v766
      %v783 = vsub.f32 %v693, %v767
      %v784 = vsub.f32 %v694, %v768
      %v785 = vsub.f32 %v695, %v769
      %v786 = vsub.f32 %v696, %v770
      %v787 = vsub.f32 %v697, %v771
      %v788 = vsub.f32 %v698, %v772
      %v789 = vsub.f32 %v699, %v773
      %v790 = vsub.f32 %v700, %v774
      %v791 = vsub.f32 %v701, %v775
      %v792 = vsub.f32 %v702, %v776
      %v793 = vsub.f32 %v703, %v777
      %v794 = vsub.f32 %v704, %v778
      %v795 = vsub.f32 %v705, %v779
      %v796 = vsub.f32 %v706, %v780
      %v797 = vsub.f32 %v707, %v781
      %v798 = vmul.f32 %v782, %v782
      %v799 = vmul.f32 %v783, %v783
      %v800 = vmul.f32 %v784, %v784
      %v801 = vmul.f32 %v785, %v785
      %v802 = vmul.f32 %v786, %v786
      %v803 = vmul.f32 %v787, %v787
      %v804 = vmul.f32 %v788, %v788
      %v805 = vmul.f32 %v789, %v789
      %v806 = vmul.f32 %v790, %v790
      %v807 = vmul.f32 %v791, %v791
      %v808 = vmul.f32 %v792, %v792
      %v809 = vmul.f32 %v793, %v793
      %v810 = vmul.f32 %v794, %v794
      %v811 = vmul.f32 %v795, %v795
      %v812 = vmul.f32 %v796, %v796
      %v813 = vmul.f32 %v797, %v797
      %v814 = vsel %vm710, %v798, 0.0
      %815 = vadd.xlane.f32.xlu0 %v814
      %v816 = vpop.xlane.xlu0 %815
      %v817 = vsel %vm710, %v799, 0.0
      %818 = vadd.xlane.f32.xlu0 %v817
      %v819 = vpop.xlane.xlu0 %818
      %v820 = vsel %vm710, %v800, 0.0
      %821 = vadd.xlane.f32.xlu0 %v820
      %v822 = vpop.xlane.xlu0 %821
      %v823 = vsel %vm710, %v801, 0.0
      %824 = vadd.xlane.f32.xlu0 %v823
      %v825 = vpop.xlane.xlu0 %824
      %v826 = vsel %vm710, %v802, 0.0
      %827 = vadd.xlane.f32.xlu0 %v826
      %v828 = vpop.xlane.xlu0 %827
      %v829 = vsel %vm710, %v803, 0.0
      %830 = vadd.xlane.f32.xlu0 %v829
      %v831 = vpop.xlane.xlu0 %830
      %v832 = vsel %vm710, %v804, 0.0
      %833 = vadd.xlane.f32.xlu0 %v832
      %v834 = vpop.xlane.xlu0 %833
      %v835 = vsel %vm710, %v805, 0.0
      %836 = vadd.xlane.f32.xlu0 %v835
      %v837 = vpop.xlane.xlu0 %836
      %v838 = vsel %vm710, %v806, 0.0
      %839 = vadd.xlane.f32.xlu0 %v838
      %v840 = vpop.xlane.xlu0 %839
      %v841 = vsel %vm710, %v807, 0.0
      %842 = vadd.xlane.f32.xlu0 %v841
      %v843 = vpop.xlane.xlu0 %842
      %v844 = vsel %vm710, %v808, 0.0
      %845 = vadd.xlane.f32.xlu0 %v844
      %v846 = vpop.xlane.xlu0 %845
      %v847 = vsel %vm710, %v809, 0.0
      %848 = vadd.xlane.f32.xlu0 %v847
      %v849 = vpop.xlane.xlu0 %848
      %v850 = vsel %vm710, %v810, 0.0
      %851 = vadd.xlane.f32.xlu0 %v850
      %v852 = vpop.xlane.xlu0 %851
      %v853 = vsel %vm710, %v811, 0.0
      %854 = vadd.xlane.f32.xlu0 %v853
      %v855 = vpop.xlane.xlu0 %854
      %v856 = vsel %vm710, %v812, 0.0
      %857 = vadd.xlane.f32.xlu0 %v856
      %v858 = vpop.xlane.xlu0 %857
      %v859 = vsel %vm710, %v813, 0.0
      %860 = vadd.xlane.f32.xlu0 %v859
      %v861 = vpop.xlane.xlu0 %860
      %v862 = vmul.f32 %v816, %v765
      %v863 = vmul.f32 %v819, %v765
      %v864 = vmul.f32 %v822, %v765
      %v865 = vmul.f32 %v825, %v765
      %v866 = vmul.f32 %v828, %v765
      %v867 = vmul.f32 %v831, %v765
      %v868 = vmul.f32 %v834, %v765
      %v869 = vmul.f32 %v837, %v765
      %v870 = vmul.f32 %v840, %v765
      %v871 = vmul.f32 %v843, %v765
      %v872 = vmul.f32 %v846, %v765
      %v873 = vmul.f32 %v849, %v765
      %v874 = vmul.f32 %v852, %v765
      %v875 = vmul.f32 %v855, %v765
      %v876 = vmul.f32 %v858, %v765
      %v877 = vmul.f32 %v861, %v765
      %v878 = vadd.f32 %v862, 1e-05
      %v879 = vadd.f32 %v863, 1e-05
      %v880 = vadd.f32 %v864, 1e-05
      %v881 = vadd.f32 %v865, 1e-05
      %v882 = vadd.f32 %v866, 1e-05
      %v883 = vadd.f32 %v867, 1e-05
      %v884 = vadd.f32 %v868, 1e-05
      %v885 = vadd.f32 %v869, 1e-05
      %v886 = vadd.f32 %v870, 1e-05
      %v887 = vadd.f32 %v871, 1e-05
      %v888 = vadd.f32 %v872, 1e-05
      %v889 = vadd.f32 %v873, 1e-05
      %v890 = vadd.f32 %v874, 1e-05
      %v891 = vadd.f32 %v875, 1e-05
      %v892 = vadd.f32 %v876, 1e-05
      %v893 = vadd.f32 %v877, 1e-05
      %v894 = vrsqrt.pop %v878
      %v895 = vmul.f32 %v894, %v878
      %v896 = vmul.f32 %v895, %v894
      %v897 = vmul.f32 0.5, %v896
      %v898 = vsub.f32 1.5, %v897
      %v899 = vmul.f32 %v894, %v898
      %vm900 = vweird.f32 %v878
      %vm901 = vweird.f32 %v894
      %vm902 = vmor %vm900, %vm901
      %v903 = vsel %vm902, %v894, %v899
      %v904 = vrsqrt.pop %v879
      %v905 = vmul.f32 %v904, %v879
      %v906 = vmul.f32 %v905, %v904
      %v907 = vmul.f32 0.5, %v906
      %v908 = vsub.f32 1.5, %v907
      %v909 = vmul.f32 %v904, %v908
      %vm910 = vweird.f32 %v879
      %vm911 = vweird.f32 %v904
      %vm912 = vmor %vm910, %vm911
      %v913 = vsel %vm912, %v904, %v909
      %v914 = vrsqrt.pop %v880
      %v915 = vmul.f32 %v914, %v880
      %v916 = vmul.f32 %v915, %v914
      %v917 = vmul.f32 0.5, %v916
      %v918 = vsub.f32 1.5, %v917
      %v919 = vmul.f32 %v914, %v918
      %vm920 = vweird.f32 %v880
      %vm921 = vweird.f32 %v914
      %vm922 = vmor %vm920, %vm921
      %v923 = vsel %vm922, %v914, %v919
      %v924 = vrsqrt.pop %v881
      %v925 = vmul.f32 %v924, %v881
      %v926 = vmul.f32 %v925, %v924
      %v927 = vmul.f32 0.5, %v926
      %v928 = vsub.f32 1.5, %v927
      %v929 = vmul.f32 %v924, %v928
      %vm930 = vweird.f32 %v881
      %vm931 = vweird.f32 %v924
      %vm932 = vmor %vm930, %vm931
      %v933 = vsel %vm932, %v924, %v929
      %v934 = vrsqrt.pop %v882
      %v935 = vmul.f32 %v934, %v882
      %v936 = vmul.f32 %v935, %v934
      %v937 = vmul.f32 0.5, %v936
      %v938 = vsub.f32 1.5, %v937
      %v939 = vmul.f32 %v934, %v938
      %vm940 = vweird.f32 %v882
      %vm941 = vweird.f32 %v934
      %vm942 = vmor %vm940, %vm941
      %v943 = vsel %vm942, %v934, %v939
      %v944 = vrsqrt.pop %v883
      %v945 = vmul.f32 %v944, %v883
      %v946 = vmul.f32 %v945, %v944
      %v947 = vmul.f32 0.5, %v946
      %v948 = vsub.f32 1.5, %v947
      %v949 = vmul.f32 %v944, %v948
      %vm950 = vweird.f32 %v883
      %vm951 = vweird.f32 %v944
      %vm952 = vmor %vm950, %vm951
      %v953 = vsel %vm952, %v944, %v949
      %v954 = vrsqrt.pop %v884
      %v955 = vmul.f32 %v954, %v884
      %v956 = vmul.f32 %v955, %v954
      %v957 = vmul.f32 0.5, %v956
      %v958 = vsub.f32 1.5, %v957
      %v959 = vmul.f32 %v954, %v958
      %vm960 = vweird.f32 %v884
      %vm961 = vweird.f32 %v954
      %vm962 = vmor %vm960, %vm961
      %v963 = vsel %vm962, %v954, %v959
      %v964 = vrsqrt.pop %v885
      %v965 = vmul.f32 %v964, %v885
      %v966 = vmul.f32 %v965, %v964
      %v967 = vmul.f32 0.5, %v966
      %v968 = vsub.f32 1.5, %v967
      %v969 = vmul.f32 %v964, %v968
      %vm970 = vweird.f32 %v885
      %vm971 = vweird.f32 %v964
      %vm972 = vmor %vm970, %vm971
      %v973 = vsel %vm972, %v964, %v969
      %v974 = vrsqrt.pop %v886
      %v975 = vmul.f32 %v974, %v886
      %v976 = vmul.f32 %v975, %v974
      %v977 = vmul.f32 0.5, %v976
      %v978 = vsub.f32 1.5, %v977
      %v979 = vmul.f32 %v974, %v978
      %vm980 = vweird.f32 %v886
      %vm981 = vweird.f32 %v974
      %vm982 = vmor %vm980, %vm981
      %v983 = vsel %vm982, %v974, %v979
      %v984 = vrsqrt.pop %v887
      %v985 = vmul.f32 %v984, %v887
      %v986 = vmul.f32 %v985, %v984
      %v987 = vmul.f32 0.5, %v986
      %v988 = vsub.f32 1.5, %v987
      %v989 = vmul.f32 %v984, %v988
      %vm990 = vweird.f32 %v887
      %vm991 = vweird.f32 %v984
      %vm992 = vmor %vm990, %vm991
      %v993 = vsel %vm992, %v984, %v989
      %v994 = vrsqrt.pop %v888
      %v995 = vmul.f32 %v994, %v888
      %v996 = vmul.f32 %v995, %v994
      %v997 = vmul.f32 0.5, %v996
      %v998 = vsub.f32 1.5, %v997
      %v999 = vmul.f32 %v994, %v998
      %vm1000 = vweird.f32 %v888
      %vm1001 = vweird.f32 %v994
      %vm1002 = vmor %vm1000, %vm1001
      %v1003 = vsel %vm1002, %v994, %v999
      %v1004 = vrsqrt.pop %v889
      %v1005 = vmul.f32 %v1004, %v889
      %v1006 = vmul.f32 %v1005, %v1004
      %v1007 = vmul.f32 0.5, %v1006
      %v1008 = vsub.f32 1.5, %v1007
      %v1009 = vmul.f32 %v1004, %v1008
      %vm1010 = vweird.f32 %v889
      %vm1011 = vweird.f32 %v1004
      %vm1012 = vmor %vm1010, %vm1011
      %v1013 = vsel %vm1012, %v1004, %v1009
      %v1014 = vrsqrt.pop %v890
      %v1015 = vmul.f32 %v1014, %v890
      %v1016 = vmul.f32 %v1015, %v1014
      %v1017 = vmul.f32 0.5, %v1016
      %v1018 = vsub.f32 1.5, %v1017
      %v1019 = vmul.f32 %v1014, %v1018
      %vm1020 = vweird.f32 %v890
      %vm1021 = vweird.f32 %v1014
      %vm1022 = vmor %vm1020, %vm1021
      %v1023 = vsel %vm1022, %v1014, %v1019
      %v1024 = vrsqrt.pop %v891
      %v1025 = vmul.f32 %v1024, %v891
      %v1026 = vmul.f32 %v1025, %v1024
      %v1027 = vmul.f32 0.5, %v1026
      %v1028 = vsub.f32 1.5, %v1027
      %v1029 = vmul.f32 %v1024, %v1028
      %vm1030 = vweird.f32 %v891
      %vm1031 = vweird.f32 %v1024
      %vm1032 = vmor %vm1030, %vm1031
      %v1033 = vsel %vm1032, %v1024, %v1029
      %v1034 = vrsqrt.pop %v892
      %v1035 = vmul.f32 %v1034, %v892
      %v1036 = vmul.f32 %v1035, %v1034
      %v1037 = vmul.f32 0.5, %v1036
      %v1038 = vsub.f32 1.5, %v1037
      %v1039 = vmul.f32 %v1034, %v1038
      %vm1040 = vweird.f32 %v892
      %vm1041 = vweird.f32 %v1034
      %vm1042 = vmor %vm1040, %vm1041
      %v1043 = vsel %vm1042, %v1034, %v1039
      %v1044 = vrsqrt.pop %v893
      %v1045 = vmul.f32 %v1044, %v893
      %v1046 = vmul.f32 %v1045, %v1044
      %v1047 = vmul.f32 0.5, %v1046
      %v1048 = vsub.f32 1.5, %v1047
      %v1049 = vmul.f32 %v1044, %v1048
      %vm1050 = vweird.f32 %v893
      %vm1051 = vweird.f32 %v1044
      %vm1052 = vmor %vm1050, %vm1051
      %v1053 = vsel %vm1052, %v1044, %v1049
      %v1054 = vmul.f32 %v782, %v903
      %v1055 = vmul.f32 %v783, %v913
      %v1056 = vmul.f32 %v784, %v923
      %v1057 = vmul.f32 %v785, %v933
      %v1058 = vmul.f32 %v786, %v943
      %v1059 = vmul.f32 %v787, %v953
      %v1060 = vmul.f32 %v788, %v963
      %v1061 = vmul.f32 %v789, %v973
      %v1062 = vmul.f32 %v790, %v983
      %v1063 = vmul.f32 %v791, %v993
      %v1064 = vmul.f32 %v792, %v1003
      %v1065 = vmul.f32 %v793, %v1013
      %v1066 = vmul.f32 %v794, %v1023
      %v1067 = vmul.f32 %v795, %v1033
      %v1068 = vmul.f32 %v796, %v1043
      %v1069 = vmul.f32 %v797, %v1053
      %v1071 = vperm.slane %v708, 0
      %v1073 = vmul.f32 %v1054, %v1071
      %v1074 = vmul.f32 %v1055, %v1071
      %v1075 = vmul.f32 %v1056, %v1071
      %v1076 = vmul.f32 %v1057, %v1071
      %v1077 = vmul.f32 %v1058, %v1071
      %v1078 = vmul.f32 %v1059, %v1071
      %v1079 = vmul.f32 %v1060, %v1071
      %v1080 = vmul.f32 %v1061, %v1071
      %v1081 = vmul.f32 %v1062, %v1071
      %v1082 = vmul.f32 %v1063, %v1071
      %v1083 = vmul.f32 %v1064, %v1071
      %v1084 = vmul.f32 %v1065, %v1071
      %v1085 = vmul.f32 %v1066, %v1071
      %v1086 = vmul.f32 %v1067, %v1071
      %v1087 = vmul.f32 %v1068, %v1071
      %v1088 = vmul.f32 %v1069, %v1071
      %v1090 = vperm.slane %v709, 0
      %v1092 = vadd.f32 %v1073, %v1090
      %v1093 = vadd.f32 %v1074, %v1090
      %v1094 = vadd.f32 %v1075, %v1090
      %v1095 = vadd.f32 %v1076, %v1090
      %v1096 = vadd.f32 %v1077, %v1090
      %v1097 = vadd.f32 %v1078, %v1090
      %v1098 = vadd.f32 %v1079, %v1090
      %v1099 = vadd.f32 %v1080, %v1090
      %v1100 = vadd.f32 %v1081, %v1090
      %v1101 = vadd.f32 %v1082, %v1090
      %v1102 = vadd.f32 %v1083, %v1090
      %v1103 = vadd.f32 %v1084, %v1090
      %v1104 = vadd.f32 %v1085, %v1090
      %v1105 = vadd.f32 %v1086, %v1090
      %v1106 = vadd.f32 %v1087, %v1090
      %v1107 = vadd.f32 %v1088, %v1090
      %v1108 = vld [vmem:[%s564] sm:$0xff]
      %v1109 = vld [vmem:[%s564 + $0x8] sm:$0xff]
      %v1110 = vld [vmem:[%s564 + $0x10] sm:$0xff]
      %v1111 = vld [vmem:[%s564 + $0x18] sm:$0xff]
      %v1112 = vld [vmem:[%s567] sm:$0x1]
      %v1114 = vperm.slane %v1112, 0
      %v1117 = vsel %vm710, %v1092, 0
      %v1120 = vsel %vm710, %v1093, 0
      %v1123 = vsel %vm710, %v1094, 0
      %v1126 = vsel %vm710, %v1095, 0
      %v1129 = vsel %vm710, %v1096, 0
      %v1132 = vsel %vm710, %v1097, 0
      %v1135 = vsel %vm710, %v1098, 0
      %v1138 = vsel %vm710, %v1099, 0
      %v1141 = vsel %vm710, %v1100, 0
      %v1144 = vsel %vm710, %v1101, 0
      %v1147 = vsel %vm710, %v1102, 0
      %v1150 = vsel %vm710, %v1103, 0
      %v1153 = vsel %vm710, %v1104, 0
      %v1156 = vsel %vm710, %v1105, 0
      %v1159 = vsel %vm710, %v1106, 0
      %v1162 = vsel %vm710, %v1107, 0
      %1164 = vmatpush.msra.mxu0 0.0
      %1165 = vmatpush.msra.mxu0 0.0
      %1166 = vmatpush.msra.mxu0 0.0
      %1167 = vmatpush.msra.mxu0 0.0
      %1168 = vmatpush.msra.mxu0 0.0
      %1169 = vmatpush.msra.mxu0 0.0
      %1170 = vmatpush.msra.mxu0 0.0
      %1171 = vmatpush.msra.mxu0 0.0
      %1172 = vmatpush.msra.mxu0 0.0
      %1173 = vmatpush.msra.mxu0 0.0
      %1174 = vmatpush.msra.mxu0 0.0
      %1175 = vmatpush.msra.mxu0 0.0
      %1176 = vmatpush.msra.mxu0 %v1111
      %1177 = vmatpush.msra.mxu0 %v1110
      %1178 = vmatpush.msra.mxu0 %v1109
      %1179 = vmatpush.msra.mxu0 %v1108
      %1180 = vmatmul.f32.gmra.mxu0 %v1117
      %v1181 = vpop.f32.mrf.mxu0
      %v1182 = vadd.f32 %v1114, %v1181
      %1183 = vmatmul.f32.gmra.mxu0 %v1120
      %v1184 = vpop.f32.mrf.mxu0
      %v1185 = vadd.f32 %v1114, %v1184
      %1186 = vmatmul.f32.gmra.mxu0 %v1123
      %v1187 = vpop.f32.mrf.mxu0
      %v1188 = vadd.f32 %v1114, %v1187
      %1189 = vmatmul.f32.gmra.mxu0 %v1126
      %v1190 = vpop.f32.mrf.mxu0
      %v1191 = vadd.f32 %v1114, %v1190
      %1192 = vmatmul.f32.gmra.mxu0 %v1129
      %v1193 = vpop.f32.mrf.mxu0
      %v1194 = vadd.f32 %v1114, %v1193
      %1195 = vmatmul.f32.gmra.mxu0 %v1132
      %v1196 = vpop.f32.mrf.mxu0
      %v1197 = vadd.f32 %v1114, %v1196
      %1198 = vmatmul.f32.gmra.mxu0 %v1135
      %v1199 = vpop.f32.mrf.mxu0
      %v1200 = vadd.f32 %v1114, %v1199
      %1201 = vmatmul.f32.gmra.mxu0 %v1138
      %v1202 = vpop.f32.mrf.mxu0
      %v1203 = vadd.f32 %v1114, %v1202
      %1204 = vmatmul.f32.gmra.mxu0 %v1141
      %v1205 = vpop.f32.mrf.mxu0
      %v1206 = vadd.f32 %v1114, %v1205
      %1207 = vmatmul.f32.gmra.mxu0 %v1144
      %v1208 = vpop.f32.mrf.mxu0
      %v1209 = vadd.f32 %v1114, %v1208
      %1210 = vmatmul.f32.gmra.mxu0 %v1147
      %v1211 = vpop.f32.mrf.mxu0
      %v1212 = vadd.f32 %v1114, %v1211
      %1213 = vmatmul.f32.gmra.mxu0 %v1150
      %v1214 = vpop.f32.mrf.mxu0
      %v1215 = vadd.f32 %v1114, %v1214
      %1216 = vmatmul.f32.gmra.mxu0 %v1153
      %v1217 = vpop.f32.mrf.mxu0
      %v1218 = vadd.f32 %v1114, %v1217
      %1219 = vmatmul.f32.gmra.mxu0 %v1156
      %v1220 = vpop.f32.mrf.mxu0
      %v1221 = vadd.f32 %v1114, %v1220
      %1222 = vmatmul.f32.gmra.mxu0 %v1159
      %v1223 = vpop.f32.mrf.mxu0
      %v1224 = vadd.f32 %v1114, %v1223
      %1225 = vmatmul.f32.gmra.mxu0 %v1162
      %v1226 = vpop.f32.mrf.mxu0
      %v1227 = vadd.f32 %v1114, %v1226
      %1228 = vdwg.mxu0
      %1237 = vrot.lane.b32.xlu0 %v1182, 96
      %v1238 = vpop.permute.xlu0 %1237
      %1239 = vrot.lane.b32.xlu0 %v1185, 96
      %v1240 = vpop.permute.xlu0 %1239
      %1241 = vrot.lane.b32.xlu0 %v1188, 96
      %v1242 = vpop.permute.xlu0 %1241
      %1243 = vrot.lane.b32.xlu0 %v1191, 96
      %v1244 = vpop.permute.xlu0 %1243
      %1245 = vrot.lane.b32.xlu0 %v1194, 96
      %v1246 = vpop.permute.xlu0 %1245
      %1247 = vrot.lane.b32.xlu0 %v1197, 96
      %v1248 = vpop.permute.xlu0 %1247
      %1249 = vrot.lane.b32.xlu0 %v1200, 96
      %v1250 = vpop.permute.xlu0 %1249
      %1251 = vrot.lane.b32.xlu0 %v1203, 96
      %v1252 = vpop.permute.xlu0 %1251
      %vm1253 = vcmask 64512
      %v1254 = vsel %vm1253, %v1182, 0
      %v1256 = vsel %vm1253, %v1185, 0
      %v1258 = vsel %vm1253, %v1188, 0
      %v1260 = vsel %vm1253, %v1191, 0
      %v1262 = vsel %vm1253, %v1194, 0
      %v1264 = vsel %vm1253, %v1197, 0
      %v1266 = vsel %vm1253, %v1200, 0
      %v1268 = vsel %vm1253, %v1203, 0
      %v1270 = vsel %vm1253, %v1238, 0
      %v1272 = vsel %vm1253, %v1240, 0
      %v1274 = vsel %vm1253, %v1242, 0
      %v1276 = vsel %vm1253, %v1244, 0
      %v1278 = vsel %vm1253, %v1246, 0
      %v1280 = vsel %vm1253, %v1248, 0
      %v1282 = vsel %vm1253, %v1250, 0
      %v1284 = vsel %vm1253, %v1252, 0
      %1286 = vmatpush.xpose.msra.mxu0 0.0
      %1287 = vmatpush.xpose.msra.mxu0 0.0
      %1288 = vmatpush.xpose.msra.mxu0 0.0
      %1289 = vmatpush.xpose.msra.mxu0 0.0
      %1290 = vmatpush.xpose.msra.mxu0 0.0
      %1291 = vmatpush.xpose.msra.mxu0 0.0
      %1292 = vmatpush.xpose.msra.mxu0 0.0
      %1293 = vmatpush.xpose.msra.mxu0 0.0
      %1294 = vmatpush.xpose.msra.mxu0 %v1284
      %1295 = vmatpush.xpose.msra.mxu0 %v1282
      %1296 = vmatpush.xpose.msra.mxu0 %v1280
      %1297 = vmatpush.xpose.msra.mxu0 %v1278
      %1298 = vmatpush.xpose.msra.mxu0 %v1276
      %1299 = vmatpush.xpose.msra.mxu0 %v1274
      %1300 = vmatpush.xpose.msra.mxu0 %v1272
      %1301 = vmatpush.xpose.msra.mxu0 %v1270
      %1302 = vmatmul.f32.gmra.mxu0 %v1254
      %v1303 = vpop.f32.mrf.mxu0
      %v1304 = vadd.f32 0.0, %v1303
      %1305 = vmatmul.f32.gmra.mxu0 %v1256
      %v1306 = vpop.f32.mrf.mxu0
      %v1307 = vadd.f32 0.0, %v1306
      %1308 = vmatmul.f32.gmra.mxu0 %v1258
      %v1309 = vpop.f32.mrf.mxu0
      %v1310 = vadd.f32 0.0, %v1309
      %1311 = vmatmul.f32.gmra.mxu0 %v1260
      %v1312 = vpop.f32.mrf.mxu0
      %v1313 = vadd.f32 0.0, %v1312
      %1314 = vmatmul.f32.gmra.mxu0 %v1262
      %v1315 = vpop.f32.mrf.mxu0
      %v1316 = vadd.f32 0.0, %v1315
      %1317 = vmatmul.f32.gmra.mxu0 %v1264
      %v1318 = vpop.f32.mrf.mxu0
      %v1319 = vadd.f32 0.0, %v1318
      %1320 = vmatmul.f32.gmra.mxu0 %v1266
      %v1321 = vpop.f32.mrf.mxu0
      %v1322 = vadd.f32 0.0, %v1321
      %1323 = vmatmul.f32.gmra.mxu0 %v1268
      %v1324 = vpop.f32.mrf.mxu0
      %v1325 = vadd.f32 0.0, %v1324
      %1326 = vdwg.mxu0
      %1335 = vrot.lane.b32.xlu0 %v1206, 96
      %v1336 = vpop.permute.xlu0 %1335
      %1337 = vrot.lane.b32.xlu0 %v1209, 96
      %v1338 = vpop.permute.xlu0 %1337
      %1339 = vrot.lane.b32.xlu0 %v1212, 96
      %v1340 = vpop.permute.xlu0 %1339
      %1341 = vrot.lane.b32.xlu0 %v1215, 96
      %v1342 = vpop.permute.xlu0 %1341
      %1343 = vrot.lane.b32.xlu0 %v1218, 96
      %v1344 = vpop.permute.xlu0 %1343
      %1345 = vrot.lane.b32.xlu0 %v1221, 96
      %v1346 = vpop.permute.xlu0 %1345
      %1347 = vrot.lane.b32.xlu0 %v1224, 96
      %v1348 = vpop.permute.xlu0 %1347
      %1349 = vrot.lane.b32.xlu0 %v1227, 96
      %v1350 = vpop.permute.xlu0 %1349
      %v1351 = vsel %vm1253, %v1206, 0
      %v1353 = vsel %vm1253, %v1209, 0
      %v1355 = vsel %vm1253, %v1212, 0
      %v1357 = vsel %vm1253, %v1215, 0
      %v1359 = vsel %vm1253, %v1218, 0
      %v1361 = vsel %vm1253, %v1221, 0
      %v1363 = vsel %vm1253, %v1224, 0
      %v1365 = vsel %vm1253, %v1227, 0
      %v1367 = vsel %vm1253, %v1336, 0
      %v1369 = vsel %vm1253, %v1338, 0
      %v1371 = vsel %vm1253, %v1340, 0
      %v1373 = vsel %vm1253, %v1342, 0
      %v1375 = vsel %vm1253, %v1344, 0
      %v1377 = vsel %vm1253, %v1346, 0
      %v1379 = vsel %vm1253, %v1348, 0
      %v1381 = vsel %vm1253, %v1350, 0
      %1383 = vmatpush.xpose.msra.mxu0 0.0
      %1384 = vmatpush.xpose.msra.mxu0 0.0
      %1385 = vmatpush.xpose.msra.mxu0 0.0
      %1386 = vmatpush.xpose.msra.mxu0 0.0
      %1387 = vmatpush.xpose.msra.mxu0 0.0
      %1388 = vmatpush.xpose.msra.mxu0 0.0
      %1389 = vmatpush.xpose.msra.mxu0 0.0
      %1390 = vmatpush.xpose.msra.mxu0 0.0
      %1391 = vmatpush.xpose.msra.mxu0 %v1381
      %1392 = vmatpush.xpose.msra.mxu0 %v1379
      %1393 = vmatpush.xpose.msra.mxu0 %v1377
      %1394 = vmatpush.xpose.msra.mxu0 %v1375
      %1395 = vmatpush.xpose.msra.mxu0 %v1373
      %1396 = vmatpush.xpose.msra.mxu0 %v1371
      %1397 = vmatpush.xpose.msra.mxu0 %v1369
      %1398 = vmatpush.xpose.msra.mxu0 %v1367
      %1399 = vmatmul.f32.gmra.mxu0 %v1351
      %v1400 = vpop.f32.mrf.mxu0
      %v1401 = vadd.f32 0.0, %v1400
      %1402 = vmatmul.f32.gmra.mxu0 %v1353
      %v1403 = vpop.f32.mrf.mxu0
      %v1404 = vadd.f32 0.0, %v1403
      %1405 = vmatmul.f32.gmra.mxu0 %v1355
      %v1406 = vpop.f32.mrf.mxu0
      %v1407 = vadd.f32 0.0, %v1406
      %1408 = vmatmul.f32.gmra.mxu0 %v1357
      %v1409 = vpop.f32.mrf.mxu0
      %v1410 = vadd.f32 0.0, %v1409
      %1411 = vmatmul.f32.gmra.mxu0 %v1359
      %v1412 = vpop.f32.mrf.mxu0
      %v1413 = vadd.f32 0.0, %v1412
      %1414 = vmatmul.f32.gmra.mxu0 %v1361
      %v1415 = vpop.f32.mrf.mxu0
      %v1416 = vadd.f32 0.0, %v1415
      %1417 = vmatmul.f32.gmra.mxu0 %v1363
      %v1418 = vpop.f32.mrf.mxu0
      %v1419 = vadd.f32 0.0, %v1418
      %1420 = vmatmul.f32.gmra.mxu0 %v1365
      %v1421 = vpop.f32.mrf.mxu0
      %v1422 = vadd.f32 0.0, %v1421
      %1423 = vdwg.mxu0
      %vm1424 = vcmask 523264
      %v1425 = vsel %vm1424, %v1304, -inf
      %1426 = vmax.xlane.f32.xlu0 %v1425
      %v1427 = vpop.xlane.xlu0 %1426
      %v1428 = vsel %vm1424, %v1307, -inf
      %1429 = vmax.xlane.f32.xlu0 %v1428
      %v1430 = vpop.xlane.xlu0 %1429
      %v1431 = vsel %vm1424, %v1310, -inf
      %1432 = vmax.xlane.f32.xlu0 %v1431
      %v1433 = vpop.xlane.xlu0 %1432
      %v1434 = vsel %vm1424, %v1313, -inf
      %1435 = vmax.xlane.f32.xlu0 %v1434
      %v1436 = vpop.xlane.xlu0 %1435
      %v1437 = vsel %vm1424, %v1316, -inf
      %1438 = vmax.xlane.f32.xlu0 %v1437
      %v1439 = vpop.xlane.xlu0 %1438
      %v1440 = vsel %vm1424, %v1319, -inf
      %1441 = vmax.xlane.f32.xlu0 %v1440
      %v1442 = vpop.xlane.xlu0 %1441
      %v1443 = vsel %vm1424, %v1322, -inf
      %1444 = vmax.xlane.f32.xlu0 %v1443
      %v1445 = vpop.xlane.xlu0 %1444
      %v1446 = vsel %vm1424, %v1325, -inf
      %1447 = vmax.xlane.f32.xlu0 %v1446
      %v1448 = vpop.xlane.xlu0 %1447
      %v1449 = vsel %vm1424, %v1401, -inf
      %1450 = vmax.xlane.f32.xlu0 %v1449
      %v1451 = vpop.xlane.xlu0 %1450
      %v1452 = vsel %vm1424, %v1404, -inf
      %1453 = vmax.xlane.f32.xlu0 %v1452
      %v1454 = vpop.xlane.xlu0 %1453
      %v1455 = vsel %vm1424, %v1407, -inf
      %1456 = vmax.xlane.f32.xlu0 %v1455
      %v1457 = vpop.xlane.xlu0 %1456
      %v1458 = vsel %vm1424, %v1410, -inf
      %1459 = vmax.xlane.f32.xlu0 %v1458
      %v1460 = vpop.xlane.xlu0 %1459
      %v1461 = vsel %vm1424, %v1413, -inf
      %1462 = vmax.xlane.f32.xlu0 %v1461
      %v1463 = vpop.xlane.xlu0 %1462
      %v1464 = vsel %vm1424, %v1416, -inf
      %1465 = vmax.xlane.f32.xlu0 %v1464
      %v1466 = vpop.xlane.xlu0 %1465
      %v1467 = vsel %vm1424, %v1419, -inf
      %1468 = vmax.xlane.f32.xlu0 %v1467
      %v1469 = vpop.xlane.xlu0 %1468
      %v1470 = vsel %vm1424, %v1422, -inf
      %1471 = vmax.xlane.f32.xlu0 %v1470
      %v1472 = vpop.xlane.xlu0 %1471
      %v1473 = vsub.f32 %v1304, %v1427
      %v1474 = vsub.f32 %v1307, %v1430
      %v1475 = vsub.f32 %v1310, %v1433
      %v1476 = vsub.f32 %v1313, %v1436
      %v1477 = vsub.f32 %v1316, %v1439
      %v1478 = vsub.f32 %v1319, %v1442
      %v1479 = vsub.f32 %v1322, %v1445
      %v1480 = vsub.f32 %v1325, %v1448
      %v1481 = vsub.f32 %v1401, %v1451
      %v1482 = vsub.f32 %v1404, %v1454
      %v1483 = vsub.f32 %v1407, %v1457
      %v1484 = vsub.f32 %v1410, %v1460
      %v1485 = vsub.f32 %v1413, %v1463
      %v1486 = vsub.f32 %v1416, %v1466
      %v1487 = vsub.f32 %v1419, %v1469
      %v1488 = vsub.f32 %v1422, %v1472
      %v1489 = vmul.f32 %v1473, 1.442695
      %v1490 = vpow.pop %v1489
      %v1491 = vmul.f32 %v1474, 1.442695
      %v1492 = vpow.pop %v1491
      %v1493 = vmul.f32 %v1475, 1.442695
      %v1494 = vpow.pop %v1493
      %v1495 = vmul.f32 %v1476, 1.442695
      %v1496 = vpow.pop %v1495
      %v1497 = vmul.f32 %v1477, 1.442695
      %v1498 = vpow.pop %v1497
      %v1499 = vmul.f32 %v1478, 1.442695
      %v1500 = vpow.pop %v1499
      %v1501 = vmul.f32 %v1479, 1.442695
      %v1502 = vpow.pop %v1501
      %v1503 = vmul.f32 %v1480, 1.442695
      %v1504 = vpow.pop %v1503
      %v1505 = vmul.f32 %v1481, 1.442695
      %v1506 = vpow.pop %v1505
      %v1507 = vmul.f32 %v1482, 1.442695
      %v1508 = vpow.pop %v1507
      %v1509 = vmul.f32 %v1483, 1.442695
      %v1510 = vpow.pop %v1509
      %v1511 = vmul.f32 %v1484, 1.442695
      %v1512 = vpow.pop %v1511
      %v1513 = vmul.f32 %v1485, 1.442695
      %v1514 = vpow.pop %v1513
      %v1515 = vmul.f32 %v1486, 1.442695
      %v1516 = vpow.pop %v1515
      %v1517 = vmul.f32 %v1487, 1.442695
      %v1518 = vpow.pop %v1517
      %v1519 = vmul.f32 %v1488, 1.442695
      %v1520 = vpow.pop %v1519
      %v1521 = vsel %vm1424, %v1490, 0.0
      %1522 = vadd.xlane.f32.xlu0 %v1521
      %v1523 = vpop.xlane.xlu0 %1522
      %v1524 = vsel %vm1424, %v1492, 0.0
      %1525 = vadd.xlane.f32.xlu0 %v1524
      %v1526 = vpop.xlane.xlu0 %1525
      %v1527 = vsel %vm1424, %v1494, 0.0
      %1528 = vadd.xlane.f32.xlu0 %v1527
      %v1529 = vpop.xlane.xlu0 %1528
      %v1530 = vsel %vm1424, %v1496, 0.0
      %1531 = vadd.xlane.f32.xlu0 %v1530
      %v1532 = vpop.xlane.xlu0 %1531
      %v1533 = vsel %vm1424, %v1498, 0.0
      %1534 = vadd.xlane.f32.xlu0 %v1533
      %v1535 = vpop.xlane.xlu0 %1534
      %v1536 = vsel %vm1424, %v1500, 0.0
      %1537 = vadd.xlane.f32.xlu0 %v1536
      %v1538 = vpop.xlane.xlu0 %1537
      %v1539 = vsel %vm1424, %v1502, 0.0
      %1540 = vadd.xlane.f32.xlu0 %v1539
      %v1541 = vpop.xlane.xlu0 %1540
      %v1542 = vsel %vm1424, %v1504, 0.0
      %1543 = vadd.xlane.f32.xlu0 %v1542
      %v1544 = vpop.xlane.xlu0 %1543
      %v1545 = vsel %vm1424, %v1506, 0.0
      %1546 = vadd.xlane.f32.xlu0 %v1545
      %v1547 = vpop.xlane.xlu0 %1546
      %v1548 = vsel %vm1424, %v1508, 0.0
      %1549 = vadd.xlane.f32.xlu0 %v1548
      %v1550 = vpop.xlane.xlu0 %1549
      %v1551 = vsel %vm1424, %v1510, 0.0
      %1552 = vadd.xlane.f32.xlu0 %v1551
      %v1553 = vpop.xlane.xlu0 %1552
      %v1554 = vsel %vm1424, %v1512, 0.0
      %1555 = vadd.xlane.f32.xlu0 %v1554
      %v1556 = vpop.xlane.xlu0 %1555
      %v1557 = vsel %vm1424, %v1514, 0.0
      %1558 = vadd.xlane.f32.xlu0 %v1557
      %v1559 = vpop.xlane.xlu0 %1558
      %v1560 = vsel %vm1424, %v1516, 0.0
      %1561 = vadd.xlane.f32.xlu0 %v1560
      %v1562 = vpop.xlane.xlu0 %1561
      %v1563 = vsel %vm1424, %v1518, 0.0
      %1564 = vadd.xlane.f32.xlu0 %v1563
      %v1565 = vpop.xlane.xlu0 %1564
      %v1566 = vsel %vm1424, %v1520, 0.0
      %1567 = vadd.xlane.f32.xlu0 %v1566
      %v1568 = vpop.xlane.xlu0 %1567
      %v1569 = vrcp.pop %v1523
      %v1570 = vmul.f32 %v1523, %v1569
      %v1571 = vsub.f32 1.0, %v1570
      %v1572 = vmul.f32 %v1569, %v1571
      %v1573 = vadd.f32 %v1569, %v1572
      %vm1574 = vweird.f32 %v1523
      %vm1575 = vweird.f32 %v1569
      %vm1576 = vmor %vm1574, %vm1575
      %v1577 = vsel %vm1576, %v1569, %v1573
      %v1578 = vand.u32 2147483647, %v1523
      %vm1579 = vcmp.eq.f32.partialorder %v1578, 8.507059e+37
      %v1580 = vand.u32 %v1523, 2147483648
      %v1581 = vor.u32 1.1754944e-38, %v1580
      %v1582 = vsel %vm1579, %v1581, %v1577
      %v1583 = vrcp.pop %v1526
      %v1584 = vmul.f32 %v1526, %v1583
      %v1585 = vsub.f32 1.0, %v1584
      %v1586 = vmul.f32 %v1583, %v1585
      %v1587 = vadd.f32 %v1583, %v1586
      %vm1588 = vweird.f32 %v1526
      %vm1589 = vweird.f32 %v1583
      %vm1590 = vmor %vm1588, %vm1589
      %v1591 = vsel %vm1590, %v1583, %v1587
      %v1592 = vand.u32 2147483647, %v1526
      %vm1593 = vcmp.eq.f32.partialorder %v1592, 8.507059e+37
      %v1594 = vand.u32 %v1526, 2147483648
      %v1595 = vor.u32 1.1754944e-38, %v1594
      %v1596 = vsel %vm1593, %v1595, %v1591
      %v1597 = vrcp.pop %v1529
      %v1598 = vmul.f32 %v1529, %v1597
      %v1599 = vsub.f32 1.0, %v1598
      %v1600 = vmul.f32 %v1597, %v1599
      %v1601 = vadd.f32 %v1597, %v1600
      %vm1602 = vweird.f32 %v1529
      %vm1603 = vweird.f32 %v1597
      %vm1604 = vmor %vm1602, %vm1603
      %v1605 = vsel %vm1604, %v1597, %v1601
      %v1606 = vand.u32 2147483647, %v1529
      %vm1607 = vcmp.eq.f32.partialorder %v1606, 8.507059e+37
      %v1608 = vand.u32 %v1529, 2147483648
      %v1609 = vor.u32 1.1754944e-38, %v1608
      %v1610 = vsel %vm1607, %v1609, %v1605
      %v1611 = vrcp.pop %v1532
      %v1612 = vmul.f32 %v1532, %v1611
      %v1613 = vsub.f32 1.0, %v1612
      %v1614 = vmul.f32 %v1611, %v1613
      %v1615 = vadd.f32 %v1611, %v1614
      %vm1616 = vweird.f32 %v1532
      %vm1617 = vweird.f32 %v1611
      %vm1618 = vmor %vm1616, %vm1617
      %v1619 = vsel %vm1618, %v1611, %v1615
      %v1620 = vand.u32 2147483647, %v1532
      %vm1621 = vcmp.eq.f32.partialorder %v1620, 8.507059e+37
      %v1622 = vand.u32 %v1532, 2147483648
      %v1623 = vor.u32 1.1754944e-38, %v1622
      %v1624 = vsel %vm1621, %v1623, %v1619
      %v1625 = vrcp.pop %v1535
      %v1626 = vmul.f32 %v1535, %v1625
      %v1627 = vsub.f32 1.0, %v1626
      %v1628 = vmul.f32 %v1625, %v1627
      %v1629 = vadd.f32 %v1625, %v1628
      %vm1630 = vweird.f32 %v1535
      %vm1631 = vweird.f32 %v1625
      %vm1632 = vmor %vm1630, %vm1631
      %v1633 = vsel %vm1632, %v1625, %v1629
      %v1634 = vand.u32 2147483647, %v1535
      %vm1635 = vcmp.eq.f32.partialorder %v1634, 8.507059e+37
      %v1636 = vand.u32 %v1535, 2147483648
      %v1637 = vor.u32 1.1754944e-38, %v1636
      %v1638 = vsel %vm1635, %v1637, %v1633
      %v1639 = vrcp.pop %v1538
      %v1640 = vmul.f32 %v1538, %v1639
      %v1641 = vsub.f32 1.0, %v1640
      %v1642 = vmul.f32 %v1639, %v1641
      %v1643 = vadd.f32 %v1639, %v1642
      %vm1644 = vweird.f32 %v1538
      %vm1645 = vweird.f32 %v1639
      %vm1646 = vmor %vm1644, %vm1645
      %v1647 = vsel %vm1646, %v1639, %v1643
      %v1648 = vand.u32 2147483647, %v1538
      %vm1649 = vcmp.eq.f32.partialorder %v1648, 8.507059e+37
      %v1650 = vand.u32 %v1538, 2147483648
      %v1651 = vor.u32 1.1754944e-38, %v1650
      %v1652 = vsel %vm1649, %v1651, %v1647
      %v1653 = vrcp.pop %v1541
      %v1654 = vmul.f32 %v1541, %v1653
      %v1655 = vsub.f32 1.0, %v1654
      %v1656 = vmul.f32 %v1653, %v1655
      %v1657 = vadd.f32 %v1653, %v1656
      %vm1658 = vweird.f32 %v1541
      %vm1659 = vweird.f32 %v1653
      %vm1660 = vmor %vm1658, %vm1659
      %v1661 = vsel %vm1660, %v1653, %v1657
      %v1662 = vand.u32 2147483647, %v1541
      %vm1663 = vcmp.eq.f32.partialorder %v1662, 8.507059e+37
      %v1664 = vand.u32 %v1541, 2147483648
      %v1665 = vor.u32 1.1754944e-38, %v1664
      %v1666 = vsel %vm1663, %v1665, %v1661
      %v1667 = vrcp.pop %v1544
      %v1668 = vmul.f32 %v1544, %v1667
      %v1669 = vsub.f32 1.0, %v1668
      %v1670 = vmul.f32 %v1667, %v1669
      %v1671 = vadd.f32 %v1667, %v1670
      %vm1672 = vweird.f32 %v1544
      %vm1673 = vweird.f32 %v1667
      %vm1674 = vmor %vm1672, %vm1673
      %v1675 = vsel %vm1674, %v1667, %v1671
      %v1676 = vand.u32 2147483647, %v1544
      %vm1677 = vcmp.eq.f32.partialorder %v1676, 8.507059e+37
      %v1678 = vand.u32 %v1544, 2147483648
      %v1679 = vor.u32 1.1754944e-38, %v1678
      %v1680 = vsel %vm1677, %v1679, %v1675
      %v1681 = vrcp.pop %v1547
      %v1682 = vmul.f32 %v1547, %v1681
      %v1683 = vsub.f32 1.0, %v1682
      %v1684 = vmul.f32 %v1681, %v1683
      %v1685 = vadd.f32 %v1681, %v1684
      %vm1686 = vweird.f32 %v1547
      %vm1687 = vweird.f32 %v1681
      %vm1688 = vmor %vm1686, %vm1687
      %v1689 = vsel %vm1688, %v1681, %v1685
      %v1690 = vand.u32 2147483647, %v1547
      %vm1691 = vcmp.eq.f32.partialorder %v1690, 8.507059e+37
      %v1692 = vand.u32 %v1547, 2147483648
      %v1693 = vor.u32 1.1754944e-38, %v1692
      %v1694 = vsel %vm1691, %v1693, %v1689
      %v1695 = vrcp.pop %v1550
      %v1696 = vmul.f32 %v1550, %v1695
      %v1697 = vsub.f32 1.0, %v1696
      %v1698 = vmul.f32 %v1695, %v1697
      %v1699 = vadd.f32 %v1695, %v1698
      %vm1700 = vweird.f32 %v1550
      %vm1701 = vweird.f32 %v1695
      %vm1702 = vmor %vm1700, %vm1701
      %v1703 = vsel %vm1702, %v1695, %v1699
      %v1704 = vand.u32 2147483647, %v1550
      %vm1705 = vcmp.eq.f32.partialorder %v1704, 8.507059e+37
      %v1706 = vand.u32 %v1550, 2147483648
      %v1707 = vor.u32 1.1754944e-38, %v1706
      %v1708 = vsel %vm1705, %v1707, %v1703
      %v1709 = vrcp.pop %v1553
      %v1710 = vmul.f32 %v1553, %v1709
      %v1711 = vsub.f32 1.0, %v1710
      %v1712 = vmul.f32 %v1709, %v1711
      %v1713 = vadd.f32 %v1709, %v1712
      %vm1714 = vweird.f32 %v1553
      %vm1715 = vweird.f32 %v1709
      %vm1716 = vmor %vm1714, %vm1715
      %v1717 = vsel %vm1716, %v1709, %v1713
      %v1718 = vand.u32 2147483647, %v1553
      %vm1719 = vcmp.eq.f32.partialorder %v1718, 8.507059e+37
      %v1720 = vand.u32 %v1553, 2147483648
      %v1721 = vor.u32 1.1754944e-38, %v1720
      %v1722 = vsel %vm1719, %v1721, %v1717
      %v1723 = vrcp.pop %v1556
      %v1724 = vmul.f32 %v1556, %v1723
      %v1725 = vsub.f32 1.0, %v1724
      %v1726 = vmul.f32 %v1723, %v1725
      %v1727 = vadd.f32 %v1723, %v1726
      %vm1728 = vweird.f32 %v1556
      %vm1729 = vweird.f32 %v1723
      %vm1730 = vmor %vm1728, %vm1729
      %v1731 = vsel %vm1730, %v1723, %v1727
      %v1732 = vand.u32 2147483647, %v1556
      %vm1733 = vcmp.eq.f32.partialorder %v1732, 8.507059e+37
      %v1734 = vand.u32 %v1556, 2147483648
      %v1735 = vor.u32 1.1754944e-38, %v1734
      %v1736 = vsel %vm1733, %v1735, %v1731
      %v1737 = vrcp.pop %v1559
      %v1738 = vmul.f32 %v1559, %v1737
      %v1739 = vsub.f32 1.0, %v1738
      %v1740 = vmul.f32 %v1737, %v1739
      %v1741 = vadd.f32 %v1737, %v1740
      %vm1742 = vweird.f32 %v1559
      %vm1743 = vweird.f32 %v1737
      %vm1744 = vmor %vm1742, %vm1743
      %v1745 = vsel %vm1744, %v1737, %v1741
      %v1746 = vand.u32 2147483647, %v1559
      %vm1747 = vcmp.eq.f32.partialorder %v1746, 8.507059e+37
      %v1748 = vand.u32 %v1559, 2147483648
      %v1749 = vor.u32 1.1754944e-38, %v1748
      %v1750 = vsel %vm1747, %v1749, %v1745
      %v1751 = vrcp.pop %v1562
      %v1752 = vmul.f32 %v1562, %v1751
      %v1753 = vsub.f32 1.0, %v1752
      %v1754 = vmul.f32 %v1751, %v1753
      %v1755 = vadd.f32 %v1751, %v1754
      %vm1756 = vweird.f32 %v1562
      %vm1757 = vweird.f32 %v1751
      %vm1758 = vmor %vm1756, %vm1757
      %v1759 = vsel %vm1758, %v1751, %v1755
      %v1760 = vand.u32 2147483647, %v1562
      %vm1761 = vcmp.eq.f32.partialorder %v1760, 8.507059e+37
      %v1762 = vand.u32 %v1562, 2147483648
      %v1763 = vor.u32 1.1754944e-38, %v1762
      %v1764 = vsel %vm1761, %v1763, %v1759
      %v1765 = vrcp.pop %v1565
      %v1766 = vmul.f32 %v1565, %v1765
      %v1767 = vsub.f32 1.0, %v1766
      %v1768 = vmul.f32 %v1765, %v1767
      %v1769 = vadd.f32 %v1765, %v1768
      %vm1770 = vweird.f32 %v1565
      %vm1771 = vweird.f32 %v1765
      %vm1772 = vmor %vm1770, %vm1771
      %v1773 = vsel %vm1772, %v1765, %v1769
      %v1774 = vand.u32 2147483647, %v1565
      %vm1775 = vcmp.eq.f32.partialorder %v1774, 8.507059e+37
      %v1776 = vand.u32 %v1565, 2147483648
      %v1777 = vor.u32 1.1754944e-38, %v1776
      %v1778 = vsel %vm1775, %v1777, %v1773
      %v1779 = vrcp.pop %v1568
      %v1780 = vmul.f32 %v1568, %v1779
      %v1781 = vsub.f32 1.0, %v1780
      %v1782 = vmul.f32 %v1779, %v1781
      %v1783 = vadd.f32 %v1779, %v1782
      %vm1784 = vweird.f32 %v1568
      %vm1785 = vweird.f32 %v1779
      %vm1786 = vmor %vm1784, %vm1785
      %v1787 = vsel %vm1786, %v1779, %v1783
      %v1788 = vand.u32 2147483647, %v1568
      %vm1789 = vcmp.eq.f32.partialorder %v1788, 8.507059e+37
      %v1790 = vand.u32 %v1568, 2147483648
      %v1791 = vor.u32 1.1754944e-38, %v1790
      %v1792 = vsel %vm1789, %v1791, %v1787
      %v1793 = vmul.f32 %v1490, %v1582
      %v1794 = vmul.f32 %v1492, %v1596
      %v1795 = vmul.f32 %v1494, %v1610
      %v1796 = vmul.f32 %v1496, %v1624
      %v1797 = vmul.f32 %v1498, %v1638
      %v1798 = vmul.f32 %v1500, %v1652
      %v1799 = vmul.f32 %v1502, %v1666
      %v1800 = vmul.f32 %v1504, %v1680
      %v1801 = vmul.f32 %v1506, %v1694
      %v1802 = vmul.f32 %v1508, %v1708
      %v1803 = vmul.f32 %v1510, %v1722
      %v1804 = vmul.f32 %v1512, %v1736
      %v1805 = vmul.f32 %v1514, %v1750
      %v1806 = vmul.f32 %v1516, %v1764
      %v1807 = vmul.f32 %v1518, %v1778
      %v1808 = vmul.f32 %v1520, %v1792
      %1809 = vrot.lane.b32.xlu0 %v1182, 64
      %v1810 = vpop.permute.xlu0 %1809
      %1811 = vrot.lane.b32.xlu0 %v1185, 64
      %v1812 = vpop.permute.xlu0 %1811
      %1813 = vrot.lane.b32.xlu0 %v1188, 64
      %v1814 = vpop.permute.xlu0 %1813
      %1815 = vrot.lane.b32.xlu0 %v1191, 64
      %v1816 = vpop.permute.xlu0 %1815
      %1817 = vrot.lane.b32.xlu0 %v1194, 64
      %v1818 = vpop.permute.xlu0 %1817
      %1819 = vrot.lane.b32.xlu0 %v1197, 64
      %v1820 = vpop.permute.xlu0 %1819
      %1821 = vrot.lane.b32.xlu0 %v1200, 64
      %v1822 = vpop.permute.xlu0 %1821
      %1823 = vrot.lane.b32.xlu0 %v1203, 64
      %v1824 = vpop.permute.xlu0 %1823
      %v1834 = vsel %vm1424, %v1793, 0
      %v1837 = vsel %vm1424, %v1794, 0
      %v1840 = vsel %vm1424, %v1795, 0
      %v1843 = vsel %vm1424, %v1796, 0
      %v1846 = vsel %vm1424, %v1797, 0
      %v1849 = vsel %vm1424, %v1798, 0
      %v1852 = vsel %vm1424, %v1799, 0
      %v1855 = vsel %vm1424, %v1800, 0
      %1857 = vmatpush.msra.mxu0 0.0
      %1858 = vmatpush.msra.mxu0 0.0
      %1859 = vmatpush.msra.mxu0 0.0
      %1860 = vmatpush.msra.mxu0 0.0
      %1861 = vmatpush.msra.mxu0 0.0
      %1862 = vmatpush.msra.mxu0 0.0
      %1863 = vmatpush.msra.mxu0 0.0
      %1864 = vmatpush.msra.mxu0 0.0
      %1865 = vmatpush.msra.mxu0 %v1824
      %1866 = vmatpush.msra.mxu0 %v1822
      %1867 = vmatpush.msra.mxu0 %v1820
      %1868 = vmatpush.msra.mxu0 %v1818
      %1869 = vmatpush.msra.mxu0 %v1816
      %1870 = vmatpush.msra.mxu0 %v1814
      %1871 = vmatpush.msra.mxu0 %v1812
      %1872 = vmatpush.msra.mxu0 %v1810
      %1873 = vmatmul.f32.gmra.mxu0 %v1834
      %v1874 = vpop.f32.mrf.mxu0
      %v1875 = vadd.f32 0.0, %v1874
      %1876 = vmatmul.f32.gmra.mxu0 %v1837
      %v1877 = vpop.f32.mrf.mxu0
      %v1878 = vadd.f32 0.0, %v1877
      %1879 = vmatmul.f32.gmra.mxu0 %v1840
      %v1880 = vpop.f32.mrf.mxu0
      %v1881 = vadd.f32 0.0, %v1880
      %1882 = vmatmul.f32.gmra.mxu0 %v1843
      %v1883 = vpop.f32.mrf.mxu0
      %v1884 = vadd.f32 0.0, %v1883
      %1885 = vmatmul.f32.gmra.mxu0 %v1846
      %v1886 = vpop.f32.mrf.mxu0
      %v1887 = vadd.f32 0.0, %v1886
      %1888 = vmatmul.f32.gmra.mxu0 %v1849
      %v1889 = vpop.f32.mrf.mxu0
      %v1890 = vadd.f32 0.0, %v1889
      %1891 = vmatmul.f32.gmra.mxu0 %v1852
      %v1892 = vpop.f32.mrf.mxu0
      %v1893 = vadd.f32 0.0, %v1892
      %1894 = vmatmul.f32.gmra.mxu0 %v1855
      %v1895 = vpop.f32.mrf.mxu0
      %v1896 = vadd.f32 0.0, %v1895
      %1897 = vdwg.mxu0
      %1898 = vrot.lane.b32.xlu0 %v1206, 64
      %v1899 = vpop.permute.xlu0 %1898
      %1900 = vrot.lane.b32.xlu0 %v1209, 64
      %v1901 = vpop.permute.xlu0 %1900
      %1902 = vrot.lane.b32.xlu0 %v1212, 64
      %v1903 = vpop.permute.xlu0 %1902
      %1904 = vrot.lane.b32.xlu0 %v1215, 64
      %v1905 = vpop.permute.xlu0 %1904
      %1906 = vrot.lane.b32.xlu0 %v1218, 64
      %v1907 = vpop.permute.xlu0 %1906
      %1908 = vrot.lane.b32.xlu0 %v1221, 64
      %v1909 = vpop.permute.xlu0 %1908
      %1910 = vrot.lane.b32.xlu0 %v1224, 64
      %v1911 = vpop.permute.xlu0 %1910
      %1912 = vrot.lane.b32.xlu0 %v1227, 64
      %v1913 = vpop.permute.xlu0 %1912
      %v1923 = vsel %vm1424, %v1801, 0
      %v1926 = vsel %vm1424, %v1802, 0
      %v1929 = vsel %vm1424, %v1803, 0
      %v1932 = vsel %vm1424, %v1804, 0
      %v1935 = vsel %vm1424, %v1805, 0
      %v1938 = vsel %vm1424, %v1806, 0
      %v1941 = vsel %vm1424, %v1807, 0
      %v1944 = vsel %vm1424, %v1808, 0
      %1946 = vmatpush.msra.mxu0 0.0
      %1947 = vmatpush.msra.mxu0 0.0
      %1948 = vmatpush.msra.mxu0 0.0
      %1949 = vmatpush.msra.mxu0 0.0
      %1950 = vmatpush.msra.mxu0 0.0
      %1951 = vmatpush.msra.mxu0 0.0
      %1952 = vmatpush.msra.mxu0 0.0
      %1953 = vmatpush.msra.mxu0 0.0
      %1954 = vmatpush.msra.mxu0 %v1913
      %1955 = vmatpush.msra.mxu0 %v1911
      %1956 = vmatpush.msra.mxu0 %v1909
      %1957 = vmatpush.msra.mxu0 %v1907
      %1958 = vmatpush.msra.mxu0 %v1905
      %1959 = vmatpush.msra.mxu0 %v1903
      %1960 = vmatpush.msra.mxu0 %v1901
      %1961 = vmatpush.msra.mxu0 %v1899
      %1962 = vmatmul.f32.gmra.mxu0 %v1923
      %v1963 = vpop.f32.mrf.mxu0
      %v1964 = vadd.f32 0.0, %v1963
      %1965 = vmatmul.f32.gmra.mxu0 %v1926
      %v1966 = vpop.f32.mrf.mxu0
      %v1967 = vadd.f32 0.0, %v1966
      %1968 = vmatmul.f32.gmra.mxu0 %v1929
      %v1969 = vpop.f32.mrf.mxu0
      %v1970 = vadd.f32 0.0, %v1969
      %1971 = vmatmul.f32.gmra.mxu0 %v1932
      %v1972 = vpop.f32.mrf.mxu0
      %v1973 = vadd.f32 0.0, %v1972
      %1974 = vmatmul.f32.gmra.mxu0 %v1935
      %v1975 = vpop.f32.mrf.mxu0
      %v1976 = vadd.f32 0.0, %v1975
      %1977 = vmatmul.f32.gmra.mxu0 %v1938
      %v1978 = vpop.f32.mrf.mxu0
      %v1979 = vadd.f32 0.0, %v1978
      %1980 = vmatmul.f32.gmra.mxu0 %v1941
      %v1981 = vpop.f32.mrf.mxu0
      %v1982 = vadd.f32 0.0, %v1981
      %1983 = vmatmul.f32.gmra.mxu0 %v1944
      %v1984 = vpop.f32.mrf.mxu0
      %v1985 = vadd.f32 0.0, %v1984
      %1986 = vdwg.mxu0
      %1987 = vrot.lane.b32.xlu0 %v1182, 120
      %v1988 = vpop.permute.xlu0 %1987
      %1989 = vrot.lane.b32.xlu0 %v1185, 120
      %v1990 = vpop.permute.xlu0 %1989
      %1991 = vrot.lane.b32.xlu0 %v1188, 120
      %v1992 = vpop.permute.xlu0 %1991
      %1993 = vrot.lane.b32.xlu0 %v1191, 120
      %v1994 = vpop.permute.xlu0 %1993
      %1995 = vrot.lane.b32.xlu0 %v1194, 120
      %v1996 = vpop.permute.xlu0 %1995
      %1997 = vrot.lane.b32.xlu0 %v1197, 120
      %v1998 = vpop.permute.xlu0 %1997
      %1999 = vrot.lane.b32.xlu0 %v1200, 120
      %v2000 = vpop.permute.xlu0 %1999
      %2001 = vrot.lane.b32.xlu0 %v1203, 120
      %v2002 = vpop.permute.xlu0 %2001
      %2003 = vrot.lane.b32.xlu0 %v1182, 88
      %v2004 = vpop.permute.xlu0 %2003
      %2005 = vrot.lane.b32.xlu0 %v1185, 88
      %v2006 = vpop.permute.xlu0 %2005
      %2007 = vrot.lane.b32.xlu0 %v1188, 88
      %v2008 = vpop.permute.xlu0 %2007
      %2009 = vrot.lane.b32.xlu0 %v1191, 88
      %v2010 = vpop.permute.xlu0 %2009
      %2011 = vrot.lane.b32.xlu0 %v1194, 88
      %v2012 = vpop.permute.xlu0 %2011
      %2013 = vrot.lane.b32.xlu0 %v1197, 88
      %v2014 = vpop.permute.xlu0 %2013
      %2015 = vrot.lane.b32.xlu0 %v1200, 88
      %v2016 = vpop.permute.xlu0 %2015
      %2017 = vrot.lane.b32.xlu0 %v1203, 88
      %v2018 = vpop.permute.xlu0 %2017
      %v2019 = vsel %vm1253, %v1988, 0
      %v2021 = vsel %vm1253, %v1990, 0
      %v2023 = vsel %vm1253, %v1992, 0
      %v2025 = vsel %vm1253, %v1994, 0
      %v2027 = vsel %vm1253, %v1996, 0
      %v2029 = vsel %vm1253, %v1998, 0
      %v2031 = vsel %vm1253, %v2000, 0
      %v2033 = vsel %vm1253, %v2002, 0
      %v2035 = vsel %vm1253, %v2004, 0
      %v2037 = vsel %vm1253, %v2006, 0
      %v2039 = vsel %vm1253, %v2008, 0
      %v2041 = vsel %vm1253, %v2010, 0
      %v2043 = vsel %vm1253, %v2012, 0
      %v2045 = vsel %vm1253, %v2014, 0
      %v2047 = vsel %vm1253, %v2016, 0
      %v2049 = vsel %vm1253, %v2018, 0
      %2051 = vmatpush.xpose.msra.mxu0 0.0
      %2052 = vmatpush.xpose.msra.mxu0 0.0
      %2053 = vmatpush.xpose.msra.mxu0 0.0
      %2054 = vmatpush.xpose.msra.mxu0 0.0
      %2055 = vmatpush.xpose.msra.mxu0 0.0
      %2056 = vmatpush.xpose.msra.mxu0 0.0
      %2057 = vmatpush.xpose.msra.mxu0 0.0
      %2058 = vmatpush.xpose.msra.mxu0 0.0
      %2059 = vmatpush.xpose.msra.mxu0 %v2049
      %2060 = vmatpush.xpose.msra.mxu0 %v2047
      %2061 = vmatpush.xpose.msra.mxu0 %v2045
      %2062 = vmatpush.xpose.msra.mxu0 %v2043
      %2063 = vmatpush.xpose.msra.mxu0 %v2041
      %2064 = vmatpush.xpose.msra.mxu0 %v2039
      %2065 = vmatpush.xpose.msra.mxu0 %v2037
      %2066 = vmatpush.xpose.msra.mxu0 %v2035
      %2067 = vmatmul.f32.gmra.mxu0 %v2019
      %v2068 = vpop.f32.mrf.mxu0
      %v2069 = vadd.f32 0.0, %v2068
      %2070 = vmatmul.f32.gmra.mxu0 %v2021
      %v2071 = vpop.f32.mrf.mxu0
      %v2072 = vadd.f32 0.0, %v2071
      %2073 = vmatmul.f32.gmra.mxu0 %v2023
      %v2074 = vpop.f32.mrf.mxu0
      %v2075 = vadd.f32 0.0, %v2074
      %2076 = vmatmul.f32.gmra.mxu0 %v2025
      %v2077 = vpop.f32.mrf.mxu0
      %v2078 = vadd.f32 0.0, %v2077
      %2079 = vmatmul.f32.gmra.mxu0 %v2027
      %v2080 = vpop.f32.mrf.mxu0
      %v2081 = vadd.f32 0.0, %v2080
      %2082 = vmatmul.f32.gmra.mxu0 %v2029
      %v2083 = vpop.f32.mrf.mxu0
      %v2084 = vadd.f32 0.0, %v2083
      %2085 = vmatmul.f32.gmra.mxu0 %v2031
      %v2086 = vpop.f32.mrf.mxu0
      %v2087 = vadd.f32 0.0, %v2086
      %2088 = vmatmul.f32.gmra.mxu0 %v2033
      %v2089 = vpop.f32.mrf.mxu0
      %v2090 = vadd.f32 0.0, %v2089
      %2091 = vdwg.mxu0
      %2092 = vrot.lane.b32.xlu0 %v1206, 120
      %v2093 = vpop.permute.xlu0 %2092
      %2094 = vrot.lane.b32.xlu0 %v1209, 120
      %v2095 = vpop.permute.xlu0 %2094
      %2096 = vrot.lane.b32.xlu0 %v1212, 120
      %v2097 = vpop.permute.xlu0 %2096
      %2098 = vrot.lane.b32.xlu0 %v1215, 120
      %v2099 = vpop.permute.xlu0 %2098
      %2100 = vrot.lane.b32.xlu0 %v1218, 120
      %v2101 = vpop.permute.xlu0 %2100
      %2102 = vrot.lane.b32.xlu0 %v1221, 120
      %v2103 = vpop.permute.xlu0 %2102
      %2104 = vrot.lane.b32.xlu0 %v1224, 120
      %v2105 = vpop.permute.xlu0 %2104
      %2106 = vrot.lane.b32.xlu0 %v1227, 120
      %v2107 = vpop.permute.xlu0 %2106
      %2108 = vrot.lane.b32.xlu0 %v1206, 88
      %v2109 = vpop.permute.xlu0 %2108
      %2110 = vrot.lane.b32.xlu0 %v1209, 88
      %v2111 = vpop.permute.xlu0 %2110
      %2112 = vrot.lane.b32.xlu0 %v1212, 88
      %v2113 = vpop.permute.xlu0 %2112
      %2114 = vrot.lane.b32.xlu0 %v1215, 88
      %v2115 = vpop.permute.xlu0 %2114
      %2116 = vrot.lane.b32.xlu0 %v1218, 88
      %v2117 = vpop.permute.xlu0 %2116
      %2118 = vrot.lane.b32.xlu0 %v1221, 88
      %v2119 = vpop.permute.xlu0 %2118
      %2120 = vrot.lane.b32.xlu0 %v1224, 88
      %v2121 = vpop.permute.xlu0 %2120
      %2122 = vrot.lane.b32.xlu0 %v1227, 88
      %v2123 = vpop.permute.xlu0 %2122
      %v2124 = vsel %vm1253, %v2093, 0
      %v2126 = vsel %vm1253, %v2095, 0
      %v2128 = vsel %vm1253, %v2097, 0
      %v2130 = vsel %vm1253, %v2099, 0
      %v2132 = vsel %vm1253, %v2101, 0
      %v2134 = vsel %vm1253, %v2103, 0
      %v2136 = vsel %vm1253, %v2105, 0
      %v2138 = vsel %vm1253, %v2107, 0
      %v2140 = vsel %vm1253, %v2109, 0
      %v2142 = vsel %vm1253, %v2111, 0
      %v2144 = vsel %vm1253, %v2113, 0
      %v2146 = vsel %vm1253, %v2115, 0
      %v2148 = vsel %vm1253, %v2117, 0
      %v2150 = vsel %vm1253, %v2119, 0
      %v2152 = vsel %vm1253, %v2121, 0
      %v2154 = vsel %vm1253, %v2123, 0
      %2156 = vmatpush.xpose.msra.mxu0 0.0
      %2157 = vmatpush.xpose.msra.mxu0 0.0
      %2158 = vmatpush.xpose.msra.mxu0 0.0
      %2159 = vmatpush.xpose.msra.mxu0 0.0
      %2160 = vmatpush.xpose.msra.mxu0 0.0
      %2161 = vmatpush.xpose.msra.mxu0 0.0
      %2162 = vmatpush.xpose.msra.mxu0 0.0
      %2163 = vmatpush.xpose.msra.mxu0 0.0
      %2164 = vmatpush.xpose.msra.mxu0 %v2154
      %2165 = vmatpush.xpose.msra.mxu0 %v2152
      %2166 = vmatpush.xpose.msra.mxu0 %v2150
      %2167 = vmatpush.xpose.msra.mxu0 %v2148
      %2168 = vmatpush.xpose.msra.mxu0 %v2146
      %2169 = vmatpush.xpose.msra.mxu0 %v2144
      %2170 = vmatpush.xpose.msra.mxu0 %v2142
      %2171 = vmatpush.xpose.msra.mxu0 %v2140
      %2172 = vmatmul.f32.gmra.mxu0 %v2124
      %v2173 = vpop.f32.mrf.mxu0
      %v2174 = vadd.f32 0.0, %v2173
      %2175 = vmatmul.f32.gmra.mxu0 %v2126
      %v2176 = vpop.f32.mrf.mxu0
      %v2177 = vadd.f32 0.0, %v2176
      %2178 = vmatmul.f32.gmra.mxu0 %v2128
      %v2179 = vpop.f32.mrf.mxu0
      %v2180 = vadd.f32 0.0, %v2179
      %2181 = vmatmul.f32.gmra.mxu0 %v2130
      %v2182 = vpop.f32.mrf.mxu0
      %v2183 = vadd.f32 0.0, %v2182
      %2184 = vmatmul.f32.gmra.mxu0 %v2132
      %v2185 = vpop.f32.mrf.mxu0
      %v2186 = vadd.f32 0.0, %v2185
      %2187 = vmatmul.f32.gmra.mxu0 %v2134
      %v2188 = vpop.f32.mrf.mxu0
      %v2189 = vadd.f32 0.0, %v2188
      %2190 = vmatmul.f32.gmra.mxu0 %v2136
      %v2191 = vpop.f32.mrf.mxu0
      %v2192 = vadd.f32 0.0, %v2191
      %2193 = vmatmul.f32.gmra.mxu0 %v2138
      %v2194 = vpop.f32.mrf.mxu0
      %v2195 = vadd.f32 0.0, %v2194
      %2196 = vdwg.mxu0
      %v2197 = vsel %vm1424, %v2069, -inf
      %2198 = vmax.xlane.f32.xlu0 %v2197
      %v2199 = vpop.xlane.xlu0 %2198
      %v2200 = vsel %vm1424, %v2072, -inf
      %2201 = vmax.xlane.f32.xlu0 %v2200
      %v2202 = vpop.xlane.xlu0 %2201
      %v2203 = vsel %vm1424, %v2075, -inf
      %2204 = vmax.xlane.f32.xlu0 %v2203
      %v2205 = vpop.xlane.xlu0 %2204
      %v2206 = vsel %vm1424, %v2078, -inf
      %2207 = vmax.xlane.f32.xlu0 %v2206
      %v2208 = vpop.xlane.xlu0 %2207
      %v2209 = vsel %vm1424, %v2081, -inf
      %2210 = vmax.xlane.f32.xlu0 %v2209
      %v2211 = vpop.xlane.xlu0 %2210
      %v2212 = vsel %vm1424, %v2084, -inf
      %2213 = vmax.xlane.f32.xlu0 %v2212
      %v2214 = vpop.xlane.xlu0 %2213
      %v2215 = vsel %vm1424, %v2087, -inf
      %2216 = vmax.xlane.f32.xlu0 %v2215
      %v2217 = vpop.xlane.xlu0 %2216
      %v2218 = vsel %vm1424, %v2090, -inf
      %2219 = vmax.xlane.f32.xlu0 %v2218
      %v2220 = vpop.xlane.xlu0 %2219
      %v2221 = vsel %vm1424, %v2174, -inf
      %2222 = vmax.xlane.f32.xlu0 %v2221
      %v2223 = vpop.xlane.xlu0 %2222
      %v2224 = vsel %vm1424, %v2177, -inf
      %2225 = vmax.xlane.f32.xlu0 %v2224
      %v2226 = vpop.xlane.xlu0 %2225
      %v2227 = vsel %vm1424, %v2180, -inf
      %2228 = vmax.xlane.f32.xlu0 %v2227
      %v2229 = vpop.xlane.xlu0 %2228
      %v2230 = vsel %vm1424, %v2183, -inf
      %2231 = vmax.xlane.f32.xlu0 %v2230
      %v2232 = vpop.xlane.xlu0 %2231
      %v2233 = vsel %vm1424, %v2186, -inf
      %2234 = vmax.xlane.f32.xlu0 %v2233
      %v2235 = vpop.xlane.xlu0 %2234
      %v2236 = vsel %vm1424, %v2189, -inf
      %2237 = vmax.xlane.f32.xlu0 %v2236
      %v2238 = vpop.xlane.xlu0 %2237
      %v2239 = vsel %vm1424, %v2192, -inf
      %2240 = vmax.xlane.f32.xlu0 %v2239
      %v2241 = vpop.xlane.xlu0 %2240
      %v2242 = vsel %vm1424, %v2195, -inf
      %2243 = vmax.xlane.f32.xlu0 %v2242
      %v2244 = vpop.xlane.xlu0 %2243
      %v2245 = vsub.f32 %v2069, %v2199
      %v2246 = vsub.f32 %v2072, %v2202
      %v2247 = vsub.f32 %v2075, %v2205
      %v2248 = vsub.f32 %v2078, %v2208
      %v2249 = vsub.f32 %v2081, %v2211
      %v2250 = vsub.f32 %v2084, %v2214
      %v2251 = vsub.f32 %v2087, %v2217
      %v2252 = vsub.f32 %v2090, %v2220
      %v2253 = vsub.f32 %v2174, %v2223
      %v2254 = vsub.f32 %v2177, %v2226
      %v2255 = vsub.f32 %v2180, %v2229
      %v2256 = vsub.f32 %v2183, %v2232
      %v2257 = vsub.f32 %v2186, %v2235
      %v2258 = vsub.f32 %v2189, %v2238
      %v2259 = vsub.f32 %v2192, %v2241
      %v2260 = vsub.f32 %v2195, %v2244
      %v2261 = vmul.f32 %v2245, 1.442695
      %v2262 = vpow.pop %v2261
      %v2263 = vmul.f32 %v2246, 1.442695
      %v2264 = vpow.pop %v2263
      %v2265 = vmul.f32 %v2247, 1.442695
      %v2266 = vpow.pop %v2265
      %v2267 = vmul.f32 %v2248, 1.442695
      %v2268 = vpow.pop %v2267
      %v2269 = vmul.f32 %v2249, 1.442695
      %v2270 = vpow.pop %v2269
      %v2271 = vmul.f32 %v2250, 1.442695
      %v2272 = vpow.pop %v2271
      %v2273 = vmul.f32 %v2251, 1.442695
      %v2274 = vpow.pop %v2273
      %v2275 = vmul.f32 %v2252, 1.442695
      %v2276 = vpow.pop %v2275
      %v2277 = vmul.f32 %v2253, 1.442695
      %v2278 = vpow.pop %v2277
      %v2279 = vmul.f32 %v2254, 1.442695
      %v2280 = vpow.pop %v2279
      %v2281 = vmul.f32 %v2255, 1.442695
      %v2282 = vpow.pop %v2281
      %v2283 = vmul.f32 %v2256, 1.442695
      %v2284 = vpow.pop %v2283
      %v2285 = vmul.f32 %v2257, 1.442695
      %v2286 = vpow.pop %v2285
      %v2287 = vmul.f32 %v2258, 1.442695
      %v2288 = vpow.pop %v2287
      %v2289 = vmul.f32 %v2259, 1.442695
      %v2290 = vpow.pop %v2289
      %v2291 = vmul.f32 %v2260, 1.442695
      %v2292 = vpow.pop %v2291
      %v2293 = vsel %vm1424, %v2262, 0.0
      %2294 = vadd.xlane.f32.xlu0 %v2293
      %v2295 = vpop.xlane.xlu0 %2294
      %v2296 = vsel %vm1424, %v2264, 0.0
      %2297 = vadd.xlane.f32.xlu0 %v2296
      %v2298 = vpop.xlane.xlu0 %2297
      %v2299 = vsel %vm1424, %v2266, 0.0
      %2300 = vadd.xlane.f32.xlu0 %v2299
      %v2301 = vpop.xlane.xlu0 %2300
      %v2302 = vsel %vm1424, %v2268, 0.0
      %2303 = vadd.xlane.f32.xlu0 %v2302
      %v2304 = vpop.xlane.xlu0 %2303
      %v2305 = vsel %vm1424, %v2270, 0.0
      %2306 = vadd.xlane.f32.xlu0 %v2305
      %v2307 = vpop.xlane.xlu0 %2306
      %v2308 = vsel %vm1424, %v2272, 0.0
      %2309 = vadd.xlane.f32.xlu0 %v2308
      %v2310 = vpop.xlane.xlu0 %2309
      %v2311 = vsel %vm1424, %v2274, 0.0
      %2312 = vadd.xlane.f32.xlu0 %v2311
      %v2313 = vpop.xlane.xlu0 %2312
      %v2314 = vsel %vm1424, %v2276, 0.0
      %2315 = vadd.xlane.f32.xlu0 %v2314
      %v2316 = vpop.xlane.xlu0 %2315
      %v2317 = vsel %vm1424, %v2278, 0.0
      %2318 = vadd.xlane.f32.xlu0 %v2317
      %v2319 = vpop.xlane.xlu0 %2318
      %v2320 = vsel %vm1424, %v2280, 0.0
      %2321 = vadd.xlane.f32.xlu0 %v2320
      %v2322 = vpop.xlane.xlu0 %2321
      %v2323 = vsel %vm1424, %v2282, 0.0
      %2324 = vadd.xlane.f32.xlu0 %v2323
      %v2325 = vpop.xlane.xlu0 %2324
      %v2326 = vsel %vm1424, %v2284, 0.0
      %2327 = vadd.xlane.f32.xlu0 %v2326
      %v2328 = vpop.xlane.xlu0 %2327
      %v2329 = vsel %vm1424, %v2286, 0.0
      %2330 = vadd.xlane.f32.xlu0 %v2329
      %v2331 = vpop.xlane.xlu0 %2330
      %v2332 = vsel %vm1424, %v2288, 0.0
      %2333 = vadd.xlane.f32.xlu0 %v2332
      %v2334 = vpop.xlane.xlu0 %2333
      %v2335 = vsel %vm1424, %v2290, 0.0
      %2336 = vadd.xlane.f32.xlu0 %v2335
      %v2337 = vpop.xlane.xlu0 %2336
      %v2338 = vsel %vm1424, %v2292, 0.0
      %2339 = vadd.xlane.f32.xlu0 %v2338
      %v2340 = vpop.xlane.xlu0 %2339
      %v2341 = vrcp.pop %v2295
      %v2342 = vmul.f32 %v2295, %v2341
      %v2343 = vsub.f32 1.0, %v2342
      %v2344 = vmul.f32 %v2341, %v2343
      %v2345 = vadd.f32 %v2341, %v2344
      %vm2346 = vweird.f32 %v2295
      %vm2347 = vweird.f32 %v2341
      %vm2348 = vmor %vm2346, %vm2347
      %v2349 = vsel %vm2348, %v2341, %v2345
      %v2350 = vand.u32 2147483647, %v2295
      %vm2351 = vcmp.eq.f32.partialorder %v2350, 8.507059e+37
      %v2352 = vand.u32 %v2295, 2147483648
      %v2353 = vor.u32 1.1754944e-38, %v2352
      %v2354 = vsel %vm2351, %v2353, %v2349
      %v2355 = vrcp.pop %v2298
      %v2356 = vmul.f32 %v2298, %v2355
      %v2357 = vsub.f32 1.0, %v2356
      %v2358 = vmul.f32 %v2355, %v2357
      %v2359 = vadd.f32 %v2355, %v2358
      %vm2360 = vweird.f32 %v2298
      %vm2361 = vweird.f32 %v2355
      %vm2362 = vmor %vm2360, %vm2361
      %v2363 = vsel %vm2362, %v2355, %v2359
      %v2364 = vand.u32 2147483647, %v2298
      %vm2365 = vcmp.eq.f32.partialorder %v2364, 8.507059e+37
      %v2366 = vand.u32 %v2298, 2147483648
      %v2367 = vor.u32 1.1754944e-38, %v2366
      %v2368 = vsel %vm2365, %v2367, %v2363
      %v2369 = vrcp.pop %v2301
      %v2370 = vmul.f32 %v2301, %v2369
      %v2371 = vsub.f32 1.0, %v2370
      %v2372 = vmul.f32 %v2369, %v2371
      %v2373 = vadd.f32 %v2369, %v2372
      %vm2374 = vweird.f32 %v2301
      %vm2375 = vweird.f32 %v2369
      %vm2376 = vmor %vm2374, %vm2375
      %v2377 = vsel %vm2376, %v2369, %v2373
      %v2378 = vand.u32 2147483647, %v2301
      %vm2379 = vcmp.eq.f32.partialorder %v2378, 8.507059e+37
      %v2380 = vand.u32 %v2301, 2147483648
      %v2381 = vor.u32 1.1754944e-38, %v2380
      %v2382 = vsel %vm2379, %v2381, %v2377
      %v2383 = vrcp.pop %v2304
      %v2384 = vmul.f32 %v2304, %v2383
      %v2385 = vsub.f32 1.0, %v2384
      %v2386 = vmul.f32 %v2383, %v2385
      %v2387 = vadd.f32 %v2383, %v2386
      %vm2388 = vweird.f32 %v2304
      %vm2389 = vweird.f32 %v2383
      %vm2390 = vmor %vm2388, %vm2389
      %v2391 = vsel %vm2390, %v2383, %v2387
      %v2392 = vand.u32 2147483647, %v2304
      %vm2393 = vcmp.eq.f32.partialorder %v2392, 8.507059e+37
      %v2394 = vand.u32 %v2304, 2147483648
      %v2395 = vor.u32 1.1754944e-38, %v2394
      %v2396 = vsel %vm2393, %v2395, %v2391
      %v2397 = vrcp.pop %v2307
      %v2398 = vmul.f32 %v2307, %v2397
      %v2399 = vsub.f32 1.0, %v2398
      %v2400 = vmul.f32 %v2397, %v2399
      %v2401 = vadd.f32 %v2397, %v2400
      %vm2402 = vweird.f32 %v2307
      %vm2403 = vweird.f32 %v2397
      %vm2404 = vmor %vm2402, %vm2403
      %v2405 = vsel %vm2404, %v2397, %v2401
      %v2406 = vand.u32 2147483647, %v2307
      %vm2407 = vcmp.eq.f32.partialorder %v2406, 8.507059e+37
      %v2408 = vand.u32 %v2307, 2147483648
      %v2409 = vor.u32 1.1754944e-38, %v2408
      %v2410 = vsel %vm2407, %v2409, %v2405
      %v2411 = vrcp.pop %v2310
      %v2412 = vmul.f32 %v2310, %v2411
      %v2413 = vsub.f32 1.0, %v2412
      %v2414 = vmul.f32 %v2411, %v2413
      %v2415 = vadd.f32 %v2411, %v2414
      %vm2416 = vweird.f32 %v2310
      %vm2417 = vweird.f32 %v2411
      %vm2418 = vmor %vm2416, %vm2417
      %v2419 = vsel %vm2418, %v2411, %v2415
      %v2420 = vand.u32 2147483647, %v2310
      %vm2421 = vcmp.eq.f32.partialorder %v2420, 8.507059e+37
      %v2422 = vand.u32 %v2310, 2147483648
      %v2423 = vor.u32 1.1754944e-38, %v2422
      %v2424 = vsel %vm2421, %v2423, %v2419
      %v2425 = vrcp.pop %v2313
      %v2426 = vmul.f32 %v2313, %v2425
      %v2427 = vsub.f32 1.0, %v2426
      %v2428 = vmul.f32 %v2425, %v2427
      %v2429 = vadd.f32 %v2425, %v2428
      %vm2430 = vweird.f32 %v2313
      %vm2431 = vweird.f32 %v2425
      %vm2432 = vmor %vm2430, %vm2431
      %v2433 = vsel %vm2432, %v2425, %v2429
      %v2434 = vand.u32 2147483647, %v2313
      %vm2435 = vcmp.eq.f32.partialorder %v2434, 8.507059e+37
      %v2436 = vand.u32 %v2313, 2147483648
      %v2437 = vor.u32 1.1754944e-38, %v2436
      %v2438 = vsel %vm2435, %v2437, %v2433
      %v2439 = vrcp.pop %v2316
      %v2440 = vmul.f32 %v2316, %v2439
      %v2441 = vsub.f32 1.0, %v2440
      %v2442 = vmul.f32 %v2439, %v2441
      %v2443 = vadd.f32 %v2439, %v2442
      %vm2444 = vweird.f32 %v2316
      %vm2445 = vweird.f32 %v2439
      %vm2446 = vmor %vm2444, %vm2445
      %v2447 = vsel %vm2446, %v2439, %v2443
      %v2448 = vand.u32 2147483647, %v2316
      %vm2449 = vcmp.eq.f32.partialorder %v2448, 8.507059e+37
      %v2450 = vand.u32 %v2316, 2147483648
      %v2451 = vor.u32 1.1754944e-38, %v2450
      %v2452 = vsel %vm2449, %v2451, %v2447
      %v2453 = vrcp.pop %v2319
      %v2454 = vmul.f32 %v2319, %v2453
      %v2455 = vsub.f32 1.0, %v2454
      %v2456 = vmul.f32 %v2453, %v2455
      %v2457 = vadd.f32 %v2453, %v2456
      %vm2458 = vweird.f32 %v2319
      %vm2459 = vweird.f32 %v2453
      %vm2460 = vmor %vm2458, %vm2459
      %v2461 = vsel %vm2460, %v2453, %v2457
      %v2462 = vand.u32 2147483647, %v2319
      %vm2463 = vcmp.eq.f32.partialorder %v2462, 8.507059e+37
      %v2464 = vand.u32 %v2319, 2147483648
      %v2465 = vor.u32 1.1754944e-38, %v2464
      %v2466 = vsel %vm2463, %v2465, %v2461
      %v2467 = vrcp.pop %v2322
      %v2468 = vmul.f32 %v2322, %v2467
      %v2469 = vsub.f32 1.0, %v2468
      %v2470 = vmul.f32 %v2467, %v2469
      %v2471 = vadd.f32 %v2467, %v2470
      %vm2472 = vweird.f32 %v2322
      %vm2473 = vweird.f32 %v2467
      %vm2474 = vmor %vm2472, %vm2473
      %v2475 = vsel %vm2474, %v2467, %v2471
      %v2476 = vand.u32 2147483647, %v2322
      %vm2477 = vcmp.eq.f32.partialorder %v2476, 8.507059e+37
      %v2478 = vand.u32 %v2322, 2147483648
      %v2479 = vor.u32 1.1754944e-38, %v2478
      %v2480 = vsel %vm2477, %v2479, %v2475
      %v2481 = vrcp.pop %v2325
      %v2482 = vmul.f32 %v2325, %v2481
      %v2483 = vsub.f32 1.0, %v2482
      %v2484 = vmul.f32 %v2481, %v2483
      %v2485 = vadd.f32 %v2481, %v2484
      %vm2486 = vweird.f32 %v2325
      %vm2487 = vweird.f32 %v2481
      %vm2488 = vmor %vm2486, %vm2487
      %v2489 = vsel %vm2488, %v2481, %v2485
      %v2490 = vand.u32 2147483647, %v2325
      %vm2491 = vcmp.eq.f32.partialorder %v2490, 8.507059e+37
      %v2492 = vand.u32 %v2325, 2147483648
      %v2493 = vor.u32 1.1754944e-38, %v2492
      %v2494 = vsel %vm2491, %v2493, %v2489
      %v2495 = vrcp.pop %v2328
      %v2496 = vmul.f32 %v2328, %v2495
      %v2497 = vsub.f32 1.0, %v2496
      %v2498 = vmul.f32 %v2495, %v2497
      %v2499 = vadd.f32 %v2495, %v2498
      %vm2500 = vweird.f32 %v2328
      %vm2501 = vweird.f32 %v2495
      %vm2502 = vmor %vm2500, %vm2501
      %v2503 = vsel %vm2502, %v2495, %v2499
      %v2504 = vand.u32 2147483647, %v2328
      %vm2505 = vcmp.eq.f32.partialorder %v2504, 8.507059e+37
      %v2506 = vand.u32 %v2328, 2147483648
      %v2507 = vor.u32 1.1754944e-38, %v2506
      %v2508 = vsel %vm2505, %v2507, %v2503
      %v2509 = vrcp.pop %v2331
      %v2510 = vmul.f32 %v2331, %v2509
      %v2511 = vsub.f32 1.0, %v2510
      %v2512 = vmul.f32 %v2509, %v2511
      %v2513 = vadd.f32 %v2509, %v2512
      %vm2514 = vweird.f32 %v2331
      %vm2515 = vweird.f32 %v2509
      %vm2516 = vmor %vm2514, %vm2515
      %v2517 = vsel %vm2516, %v2509, %v2513
      %v2518 = vand.u32 2147483647, %v2331
      %vm2519 = vcmp.eq.f32.partialorder %v2518, 8.507059e+37
      %v2520 = vand.u32 %v2331, 2147483648
      %v2521 = vor.u32 1.1754944e-38, %v2520
      %v2522 = vsel %vm2519, %v2521, %v2517
      %v2523 = vrcp.pop %v2334
      %v2524 = vmul.f32 %v2334, %v2523
      %v2525 = vsub.f32 1.0, %v2524
      %v2526 = vmul.f32 %v2523, %v2525
      %v2527 = vadd.f32 %v2523, %v2526
      %vm2528 = vweird.f32 %v2334
      %vm2529 = vweird.f32 %v2523
      %vm2530 = vmor %vm2528, %vm2529
      %v2531 = vsel %vm2530, %v2523, %v2527
      %v2532 = vand.u32 2147483647, %v2334
      %vm2533 = vcmp.eq.f32.partialorder %v2532, 8.507059e+37
      %v2534 = vand.u32 %v2334, 2147483648
      %v2535 = vor.u32 1.1754944e-38, %v2534
      %v2536 = vsel %vm2533, %v2535, %v2531
      %v2537 = vrcp.pop %v2337
      %v2538 = vmul.f32 %v2337, %v2537
      %v2539 = vsub.f32 1.0, %v2538
      %v2540 = vmul.f32 %v2537, %v2539
      %v2541 = vadd.f32 %v2537, %v2540
      %vm2542 = vweird.f32 %v2337
      %vm2543 = vweird.f32 %v2537
      %vm2544 = vmor %vm2542, %vm2543
      %v2545 = vsel %vm2544, %v2537, %v2541
      %v2546 = vand.u32 2147483647, %v2337
      %vm2547 = vcmp.eq.f32.partialorder %v2546, 8.507059e+37
      %v2548 = vand.u32 %v2337, 2147483648
      %v2549 = vor.u32 1.1754944e-38, %v2548
      %v2550 = vsel %vm2547, %v2549, %v2545
      %v2551 = vrcp.pop %v2340
      %v2552 = vmul.f32 %v2340, %v2551
      %v2553 = vsub.f32 1.0, %v2552
      %v2554 = vmul.f32 %v2551, %v2553
      %v2555 = vadd.f32 %v2551, %v2554
      %vm2556 = vweird.f32 %v2340
      %vm2557 = vweird.f32 %v2551
      %vm2558 = vmor %vm2556, %vm2557
      %v2559 = vsel %vm2558, %v2551, %v2555
      %v2560 = vand.u32 2147483647, %v2340
      %vm2561 = vcmp.eq.f32.partialorder %v2560, 8.507059e+37
      %v2562 = vand.u32 %v2340, 2147483648
      %v2563 = vor.u32 1.1754944e-38, %v2562
      %v2564 = vsel %vm2561, %v2563, %v2559
      %v2565 = vmul.f32 %v2262, %v2354
      %v2566 = vmul.f32 %v2264, %v2368
      %v2567 = vmul.f32 %v2266, %v2382
      %v2568 = vmul.f32 %v2268, %v2396
      %v2569 = vmul.f32 %v2270, %v2410
      %v2570 = vmul.f32 %v2272, %v2424
      %v2571 = vmul.f32 %v2274, %v2438
      %v2572 = vmul.f32 %v2276, %v2452
      %v2573 = vmul.f32 %v2278, %v2466
      %v2574 = vmul.f32 %v2280, %v2480
      %v2575 = vmul.f32 %v2282, %v2494
      %v2576 = vmul.f32 %v2284, %v2508
      %v2577 = vmul.f32 %v2286, %v2522
      %v2578 = vmul.f32 %v2288, %v2536
      %v2579 = vmul.f32 %v2290, %v2550
      %v2580 = vmul.f32 %v2292, %v2564
      %2581 = vrot.lane.b32.xlu0 %v1182, 56
      %v2582 = vpop.permute.xlu0 %2581
      %2583 = vrot.lane.b32.xlu0 %v1185, 56
      %v2584 = vpop.permute.xlu0 %2583
      %2585 = vrot.lane.b32.xlu0 %v1188, 56
      %v2586 = vpop.permute.xlu0 %2585
      %2587 = vrot.lane.b32.xlu0 %v1191, 56
      %v2588 = vpop.permute.xlu0 %2587
      %2589 = vrot.lane.b32.xlu0 %v1194, 56
      %v2590 = vpop.permute.xlu0 %2589
      %2591 = vrot.lane.b32.xlu0 %v1197, 56
      %v2592 = vpop.permute.xlu0 %2591
      %2593 = vrot.lane.b32.xlu0 %v1200, 56
      %v2594 = vpop.permute.xlu0 %2593
      %2595 = vrot.lane.b32.xlu0 %v1203, 56
      %v2596 = vpop.permute.xlu0 %2595
      %v2606 = vsel %vm1424, %v2565, 0
      %v2609 = vsel %vm1424, %v2566, 0
      %v2612 = vsel %vm1424, %v2567, 0
      %v2615 = vsel %vm1424, %v2568, 0
      %v2618 = vsel %vm1424, %v2569, 0
      %v2621 = vsel %vm1424, %v2570, 0
      %v2624 = vsel %vm1424, %v2571, 0
      %v2627 = vsel %vm1424, %v2572, 0
      %2629 = vmatpush.msra.mxu0 0.0
      %2630 = vmatpush.msra.mxu0 0.0
      %2631 = vmatpush.msra.mxu0 0.0
      %2632 = vmatpush.msra.mxu0 0.0
      %2633 = vmatpush.msra.mxu0 0.0
      %2634 = vmatpush.msra.mxu0 0.0
      %2635 = vmatpush.msra.mxu0 0.0
      %2636 = vmatpush.msra.mxu0 0.0
      %2637 = vmatpush.msra.mxu0 %v2596
      %2638 = vmatpush.msra.mxu0 %v2594
      %2639 = vmatpush.msra.mxu0 %v2592
      %2640 = vmatpush.msra.mxu0 %v2590
      %2641 = vmatpush.msra.mxu0 %v2588
      %2642 = vmatpush.msra.mxu0 %v2586
      %2643 = vmatpush.msra.mxu0 %v2584
      %2644 = vmatpush.msra.mxu0 %v2582
      %2645 = vmatmul.f32.gmra.mxu0 %v2606
      %v2646 = vpop.f32.mrf.mxu0
      %v2647 = vadd.f32 0.0, %v2646
      %2648 = vmatmul.f32.gmra.mxu0 %v2609
      %v2649 = vpop.f32.mrf.mxu0
      %v2650 = vadd.f32 0.0, %v2649
      %2651 = vmatmul.f32.gmra.mxu0 %v2612
      %v2652 = vpop.f32.mrf.mxu0
      %v2653 = vadd.f32 0.0, %v2652
      %2654 = vmatmul.f32.gmra.mxu0 %v2615
      %v2655 = vpop.f32.mrf.mxu0
      %v2656 = vadd.f32 0.0, %v2655
      %2657 = vmatmul.f32.gmra.mxu0 %v2618
      %v2658 = vpop.f32.mrf.mxu0
      %v2659 = vadd.f32 0.0, %v2658
      %2660 = vmatmul.f32.gmra.mxu0 %v2621
      %v2661 = vpop.f32.mrf.mxu0
      %v2662 = vadd.f32 0.0, %v2661
      %2663 = vmatmul.f32.gmra.mxu0 %v2624
      %v2664 = vpop.f32.mrf.mxu0
      %v2665 = vadd.f32 0.0, %v2664
      %2666 = vmatmul.f32.gmra.mxu0 %v2627
      %v2667 = vpop.f32.mrf.mxu0
      %v2668 = vadd.f32 0.0, %v2667
      %2669 = vdwg.mxu0
      %2670 = vrot.lane.b32.xlu0 %v1206, 56
      %v2671 = vpop.permute.xlu0 %2670
      %2672 = vrot.lane.b32.xlu0 %v1209, 56
      %v2673 = vpop.permute.xlu0 %2672
      %2674 = vrot.lane.b32.xlu0 %v1212, 56
      %v2675 = vpop.permute.xlu0 %2674
      %2676 = vrot.lane.b32.xlu0 %v1215, 56
      %v2677 = vpop.permute.xlu0 %2676
      %2678 = vrot.lane.b32.xlu0 %v1218, 56
      %v2679 = vpop.permute.xlu0 %2678
      %2680 = vrot.lane.b32.xlu0 %v1221, 56
      %v2681 = vpop.permute.xlu0 %2680
      %2682 = vrot.lane.b32.xlu0 %v1224, 56
      %v2683 = vpop.permute.xlu0 %2682
      %2684 = vrot.lane.b32.xlu0 %v1227, 56
      %v2685 = vpop.permute.xlu0 %2684
      %v2695 = vsel %vm1424, %v2573, 0
      %v2698 = vsel %vm1424, %v2574, 0
      %v2701 = vsel %vm1424, %v2575, 0
      %v2704 = vsel %vm1424, %v2576, 0
      %v2707 = vsel %vm1424, %v2577, 0
      %v2710 = vsel %vm1424, %v2578, 0
      %v2713 = vsel %vm1424, %v2579, 0
      %v2716 = vsel %vm1424, %v2580, 0
      %2718 = vmatpush.msra.mxu0 0.0
      %2719 = vmatpush.msra.mxu0 0.0
      %2720 = vmatpush.msra.mxu0 0.0
      %2721 = vmatpush.msra.mxu0 0.0
      %2722 = vmatpush.msra.mxu0 0.0
      %2723 = vmatpush.msra.mxu0 0.0
      %2724 = vmatpush.msra.mxu0 0.0
      %2725 = vmatpush.msra.mxu0 0.0
      %2726 = vmatpush.msra.mxu0 %v2685
      %2727 = vmatpush.msra.mxu0 %v2683
      %2728 = vmatpush.msra.mxu0 %v2681
      %2729 = vmatpush.msra.mxu0 %v2679
      %2730 = vmatpush.msra.mxu0 %v2677
      %2731 = vmatpush.msra.mxu0 %v2675
      %2732 = vmatpush.msra.mxu0 %v2673
      %2733 = vmatpush.msra.mxu0 %v2671
      %2734 = vmatmul.f32.gmra.mxu0 %v2695
      %v2735 = vpop.f32.mrf.mxu0
      %v2736 = vadd.f32 0.0, %v2735
      %2737 = vmatmul.f32.gmra.mxu0 %v2698
      %v2738 = vpop.f32.mrf.mxu0
      %v2739 = vadd.f32 0.0, %v2738
      %2740 = vmatmul.f32.gmra.mxu0 %v2701
      %v2741 = vpop.f32.mrf.mxu0
      %v2742 = vadd.f32 0.0, %v2741
      %2743 = vmatmul.f32.gmra.mxu0 %v2704
      %v2744 = vpop.f32.mrf.mxu0
      %v2745 = vadd.f32 0.0, %v2744
      %2746 = vmatmul.f32.gmra.mxu0 %v2707
      %v2747 = vpop.f32.mrf.mxu0
      %v2748 = vadd.f32 0.0, %v2747
      %2749 = vmatmul.f32.gmra.mxu0 %v2710
      %v2750 = vpop.f32.mrf.mxu0
      %v2751 = vadd.f32 0.0, %v2750
      %2752 = vmatmul.f32.gmra.mxu0 %v2713
      %v2753 = vpop.f32.mrf.mxu0
      %v2754 = vadd.f32 0.0, %v2753
      %2755 = vmatmul.f32.gmra.mxu0 %v2716
      %v2756 = vpop.f32.mrf.mxu0
      %v2757 = vadd.f32 0.0, %v2756
      %2758 = vdwg.mxu0
      %2759 = vrot.lane.b32.xlu0 %v1182, 112
      %v2760 = vpop.permute.xlu0 %2759
      %2761 = vrot.lane.b32.xlu0 %v1185, 112
      %v2762 = vpop.permute.xlu0 %2761
      %2763 = vrot.lane.b32.xlu0 %v1188, 112
      %v2764 = vpop.permute.xlu0 %2763
      %2765 = vrot.lane.b32.xlu0 %v1191, 112
      %v2766 = vpop.permute.xlu0 %2765
      %2767 = vrot.lane.b32.xlu0 %v1194, 112
      %v2768 = vpop.permute.xlu0 %2767
      %2769 = vrot.lane.b32.xlu0 %v1197, 112
      %v2770 = vpop.permute.xlu0 %2769
      %2771 = vrot.lane.b32.xlu0 %v1200, 112
      %v2772 = vpop.permute.xlu0 %2771
      %2773 = vrot.lane.b32.xlu0 %v1203, 112
      %v2774 = vpop.permute.xlu0 %2773
      %2775 = vrot.lane.b32.xlu0 %v1182, 80
      %v2776 = vpop.permute.xlu0 %2775
      %2777 = vrot.lane.b32.xlu0 %v1185, 80
      %v2778 = vpop.permute.xlu0 %2777
      %2779 = vrot.lane.b32.xlu0 %v1188, 80
      %v2780 = vpop.permute.xlu0 %2779
      %2781 = vrot.lane.b32.xlu0 %v1191, 80
      %v2782 = vpop.permute.xlu0 %2781
      %2783 = vrot.lane.b32.xlu0 %v1194, 80
      %v2784 = vpop.permute.xlu0 %2783
      %2785 = vrot.lane.b32.xlu0 %v1197, 80
      %v2786 = vpop.permute.xlu0 %2785
      %2787 = vrot.lane.b32.xlu0 %v1200, 80
      %v2788 = vpop.permute.xlu0 %2787
      %2789 = vrot.lane.b32.xlu0 %v1203, 80
      %v2790 = vpop.permute.xlu0 %2789
      %v2791 = vsel %vm1253, %v2760, 0
      %v2793 = vsel %vm1253, %v2762, 0
      %v2795 = vsel %vm1253, %v2764, 0
      %v2797 = vsel %vm1253, %v2766, 0
      %v2799 = vsel %vm1253, %v2768, 0
      %v2801 = vsel %vm1253, %v2770, 0
      %v2803 = vsel %vm1253, %v2772, 0
      %v2805 = vsel %vm1253, %v2774, 0
      %v2807 = vsel %vm1253, %v2776, 0
      %v2809 = vsel %vm1253, %v2778, 0
      %v2811 = vsel %vm1253, %v2780, 0
      %v2813 = vsel %vm1253, %v2782, 0
      %v2815 = vsel %vm1253, %v2784, 0
      %v2817 = vsel %vm1253, %v2786, 0
      %v2819 = vsel %vm1253, %v2788, 0
      %v2821 = vsel %vm1253, %v2790, 0
      %2823 = vmatpush.xpose.msra.mxu0 0.0
      %2824 = vmatpush.xpose.msra.mxu0 0.0
      %2825 = vmatpush.xpose.msra.mxu0 0.0
      %2826 = vmatpush.xpose.msra.mxu0 0.0
      %2827 = vmatpush.xpose.msra.mxu0 0.0
      %2828 = vmatpush.xpose.msra.mxu0 0.0
      %2829 = vmatpush.xpose.msra.mxu0 0.0
      %2830 = vmatpush.xpose.msra.mxu0 0.0
      %2831 = vmatpush.xpose.msra.mxu0 %v2821
      %2832 = vmatpush.xpose.msra.mxu0 %v2819
      %2833 = vmatpush.xpose.msra.mxu0 %v2817
      %2834 = vmatpush.xpose.msra.mxu0 %v2815
      %2835 = vmatpush.xpose.msra.mxu0 %v2813
      %2836 = vmatpush.xpose.msra.mxu0 %v2811
      %2837 = vmatpush.xpose.msra.mxu0 %v2809
      %2838 = vmatpush.xpose.msra.mxu0 %v2807
      %2839 = vmatmul.f32.gmra.mxu0 %v2791
      %v2840 = vpop.f32.mrf.mxu0
      %v2841 = vadd.f32 0.0, %v2840
      %2842 = vmatmul.f32.gmra.mxu0 %v2793
      %v2843 = vpop.f32.mrf.mxu0
      %v2844 = vadd.f32 0.0, %v2843
      %2845 = vmatmul.f32.gmra.mxu0 %v2795
      %v2846 = vpop.f32.mrf.mxu0
      %v2847 = vadd.f32 0.0, %v2846
      %2848 = vmatmul.f32.gmra.mxu0 %v2797
      %v2849 = vpop.f32.mrf.mxu0
      %v2850 = vadd.f32 0.0, %v2849
      %2851 = vmatmul.f32.gmra.mxu0 %v2799
      %v2852 = vpop.f32.mrf.mxu0
      %v2853 = vadd.f32 0.0, %v2852
      %2854 = vmatmul.f32.gmra.mxu0 %v2801
      %v2855 = vpop.f32.mrf.mxu0
      %v2856 = vadd.f32 0.0, %v2855
      %2857 = vmatmul.f32.gmra.mxu0 %v2803
      %v2858 = vpop.f32.mrf.mxu0
      %v2859 = vadd.f32 0.0, %v2858
      %2860 = vmatmul.f32.gmra.mxu0 %v2805
      %v2861 = vpop.f32.mrf.mxu0
      %v2862 = vadd.f32 0.0, %v2861
      %2863 = vdwg.mxu0
      %2864 = vrot.lane.b32.xlu0 %v1206, 112
      %v2865 = vpop.permute.xlu0 %2864
      %2866 = vrot.lane.b32.xlu0 %v1209, 112
      %v2867 = vpop.permute.xlu0 %2866
      %2868 = vrot.lane.b32.xlu0 %v1212, 112
      %v2869 = vpop.permute.xlu0 %2868
      %2870 = vrot.lane.b32.xlu0 %v1215, 112
      %v2871 = vpop.permute.xlu0 %2870
      %2872 = vrot.lane.b32.xlu0 %v1218, 112
      %v2873 = vpop.permute.xlu0 %2872
      %2874 = vrot.lane.b32.xlu0 %v1221, 112
      %v2875 = vpop.permute.xlu0 %2874
      %2876 = vrot.lane.b32.xlu0 %v1224, 112
      %v2877 = vpop.permute.xlu0 %2876
      %2878 = vrot.lane.b32.xlu0 %v1227, 112
      %v2879 = vpop.permute.xlu0 %2878
      %2880 = vrot.lane.b32.xlu0 %v1206, 80
      %v2881 = vpop.permute.xlu0 %2880
      %2882 = vrot.lane.b32.xlu0 %v1209, 80
      %v2883 = vpop.permute.xlu0 %2882
      %2884 = vrot.lane.b32.xlu0 %v1212, 80
      %v2885 = vpop.permute.xlu0 %2884
      %2886 = vrot.lane.b32.xlu0 %v1215, 80
      %v2887 = vpop.permute.xlu0 %2886
      %2888 = vrot.lane.b32.xlu0 %v1218, 80
      %v2889 = vpop.permute.xlu0 %2888
      %2890 = vrot.lane.b32.xlu0 %v1221, 80
      %v2891 = vpop.permute.xlu0 %2890
      %2892 = vrot.lane.b32.xlu0 %v1224, 80
      %v2893 = vpop.permute.xlu0 %2892
      %2894 = vrot.lane.b32.xlu0 %v1227, 80
      %v2895 = vpop.permute.xlu0 %2894
      %v2896 = vsel %vm1253, %v2865, 0
      %v2898 = vsel %vm1253, %v2867, 0
      %v2900 = vsel %vm1253, %v2869, 0
      %v2902 = vsel %vm1253, %v2871, 0
      %v2904 = vsel %vm1253, %v2873, 0
      %v2906 = vsel %vm1253, %v2875, 0
      %v2908 = vsel %vm1253, %v2877, 0
      %v2910 = vsel %vm1253, %v2879, 0
      %v2912 = vsel %vm1253, %v2881, 0
      %v2914 = vsel %vm1253, %v2883, 0
      %v2916 = vsel %vm1253, %v2885, 0
      %v2918 = vsel %vm1253, %v2887, 0
      %v2920 = vsel %vm1253, %v2889, 0
      %v2922 = vsel %vm1253, %v2891, 0
      %v2924 = vsel %vm1253, %v2893, 0
      %v2926 = vsel %vm1253, %v2895, 0
      %2928 = vmatpush.xpose.msra.mxu0 0.0
      %2929 = vmatpush.xpose.msra.mxu0 0.0
      %2930 = vmatpush.xpose.msra.mxu0 0.0
      %2931 = vmatpush.xpose.msra.mxu0 0.0
      %2932 = vmatpush.xpose.msra.mxu0 0.0
      %2933 = vmatpush.xpose.msra.mxu0 0.0
      %2934 = vmatpush.xpose.msra.mxu0 0.0
      %2935 = vmatpush.xpose.msra.mxu0 0.0
      %2936 = vmatpush.xpose.msra.mxu0 %v2926
      %2937 = vmatpush.xpose.msra.mxu0 %v2924
      %2938 = vmatpush.xpose.msra.mxu0 %v2922
      %2939 = vmatpush.xpose.msra.mxu0 %v2920
      %2940 = vmatpush.xpose.msra.mxu0 %v2918
      %2941 = vmatpush.xpose.msra.mxu0 %v2916
      %2942 = vmatpush.xpose.msra.mxu0 %v2914
      %2943 = vmatpush.xpose.msra.mxu0 %v2912
      %2944 = vmatmul.f32.gmra.mxu0 %v2896
      %v2945 = vpop.f32.mrf.mxu0
      %v2946 = vadd.f32 0.0, %v2945
      %2947 = vmatmul.f32.gmra.mxu0 %v2898
      %v2948 = vpop.f32.mrf.mxu0
      %v2949 = vadd.f32 0.0, %v2948
      %2950 = vmatmul.f32.gmra.mxu0 %v2900
      %v2951 = vpop.f32.mrf.mxu0
      %v2952 = vadd.f32 0.0, %v2951
      %2953 = vmatmul.f32.gmra.mxu0 %v2902
      %v2954 = vpop.f32.mrf.mxu0
      %v2955 = vadd.f32 0.0, %v2954
      %2956 = vmatmul.f32.gmra.mxu0 %v2904
      %v2957 = vpop.f32.mrf.mxu0
      %v2958 = vadd.f32 0.0, %v2957
      %2959 = vmatmul.f32.gmra.mxu0 %v2906
      %v2960 = vpop.f32.mrf.mxu0
      %v2961 = vadd.f32 0.0, %v2960
      %2962 = vmatmul.f32.gmra.mxu0 %v2908
      %v2963 = vpop.f32.mrf.mxu0
      %v2964 = vadd.f32 0.0, %v2963
      %2965 = vmatmul.f32.gmra.mxu0 %v2910
      %v2966 = vpop.f32.mrf.mxu0
      %v2967 = vadd.f32 0.0, %v2966
      %2968 = vdwg.mxu0
      %v2969 = vsel %vm1424, %v2841, -inf
      %2970 = vmax.xlane.f32.xlu0 %v2969
      %v2971 = vpop.xlane.xlu0 %2970
      %v2972 = vsel %vm1424, %v2844, -inf
      %2973 = vmax.xlane.f32.xlu0 %v2972
      %v2974 = vpop.xlane.xlu0 %2973
      %v2975 = vsel %vm1424, %v2847, -inf
      %2976 = vmax.xlane.f32.xlu0 %v2975
      %v2977 = vpop.xlane.xlu0 %2976
      %v2978 = vsel %vm1424, %v2850, -inf
      %2979 = vmax.xlane.f32.xlu0 %v2978
      %v2980 = vpop.xlane.xlu0 %2979
      %v2981 = vsel %vm1424, %v2853, -inf
      %2982 = vmax.xlane.f32.xlu0 %v2981
      %v2983 = vpop.xlane.xlu0 %2982
      %v2984 = vsel %vm1424, %v2856, -inf
      %2985 = vmax.xlane.f32.xlu0 %v2984
      %v2986 = vpop.xlane.xlu0 %2985
      %v2987 = vsel %vm1424, %v2859, -inf
      %2988 = vmax.xlane.f32.xlu0 %v2987
      %v2989 = vpop.xlane.xlu0 %2988
      %v2990 = vsel %vm1424, %v2862, -inf
      %2991 = vmax.xlane.f32.xlu0 %v2990
      %v2992 = vpop.xlane.xlu0 %2991
      %v2993 = vsel %vm1424, %v2946, -inf
      %2994 = vmax.xlane.f32.xlu0 %v2993
      %v2995 = vpop.xlane.xlu0 %2994
      %v2996 = vsel %vm1424, %v2949, -inf
      %2997 = vmax.xlane.f32.xlu0 %v2996
      %v2998 = vpop.xlane.xlu0 %2997
      %v2999 = vsel %vm1424, %v2952, -inf
      %3000 = vmax.xlane.f32.xlu0 %v2999
      %v3001 = vpop.xlane.xlu0 %3000
      %v3002 = vsel %vm1424, %v2955, -inf
      %3003 = vmax.xlane.f32.xlu0 %v3002
      %v3004 = vpop.xlane.xlu0 %3003
      %v3005 = vsel %vm1424, %v2958, -inf
      %3006 = vmax.xlane.f32.xlu0 %v3005
      %v3007 = vpop.xlane.xlu0 %3006
      %v3008 = vsel %vm1424, %v2961, -inf
      %3009 = vmax.xlane.f32.xlu0 %v3008
      %v3010 = vpop.xlane.xlu0 %3009
      %v3011 = vsel %vm1424, %v2964, -inf
      %3012 = vmax.xlane.f32.xlu0 %v3011
      %v3013 = vpop.xlane.xlu0 %3012
      %v3014 = vsel %vm1424, %v2967, -inf
      %3015 = vmax.xlane.f32.xlu0 %v3014
      %v3016 = vpop.xlane.xlu0 %3015
      %v3017 = vsub.f32 %v2841, %v2971
      %v3018 = vsub.f32 %v2844, %v2974
      %v3019 = vsub.f32 %v2847, %v2977
      %v3020 = vsub.f32 %v2850, %v2980
      %v3021 = vsub.f32 %v2853, %v2983
      %v3022 = vsub.f32 %v2856, %v2986
      %v3023 = vsub.f32 %v2859, %v2989
      %v3024 = vsub.f32 %v2862, %v2992
      %v3025 = vsub.f32 %v2946, %v2995
      %v3026 = vsub.f32 %v2949, %v2998
      %v3027 = vsub.f32 %v2952, %v3001
      %v3028 = vsub.f32 %v2955, %v3004
      %v3029 = vsub.f32 %v2958, %v3007
      %v3030 = vsub.f32 %v2961, %v3010
      %v3031 = vsub.f32 %v2964, %v3013
      %v3032 = vsub.f32 %v2967, %v3016
      %v3033 = vmul.f32 %v3017, 1.442695
      %v3034 = vpow.pop %v3033
      %v3035 = vmul.f32 %v3018, 1.442695
      %v3036 = vpow.pop %v3035
      %v3037 = vmul.f32 %v3019, 1.442695
      %v3038 = vpow.pop %v3037
      %v3039 = vmul.f32 %v3020, 1.442695
      %v3040 = vpow.pop %v3039
      %v3041 = vmul.f32 %v3021, 1.442695
      %v3042 = vpow.pop %v3041
      %v3043 = vmul.f32 %v3022, 1.442695
      %v3044 = vpow.pop %v3043
      %v3045 = vmul.f32 %v3023, 1.442695
      %v3046 = vpow.pop %v3045
      %v3047 = vmul.f32 %v3024, 1.442695
      %v3048 = vpow.pop %v3047
      %v3049 = vmul.f32 %v3025, 1.442695
      %v3050 = vpow.pop %v3049
      %v3051 = vmul.f32 %v3026, 1.442695
      %v3052 = vpow.pop %v3051
      %v3053 = vmul.f32 %v3027, 1.442695
      %v3054 = vpow.pop %v3053
      %v3055 = vmul.f32 %v3028, 1.442695
      %v3056 = vpow.pop %v3055
      %v3057 = vmul.f32 %v3029, 1.442695
      %v3058 = vpow.pop %v3057
      %v3059 = vmul.f32 %v3030, 1.442695
      %v3060 = vpow.pop %v3059
      %v3061 = vmul.f32 %v3031, 1.442695
      %v3062 = vpow.pop %v3061
      %v3063 = vmul.f32 %v3032, 1.442695
      %v3064 = vpow.pop %v3063
      %v3065 = vsel %vm1424, %v3034, 0.0
      %3066 = vadd.xlane.f32.xlu0 %v3065
      %v3067 = vpop.xlane.xlu0 %3066
      %v3068 = vsel %vm1424, %v3036, 0.0
      %3069 = vadd.xlane.f32.xlu0 %v3068
      %v3070 = vpop.xlane.xlu0 %3069
      %v3071 = vsel %vm1424, %v3038, 0.0
      %3072 = vadd.xlane.f32.xlu0 %v3071
      %v3073 = vpop.xlane.xlu0 %3072
      %v3074 = vsel %vm1424, %v3040, 0.0
      %3075 = vadd.xlane.f32.xlu0 %v3074
      %v3076 = vpop.xlane.xlu0 %3075
      %v3077 = vsel %vm1424, %v3042, 0.0
      %3078 = vadd.xlane.f32.xlu0 %v3077
      %v3079 = vpop.xlane.xlu0 %3078
      %v3080 = vsel %vm1424, %v3044, 0.0
      %3081 = vadd.xlane.f32.xlu0 %v3080
      %v3082 = vpop.xlane.xlu0 %3081
      %v3083 = vsel %vm1424, %v3046, 0.0
      %3084 = vadd.xlane.f32.xlu0 %v3083
      %v3085 = vpop.xlane.xlu0 %3084
      %v3086 = vsel %vm1424, %v3048, 0.0
      %3087 = vadd.xlane.f32.xlu0 %v3086
      %v3088 = vpop.xlane.xlu0 %3087
      %v3089 = vsel %vm1424, %v3050, 0.0
      %3090 = vadd.xlane.f32.xlu0 %v3089
      %v3091 = vpop.xlane.xlu0 %3090
      %v3092 = vsel %vm1424, %v3052, 0.0
      %3093 = vadd.xlane.f32.xlu0 %v3092
      %v3094 = vpop.xlane.xlu0 %3093
      %v3095 = vsel %vm1424, %v3054, 0.0
      %3096 = vadd.xlane.f32.xlu0 %v3095
      %v3097 = vpop.xlane.xlu0 %3096
      %v3098 = vsel %vm1424, %v3056, 0.0
      %3099 = vadd.xlane.f32.xlu0 %v3098
      %v3100 = vpop.xlane.xlu0 %3099
      %v3101 = vsel %vm1424, %v3058, 0.0
      %3102 = vadd.xlane.f32.xlu0 %v3101
      %v3103 = vpop.xlane.xlu0 %3102
      %v3104 = vsel %vm1424, %v3060, 0.0
      %3105 = vadd.xlane.f32.xlu0 %v3104
      %v3106 = vpop.xlane.xlu0 %3105
      %v3107 = vsel %vm1424, %v3062, 0.0
      %3108 = vadd.xlane.f32.xlu0 %v3107
      %v3109 = vpop.xlane.xlu0 %3108
      %v3110 = vsel %vm1424, %v3064, 0.0
      %3111 = vadd.xlane.f32.xlu0 %v3110
      %v3112 = vpop.xlane.xlu0 %3111
      %v3113 = vrcp.pop %v3067
      %v3114 = vmul.f32 %v3067, %v3113
      %v3115 = vsub.f32 1.0, %v3114
      %v3116 = vmul.f32 %v3113, %v3115
      %v3117 = vadd.f32 %v3113, %v3116
      %vm3118 = vweird.f32 %v3067
      %vm3119 = vweird.f32 %v3113
      %vm3120 = vmor %vm3118, %vm3119
      %v3121 = vsel %vm3120, %v3113, %v3117
      %v3122 = vand.u32 2147483647, %v3067
      %vm3123 = vcmp.eq.f32.partialorder %v3122, 8.507059e+37
      %v3124 = vand.u32 %v3067, 2147483648
      %v3125 = vor.u32 1.1754944e-38, %v3124
      %v3126 = vsel %vm3123, %v3125, %v3121
      %v3127 = vrcp.pop %v3070
      %v3128 = vmul.f32 %v3070, %v3127
      %v3129 = vsub.f32 1.0, %v3128
      %v3130 = vmul.f32 %v3127, %v3129
      %v3131 = vadd.f32 %v3127, %v3130
      %vm3132 = vweird.f32 %v3070
      %vm3133 = vweird.f32 %v3127
      %vm3134 = vmor %vm3132, %vm3133
      %v3135 = vsel %vm3134, %v3127, %v3131
      %v3136 = vand.u32 2147483647, %v3070
      %vm3137 = vcmp.eq.f32.partialorder %v3136, 8.507059e+37
      %v3138 = vand.u32 %v3070, 2147483648
      %v3139 = vor.u32 1.1754944e-38, %v3138
      %v3140 = vsel %vm3137, %v3139, %v3135
      %v3141 = vrcp.pop %v3073
      %v3142 = vmul.f32 %v3073, %v3141
      %v3143 = vsub.f32 1.0, %v3142
      %v3144 = vmul.f32 %v3141, %v3143
      %v3145 = vadd.f32 %v3141, %v3144
      %vm3146 = vweird.f32 %v3073
      %vm3147 = vweird.f32 %v3141
      %vm3148 = vmor %vm3146, %vm3147
      %v3149 = vsel %vm3148, %v3141, %v3145
      %v3150 = vand.u32 2147483647, %v3073
      %vm3151 = vcmp.eq.f32.partialorder %v3150, 8.507059e+37
      %v3152 = vand.u32 %v3073, 2147483648
      %v3153 = vor.u32 1.1754944e-38, %v3152
      %v3154 = vsel %vm3151, %v3153, %v3149
      %v3155 = vrcp.pop %v3076
      %v3156 = vmul.f32 %v3076, %v3155
      %v3157 = vsub.f32 1.0, %v3156
      %v3158 = vmul.f32 %v3155, %v3157
      %v3159 = vadd.f32 %v3155, %v3158
      %vm3160 = vweird.f32 %v3076
      %vm3161 = vweird.f32 %v3155
      %vm3162 = vmor %vm3160, %vm3161
      %v3163 = vsel %vm3162, %v3155, %v3159
      %v3164 = vand.u32 2147483647, %v3076
      %vm3165 = vcmp.eq.f32.partialorder %v3164, 8.507059e+37
      %v3166 = vand.u32 %v3076, 2147483648
      %v3167 = vor.u32 1.1754944e-38, %v3166
      %v3168 = vsel %vm3165, %v3167, %v3163
      %v3169 = vrcp.pop %v3079
      %v3170 = vmul.f32 %v3079, %v3169
      %v3171 = vsub.f32 1.0, %v3170
      %v3172 = vmul.f32 %v3169, %v3171
      %v3173 = vadd.f32 %v3169, %v3172
      %vm3174 = vweird.f32 %v3079
      %vm3175 = vweird.f32 %v3169
      %vm3176 = vmor %vm3174, %vm3175
      %v3177 = vsel %vm3176, %v3169, %v3173
      %v3178 = vand.u32 2147483647, %v3079
      %vm3179 = vcmp.eq.f32.partialorder %v3178, 8.507059e+37
      %v3180 = vand.u32 %v3079, 2147483648
      %v3181 = vor.u32 1.1754944e-38, %v3180
      %v3182 = vsel %vm3179, %v3181, %v3177
      %v3183 = vrcp.pop %v3082
      %v3184 = vmul.f32 %v3082, %v3183
      %v3185 = vsub.f32 1.0, %v3184
      %v3186 = vmul.f32 %v3183, %v3185
      %v3187 = vadd.f32 %v3183, %v3186
      %vm3188 = vweird.f32 %v3082
      %vm3189 = vweird.f32 %v3183
      %vm3190 = vmor %vm3188, %vm3189
      %v3191 = vsel %vm3190, %v3183, %v3187
      %v3192 = vand.u32 2147483647, %v3082
      %vm3193 = vcmp.eq.f32.partialorder %v3192, 8.507059e+37
      %v3194 = vand.u32 %v3082, 2147483648
      %v3195 = vor.u32 1.1754944e-38, %v3194
      %v3196 = vsel %vm3193, %v3195, %v3191
      %v3197 = vrcp.pop %v3085
      %v3198 = vmul.f32 %v3085, %v3197
      %v3199 = vsub.f32 1.0, %v3198
      %v3200 = vmul.f32 %v3197, %v3199
      %v3201 = vadd.f32 %v3197, %v3200
      %vm3202 = vweird.f32 %v3085
      %vm3203 = vweird.f32 %v3197
      %vm3204 = vmor %vm3202, %vm3203
      %v3205 = vsel %vm3204, %v3197, %v3201
      %v3206 = vand.u32 2147483647, %v3085
      %vm3207 = vcmp.eq.f32.partialorder %v3206, 8.507059e+37
      %v3208 = vand.u32 %v3085, 2147483648
      %v3209 = vor.u32 1.1754944e-38, %v3208
      %v3210 = vsel %vm3207, %v3209, %v3205
      %v3211 = vrcp.pop %v3088
      %v3212 = vmul.f32 %v3088, %v3211
      %v3213 = vsub.f32 1.0, %v3212
      %v3214 = vmul.f32 %v3211, %v3213
      %v3215 = vadd.f32 %v3211, %v3214
      %vm3216 = vweird.f32 %v3088
      %vm3217 = vweird.f32 %v3211
      %vm3218 = vmor %vm3216, %vm3217
      %v3219 = vsel %vm3218, %v3211, %v3215
      %v3220 = vand.u32 2147483647, %v3088
      %vm3221 = vcmp.eq.f32.partialorder %v3220, 8.507059e+37
      %v3222 = vand.u32 %v3088, 2147483648
      %v3223 = vor.u32 1.1754944e-38, %v3222
      %v3224 = vsel %vm3221, %v3223, %v3219
      %v3225 = vrcp.pop %v3091
      %v3226 = vmul.f32 %v3091, %v3225
      %v3227 = vsub.f32 1.0, %v3226
      %v3228 = vmul.f32 %v3225, %v3227
      %v3229 = vadd.f32 %v3225, %v3228
      %vm3230 = vweird.f32 %v3091
      %vm3231 = vweird.f32 %v3225
      %vm3232 = vmor %vm3230, %vm3231
      %v3233 = vsel %vm3232, %v3225, %v3229
      %v3234 = vand.u32 2147483647, %v3091
      %vm3235 = vcmp.eq.f32.partialorder %v3234, 8.507059e+37
      %v3236 = vand.u32 %v3091, 2147483648
      %v3237 = vor.u32 1.1754944e-38, %v3236
      %v3238 = vsel %vm3235, %v3237, %v3233
      %v3239 = vrcp.pop %v3094
      %v3240 = vmul.f32 %v3094, %v3239
      %v3241 = vsub.f32 1.0, %v3240
      %v3242 = vmul.f32 %v3239, %v3241
      %v3243 = vadd.f32 %v3239, %v3242
      %vm3244 = vweird.f32 %v3094
      %vm3245 = vweird.f32 %v3239
      %vm3246 = vmor %vm3244, %vm3245
      %v3247 = vsel %vm3246, %v3239, %v3243
      %v3248 = vand.u32 2147483647, %v3094
      %vm3249 = vcmp.eq.f32.partialorder %v3248, 8.507059e+37
      %v3250 = vand.u32 %v3094, 2147483648
      %v3251 = vor.u32 1.1754944e-38, %v3250
      %v3252 = vsel %vm3249, %v3251, %v3247
      %v3253 = vrcp.pop %v3097
      %v3254 = vmul.f32 %v3097, %v3253
      %v3255 = vsub.f32 1.0, %v3254
      %v3256 = vmul.f32 %v3253, %v3255
      %v3257 = vadd.f32 %v3253, %v3256
      %vm3258 = vweird.f32 %v3097
      %vm3259 = vweird.f32 %v3253
      %vm3260 = vmor %vm3258, %vm3259
      %v3261 = vsel %vm3260, %v3253, %v3257
      %v3262 = vand.u32 2147483647, %v3097
      %vm3263 = vcmp.eq.f32.partialorder %v3262, 8.507059e+37
      %v3264 = vand.u32 %v3097, 2147483648
      %v3265 = vor.u32 1.1754944e-38, %v3264
      %v3266 = vsel %vm3263, %v3265, %v3261
      %v3267 = vrcp.pop %v3100
      %v3268 = vmul.f32 %v3100, %v3267
      %v3269 = vsub.f32 1.0, %v3268
      %v3270 = vmul.f32 %v3267, %v3269
      %v3271 = vadd.f32 %v3267, %v3270
      %vm3272 = vweird.f32 %v3100
      %vm3273 = vweird.f32 %v3267
      %vm3274 = vmor %vm3272, %vm3273
      %v3275 = vsel %vm3274, %v3267, %v3271
      %v3276 = vand.u32 2147483647, %v3100
      %vm3277 = vcmp.eq.f32.partialorder %v3276, 8.507059e+37
      %v3278 = vand.u32 %v3100, 2147483648
      %v3279 = vor.u32 1.1754944e-38, %v3278
      %v3280 = vsel %vm3277, %v3279, %v3275
      %v3281 = vrcp.pop %v3103
      %v3282 = vmul.f32 %v3103, %v3281
      %v3283 = vsub.f32 1.0, %v3282
      %v3284 = vmul.f32 %v3281, %v3283
      %v3285 = vadd.f32 %v3281, %v3284
      %vm3286 = vweird.f32 %v3103
      %vm3287 = vweird.f32 %v3281
      %vm3288 = vmor %vm3286, %vm3287
      %v3289 = vsel %vm3288, %v3281, %v3285
      %v3290 = vand.u32 2147483647, %v3103
      %vm3291 = vcmp.eq.f32.partialorder %v3290, 8.507059e+37
      %v3292 = vand.u32 %v3103, 2147483648
      %v3293 = vor.u32 1.1754944e-38, %v3292
      %v3294 = vsel %vm3291, %v3293, %v3289
      %v3295 = vrcp.pop %v3106
      %v3296 = vmul.f32 %v3106, %v3295
      %v3297 = vsub.f32 1.0, %v3296
      %v3298 = vmul.f32 %v3295, %v3297
      %v3299 = vadd.f32 %v3295, %v3298
      %vm3300 = vweird.f32 %v3106
      %vm3301 = vweird.f32 %v3295
      %vm3302 = vmor %vm3300, %vm3301
      %v3303 = vsel %vm3302, %v3295, %v3299
      %v3304 = vand.u32 2147483647, %v3106
      %vm3305 = vcmp.eq.f32.partialorder %v3304, 8.507059e+37
      %v3306 = vand.u32 %v3106, 2147483648
      %v3307 = vor.u32 1.1754944e-38, %v3306
      %v3308 = vsel %vm3305, %v3307, %v3303
      %v3309 = vrcp.pop %v3109
      %v3310 = vmul.f32 %v3109, %v3309
      %v3311 = vsub.f32 1.0, %v3310
      %v3312 = vmul.f32 %v3309, %v3311
      %v3313 = vadd.f32 %v3309, %v3312
      %vm3314 = vweird.f32 %v3109
      %vm3315 = vweird.f32 %v3309
      %vm3316 = vmor %vm3314, %vm3315
      %v3317 = vsel %vm3316, %v3309, %v3313
      %v3318 = vand.u32 2147483647, %v3109
      %vm3319 = vcmp.eq.f32.partialorder %v3318, 8.507059e+37
      %v3320 = vand.u32 %v3109, 2147483648
      %v3321 = vor.u32 1.1754944e-38, %v3320
      %v3322 = vsel %vm3319, %v3321, %v3317
      %v3323 = vrcp.pop %v3112
      %v3324 = vmul.f32 %v3112, %v3323
      %v3325 = vsub.f32 1.0, %v3324
      %v3326 = vmul.f32 %v3323, %v3325
      %v3327 = vadd.f32 %v3323, %v3326
      %vm3328 = vweird.f32 %v3112
      %vm3329 = vweird.f32 %v3323
      %vm3330 = vmor %vm3328, %vm3329
      %v3331 = vsel %vm3330, %v3323, %v3327
      %v3332 = vand.u32 2147483647, %v3112
      %vm3333 = vcmp.eq.f32.partialorder %v3332, 8.507059e+37
      %v3334 = vand.u32 %v3112, 2147483648
      %v3335 = vor.u32 1.1754944e-38, %v3334
      %v3336 = vsel %vm3333, %v3335, %v3331
      %v3337 = vmul.f32 %v3034, %v3126
      %v3338 = vmul.f32 %v3036, %v3140
      %v3339 = vmul.f32 %v3038, %v3154
      %v3340 = vmul.f32 %v3040, %v3168
      %v3341 = vmul.f32 %v3042, %v3182
      %v3342 = vmul.f32 %v3044, %v3196
      %v3343 = vmul.f32 %v3046, %v3210
      %v3344 = vmul.f32 %v3048, %v3224
      %v3345 = vmul.f32 %v3050, %v3238
      %v3346 = vmul.f32 %v3052, %v3252
      %v3347 = vmul.f32 %v3054, %v3266
      %v3348 = vmul.f32 %v3056, %v3280
      %v3349 = vmul.f32 %v3058, %v3294
      %v3350 = vmul.f32 %v3060, %v3308
      %v3351 = vmul.f32 %v3062, %v3322
      %v3352 = vmul.f32 %v3064, %v3336
      %3353 = vrot.lane.b32.xlu0 %v1182, 48
      %v3354 = vpop.permute.xlu0 %3353
      %3355 = vrot.lane.b32.xlu0 %v1185, 48
      %v3356 = vpop.permute.xlu0 %3355
      %3357 = vrot.lane.b32.xlu0 %v1188, 48
      %v3358 = vpop.permute.xlu0 %3357
      %3359 = vrot.lane.b32.xlu0 %v1191, 48
      %v3360 = vpop.permute.xlu0 %3359
      %3361 = vrot.lane.b32.xlu0 %v1194, 48
      %v3362 = vpop.permute.xlu0 %3361
      %3363 = vrot.lane.b32.xlu0 %v1197, 48
      %v3364 = vpop.permute.xlu0 %3363
      %3365 = vrot.lane.b32.xlu0 %v1200, 48
      %v3366 = vpop.permute.xlu0 %3365
      %3367 = vrot.lane.b32.xlu0 %v1203, 48
      %v3368 = vpop.permute.xlu0 %3367
      %v3378 = vsel %vm1424, %v3337, 0
      %v3381 = vsel %vm1424, %v3338, 0
      %v3384 = vsel %vm1424, %v3339, 0
      %v3387 = vsel %vm1424, %v3340, 0
      %v3390 = vsel %vm1424, %v3341, 0
      %v3393 = vsel %vm1424, %v3342, 0
      %v3396 = vsel %vm1424, %v3343, 0
      %v3399 = vsel %vm1424, %v3344, 0
      %3401 = vmatpush.msra.mxu0 0.0
      %3402 = vmatpush.msra.mxu0 0.0
      %3403 = vmatpush.msra.mxu0 0.0
      %3404 = vmatpush.msra.mxu0 0.0
      %3405 = vmatpush.msra.mxu0 0.0
      %3406 = vmatpush.msra.mxu0 0.0
      %3407 = vmatpush.msra.mxu0 0.0
      %3408 = vmatpush.msra.mxu0 0.0
      %3409 = vmatpush.msra.mxu0 %v3368
      %3410 = vmatpush.msra.mxu0 %v3366
      %3411 = vmatpush.msra.mxu0 %v3364
      %3412 = vmatpush.msra.mxu0 %v3362
      %3413 = vmatpush.msra.mxu0 %v3360
      %3414 = vmatpush.msra.mxu0 %v3358
      %3415 = vmatpush.msra.mxu0 %v3356
      %3416 = vmatpush.msra.mxu0 %v3354
      %3417 = vmatmul.f32.gmra.mxu0 %v3378
      %v3418 = vpop.f32.mrf.mxu0
      %v3419 = vadd.f32 0.0, %v3418
      %3420 = vmatmul.f32.gmra.mxu0 %v3381
      %v3421 = vpop.f32.mrf.mxu0
      %v3422 = vadd.f32 0.0, %v3421
      %3423 = vmatmul.f32.gmra.mxu0 %v3384
      %v3424 = vpop.f32.mrf.mxu0
      %v3425 = vadd.f32 0.0, %v3424
      %3426 = vmatmul.f32.gmra.mxu0 %v3387
      %v3427 = vpop.f32.mrf.mxu0
      %v3428 = vadd.f32 0.0, %v3427
      %3429 = vmatmul.f32.gmra.mxu0 %v3390
      %v3430 = vpop.f32.mrf.mxu0
      %v3431 = vadd.f32 0.0, %v3430
      %3432 = vmatmul.f32.gmra.mxu0 %v3393
      %v3433 = vpop.f32.mrf.mxu0
      %v3434 = vadd.f32 0.0, %v3433
      %3435 = vmatmul.f32.gmra.mxu0 %v3396
      %v3436 = vpop.f32.mrf.mxu0
      %v3437 = vadd.f32 0.0, %v3436
      %3438 = vmatmul.f32.gmra.mxu0 %v3399
      %v3439 = vpop.f32.mrf.mxu0
      %v3440 = vadd.f32 0.0, %v3439
      %3441 = vdwg.mxu0
      %3442 = vrot.lane.b32.xlu0 %v1206, 48
      %v3443 = vpop.permute.xlu0 %3442
      %3444 = vrot.lane.b32.xlu0 %v1209, 48
      %v3445 = vpop.permute.xlu0 %3444
      %3446 = vrot.lane.b32.xlu0 %v1212, 48
      %v3447 = vpop.permute.xlu0 %3446
      %3448 = vrot.lane.b32.xlu0 %v1215, 48
      %v3449 = vpop.permute.xlu0 %3448
      %3450 = vrot.lane.b32.xlu0 %v1218, 48
      %v3451 = vpop.permute.xlu0 %3450
      %3452 = vrot.lane.b32.xlu0 %v1221, 48
      %v3453 = vpop.permute.xlu0 %3452
      %3454 = vrot.lane.b32.xlu0 %v1224, 48
      %v3455 = vpop.permute.xlu0 %3454
      %3456 = vrot.lane.b32.xlu0 %v1227, 48
      %v3457 = vpop.permute.xlu0 %3456
      %v3467 = vsel %vm1424, %v3345, 0
      %v3470 = vsel %vm1424, %v3346, 0
      %v3473 = vsel %vm1424, %v3347, 0
      %v3476 = vsel %vm1424, %v3348, 0
      %v3479 = vsel %vm1424, %v3349, 0
      %v3482 = vsel %vm1424, %v3350, 0
      %v3485 = vsel %vm1424, %v3351, 0
      %v3488 = vsel %vm1424, %v3352, 0
      %3490 = vmatpush.msra.mxu0 0.0
      %3491 = vmatpush.msra.mxu0 0.0
      %3492 = vmatpush.msra.mxu0 0.0
      %3493 = vmatpush.msra.mxu0 0.0
      %3494 = vmatpush.msra.mxu0 0.0
      %3495 = vmatpush.msra.mxu0 0.0
      %3496 = vmatpush.msra.mxu0 0.0
      %3497 = vmatpush.msra.mxu0 0.0
      %3498 = vmatpush.msra.mxu0 %v3457
      %3499 = vmatpush.msra.mxu0 %v3455
      %3500 = vmatpush.msra.mxu0 %v3453
      %3501 = vmatpush.msra.mxu0 %v3451
      %3502 = vmatpush.msra.mxu0 %v3449
      %3503 = vmatpush.msra.mxu0 %v3447
      %3504 = vmatpush.msra.mxu0 %v3445
      %3505 = vmatpush.msra.mxu0 %v3443
      %3506 = vmatmul.f32.gmra.mxu0 %v3467
      %v3507 = vpop.f32.mrf.mxu0
      %v3508 = vadd.f32 0.0, %v3507
      %3509 = vmatmul.f32.gmra.mxu0 %v3470
      %v3510 = vpop.f32.mrf.mxu0
      %v3511 = vadd.f32 0.0, %v3510
      %3512 = vmatmul.f32.gmra.mxu0 %v3473
      %v3513 = vpop.f32.mrf.mxu0
      %v3514 = vadd.f32 0.0, %v3513
      %3515 = vmatmul.f32.gmra.mxu0 %v3476
      %v3516 = vpop.f32.mrf.mxu0
      %v3517 = vadd.f32 0.0, %v3516
      %3518 = vmatmul.f32.gmra.mxu0 %v3479
      %v3519 = vpop.f32.mrf.mxu0
      %v3520 = vadd.f32 0.0, %v3519
      %3521 = vmatmul.f32.gmra.mxu0 %v3482
      %v3522 = vpop.f32.mrf.mxu0
      %v3523 = vadd.f32 0.0, %v3522
      %3524 = vmatmul.f32.gmra.mxu0 %v3485
      %v3525 = vpop.f32.mrf.mxu0
      %v3526 = vadd.f32 0.0, %v3525
      %3527 = vmatmul.f32.gmra.mxu0 %v3488
      %v3528 = vpop.f32.mrf.mxu0
      %v3529 = vadd.f32 0.0, %v3528
      %3530 = vdwg.mxu0
      %3531 = vrot.lane.b32.xlu0 %v1182, 104
      %v3532 = vpop.permute.xlu0 %3531
      %3533 = vrot.lane.b32.xlu0 %v1185, 104
      %v3534 = vpop.permute.xlu0 %3533
      %3535 = vrot.lane.b32.xlu0 %v1188, 104
      %v3536 = vpop.permute.xlu0 %3535
      %3537 = vrot.lane.b32.xlu0 %v1191, 104
      %v3538 = vpop.permute.xlu0 %3537
      %3539 = vrot.lane.b32.xlu0 %v1194, 104
      %v3540 = vpop.permute.xlu0 %3539
      %3541 = vrot.lane.b32.xlu0 %v1197, 104
      %v3542 = vpop.permute.xlu0 %3541
      %3543 = vrot.lane.b32.xlu0 %v1200, 104
      %v3544 = vpop.permute.xlu0 %3543
      %3545 = vrot.lane.b32.xlu0 %v1203, 104
      %v3546 = vpop.permute.xlu0 %3545
      %3547 = vrot.lane.b32.xlu0 %v1182, 72
      %v3548 = vpop.permute.xlu0 %3547
      %3549 = vrot.lane.b32.xlu0 %v1185, 72
      %v3550 = vpop.permute.xlu0 %3549
      %3551 = vrot.lane.b32.xlu0 %v1188, 72
      %v3552 = vpop.permute.xlu0 %3551
      %3553 = vrot.lane.b32.xlu0 %v1191, 72
      %v3554 = vpop.permute.xlu0 %3553
      %3555 = vrot.lane.b32.xlu0 %v1194, 72
      %v3556 = vpop.permute.xlu0 %3555
      %3557 = vrot.lane.b32.xlu0 %v1197, 72
      %v3558 = vpop.permute.xlu0 %3557
      %3559 = vrot.lane.b32.xlu0 %v1200, 72
      %v3560 = vpop.permute.xlu0 %3559
      %3561 = vrot.lane.b32.xlu0 %v1203, 72
      %v3562 = vpop.permute.xlu0 %3561
      %v3563 = vsel %vm1253, %v3532, 0
      %v3565 = vsel %vm1253, %v3534, 0
      %v3567 = vsel %vm1253, %v3536, 0
      %v3569 = vsel %vm1253, %v3538, 0
      %v3571 = vsel %vm1253, %v3540, 0
      %v3573 = vsel %vm1253, %v3542, 0
      %v3575 = vsel %vm1253, %v3544, 0
      %v3577 = vsel %vm1253, %v3546, 0
      %v3579 = vsel %vm1253, %v3548, 0
      %v3581 = vsel %vm1253, %v3550, 0
      %v3583 = vsel %vm1253, %v3552, 0
      %v3585 = vsel %vm1253, %v3554, 0
      %v3587 = vsel %vm1253, %v3556, 0
      %v3589 = vsel %vm1253, %v3558, 0
      %v3591 = vsel %vm1253, %v3560, 0
      %v3593 = vsel %vm1253, %v3562, 0
      %3595 = vmatpush.xpose.msra.mxu0 0.0
      %3596 = vmatpush.xpose.msra.mxu0 0.0
      %3597 = vmatpush.xpose.msra.mxu0 0.0
      %3598 = vmatpush.xpose.msra.mxu0 0.0
      %3599 = vmatpush.xpose.msra.mxu0 0.0
      %3600 = vmatpush.xpose.msra.mxu0 0.0
      %3601 = vmatpush.xpose.msra.mxu0 0.0
      %3602 = vmatpush.xpose.msra.mxu0 0.0
      %3603 = vmatpush.xpose.msra.mxu0 %v3593
      %3604 = vmatpush.xpose.msra.mxu0 %v3591
      %3605 = vmatpush.xpose.msra.mxu0 %v3589
      %3606 = vmatpush.xpose.msra.mxu0 %v3587
      %3607 = vmatpush.xpose.msra.mxu0 %v3585
      %3608 = vmatpush.xpose.msra.mxu0 %v3583
      %3609 = vmatpush.xpose.msra.mxu0 %v3581
      %3610 = vmatpush.xpose.msra.mxu0 %v3579
      %3611 = vmatmul.f32.gmra.mxu0 %v3563
      %v3612 = vpop.f32.mrf.mxu0
      %v3613 = vadd.f32 0.0, %v3612
      %3614 = vmatmul.f32.gmra.mxu0 %v3565
      %v3615 = vpop.f32.mrf.mxu0
      %v3616 = vadd.f32 0.0, %v3615
      %3617 = vmatmul.f32.gmra.mxu0 %v3567
      %v3618 = vpop.f32.mrf.mxu0
      %v3619 = vadd.f32 0.0, %v3618
      %3620 = vmatmul.f32.gmra.mxu0 %v3569
      %v3621 = vpop.f32.mrf.mxu0
      %v3622 = vadd.f32 0.0, %v3621
      %3623 = vmatmul.f32.gmra.mxu0 %v3571
      %v3624 = vpop.f32.mrf.mxu0
      %v3625 = vadd.f32 0.0, %v3624
      %3626 = vmatmul.f32.gmra.mxu0 %v3573
      %v3627 = vpop.f32.mrf.mxu0
      %v3628 = vadd.f32 0.0, %v3627
      %3629 = vmatmul.f32.gmra.mxu0 %v3575
      %v3630 = vpop.f32.mrf.mxu0
      %v3631 = vadd.f32 0.0, %v3630
      %3632 = vmatmul.f32.gmra.mxu0 %v3577
      %v3633 = vpop.f32.mrf.mxu0
      %v3634 = vadd.f32 0.0, %v3633
      %3635 = vdwg.mxu0
      %3636 = vrot.lane.b32.xlu0 %v1206, 104
      %v3637 = vpop.permute.xlu0 %3636
      %3638 = vrot.lane.b32.xlu0 %v1209, 104
      %v3639 = vpop.permute.xlu0 %3638
      %3640 = vrot.lane.b32.xlu0 %v1212, 104
      %v3641 = vpop.permute.xlu0 %3640
      %3642 = vrot.lane.b32.xlu0 %v1215, 104
      %v3643 = vpop.permute.xlu0 %3642
      %3644 = vrot.lane.b32.xlu0 %v1218, 104
      %v3645 = vpop.permute.xlu0 %3644
      %3646 = vrot.lane.b32.xlu0 %v1221, 104
      %v3647 = vpop.permute.xlu0 %3646
      %3648 = vrot.lane.b32.xlu0 %v1224, 104
      %v3649 = vpop.permute.xlu0 %3648
      %3650 = vrot.lane.b32.xlu0 %v1227, 104
      %v3651 = vpop.permute.xlu0 %3650
      %3652 = vrot.lane.b32.xlu0 %v1206, 72
      %v3653 = vpop.permute.xlu0 %3652
      %3654 = vrot.lane.b32.xlu0 %v1209, 72
      %v3655 = vpop.permute.xlu0 %3654
      %3656 = vrot.lane.b32.xlu0 %v1212, 72
      %v3657 = vpop.permute.xlu0 %3656
      %3658 = vrot.lane.b32.xlu0 %v1215, 72
      %v3659 = vpop.permute.xlu0 %3658
      %3660 = vrot.lane.b32.xlu0 %v1218, 72
      %v3661 = vpop.permute.xlu0 %3660
      %3662 = vrot.lane.b32.xlu0 %v1221, 72
      %v3663 = vpop.permute.xlu0 %3662
      %3664 = vrot.lane.b32.xlu0 %v1224, 72
      %v3665 = vpop.permute.xlu0 %3664
      %3666 = vrot.lane.b32.xlu0 %v1227, 72
      %v3667 = vpop.permute.xlu0 %3666
      %v3668 = vsel %vm1253, %v3637, 0
      %v3670 = vsel %vm1253, %v3639, 0
      %v3672 = vsel %vm1253, %v3641, 0
      %v3674 = vsel %vm1253, %v3643, 0
      %v3676 = vsel %vm1253, %v3645, 0
      %v3678 = vsel %vm1253, %v3647, 0
      %v3680 = vsel %vm1253, %v3649, 0
      %v3682 = vsel %vm1253, %v3651, 0
      %v3684 = vsel %vm1253, %v3653, 0
      %v3686 = vsel %vm1253, %v3655, 0
      %v3688 = vsel %vm1253, %v3657, 0
      %v3690 = vsel %vm1253, %v3659, 0
      %v3692 = vsel %vm1253, %v3661, 0
      %v3694 = vsel %vm1253, %v3663, 0
      %v3696 = vsel %vm1253, %v3665, 0
      %v3698 = vsel %vm1253, %v3667, 0
      %3700 = vmatpush.xpose.msra.mxu0 0.0
      %3701 = vmatpush.xpose.msra.mxu0 0.0
      %3702 = vmatpush.xpose.msra.mxu0 0.0
      %3703 = vmatpush.xpose.msra.mxu0 0.0
      %3704 = vmatpush.xpose.msra.mxu0 0.0
      %3705 = vmatpush.xpose.msra.mxu0 0.0
      %3706 = vmatpush.xpose.msra.mxu0 0.0
      %3707 = vmatpush.xpose.msra.mxu0 0.0
      %3708 = vmatpush.xpose.msra.mxu0 %v3698
      %3709 = vmatpush.xpose.msra.mxu0 %v3696
      %3710 = vmatpush.xpose.msra.mxu0 %v3694
      %3711 = vmatpush.xpose.msra.mxu0 %v3692
      %3712 = vmatpush.xpose.msra.mxu0 %v3690
      %3713 = vmatpush.xpose.msra.mxu0 %v3688
      %3714 = vmatpush.xpose.msra.mxu0 %v3686
      %3715 = vmatpush.xpose.msra.mxu0 %v3684
      %3716 = vmatmul.f32.gmra.mxu0 %v3668
      %v3717 = vpop.f32.mrf.mxu0
      %v3718 = vadd.f32 0.0, %v3717
      %3719 = vmatmul.f32.gmra.mxu0 %v3670
      %v3720 = vpop.f32.mrf.mxu0
      %v3721 = vadd.f32 0.0, %v3720
      %3722 = vmatmul.f32.gmra.mxu0 %v3672
      %v3723 = vpop.f32.mrf.mxu0
      %v3724 = vadd.f32 0.0, %v3723
      %3725 = vmatmul.f32.gmra.mxu0 %v3674
      %v3726 = vpop.f32.mrf.mxu0
      %v3727 = vadd.f32 0.0, %v3726
      %3728 = vmatmul.f32.gmra.mxu0 %v3676
      %v3729 = vpop.f32.mrf.mxu0
      %v3730 = vadd.f32 0.0, %v3729
      %3731 = vmatmul.f32.gmra.mxu0 %v3678
      %v3732 = vpop.f32.mrf.mxu0
      %v3733 = vadd.f32 0.0, %v3732
      %3734 = vmatmul.f32.gmra.mxu0 %v3680
      %v3735 = vpop.f32.mrf.mxu0
      %v3736 = vadd.f32 0.0, %v3735
      %3737 = vmatmul.f32.gmra.mxu0 %v3682
      %v3738 = vpop.f32.mrf.mxu0
      %v3739 = vadd.f32 0.0, %v3738
      %3740 = vdwg.mxu0
      %v3741 = vsel %vm1424, %v3613, -inf
      %3742 = vmax.xlane.f32.xlu0 %v3741
      %v3743 = vpop.xlane.xlu0 %3742
      %v3744 = vsel %vm1424, %v3616, -inf
      %3745 = vmax.xlane.f32.xlu0 %v3744
      %v3746 = vpop.xlane.xlu0 %3745
      %v3747 = vsel %vm1424, %v3619, -inf
      %3748 = vmax.xlane.f32.xlu0 %v3747
      %v3749 = vpop.xlane.xlu0 %3748
      %v3750 = vsel %vm1424, %v3622, -inf
      %3751 = vmax.xlane.f32.xlu0 %v3750
      %v3752 = vpop.xlane.xlu0 %3751
      %v3753 = vsel %vm1424, %v3625, -inf
      %3754 = vmax.xlane.f32.xlu0 %v3753
      %v3755 = vpop.xlane.xlu0 %3754
      %v3756 = vsel %vm1424, %v3628, -inf
      %3757 = vmax.xlane.f32.xlu0 %v3756
      %v3758 = vpop.xlane.xlu0 %3757
      %v3759 = vsel %vm1424, %v3631, -inf
      %3760 = vmax.xlane.f32.xlu0 %v3759
      %v3761 = vpop.xlane.xlu0 %3760
      %v3762 = vsel %vm1424, %v3634, -inf
      %3763 = vmax.xlane.f32.xlu0 %v3762
      %v3764 = vpop.xlane.xlu0 %3763
      %v3765 = vsel %vm1424, %v3718, -inf
      %3766 = vmax.xlane.f32.xlu0 %v3765
      %v3767 = vpop.xlane.xlu0 %3766
      %v3768 = vsel %vm1424, %v3721, -inf
      %3769 = vmax.xlane.f32.xlu0 %v3768
      %v3770 = vpop.xlane.xlu0 %3769
      %v3771 = vsel %vm1424, %v3724, -inf
      %3772 = vmax.xlane.f32.xlu0 %v3771
      %v3773 = vpop.xlane.xlu0 %3772
      %v3774 = vsel %vm1424, %v3727, -inf
      %3775 = vmax.xlane.f32.xlu0 %v3774
      %v3776 = vpop.xlane.xlu0 %3775
      %v3777 = vsel %vm1424, %v3730, -inf
      %3778 = vmax.xlane.f32.xlu0 %v3777
      %v3779 = vpop.xlane.xlu0 %3778
      %v3780 = vsel %vm1424, %v3733, -inf
      %3781 = vmax.xlane.f32.xlu0 %v3780
      %v3782 = vpop.xlane.xlu0 %3781
      %v3783 = vsel %vm1424, %v3736, -inf
      %3784 = vmax.xlane.f32.xlu0 %v3783
      %v3785 = vpop.xlane.xlu0 %3784
      %v3786 = vsel %vm1424, %v3739, -inf
      %3787 = vmax.xlane.f32.xlu0 %v3786
      %v3788 = vpop.xlane.xlu0 %3787
      %v3789 = vsub.f32 %v3613, %v3743
      %v3790 = vsub.f32 %v3616, %v3746
      %v3791 = vsub.f32 %v3619, %v3749
      %v3792 = vsub.f32 %v3622, %v3752
      %v3793 = vsub.f32 %v3625, %v3755
      %v3794 = vsub.f32 %v3628, %v3758
      %v3795 = vsub.f32 %v3631, %v3761
      %v3796 = vsub.f32 %v3634, %v3764
      %v3797 = vsub.f32 %v3718, %v3767
      %v3798 = vsub.f32 %v3721, %v3770
      %v3799 = vsub.f32 %v3724, %v3773
      %v3800 = vsub.f32 %v3727, %v3776
      %v3801 = vsub.f32 %v3730, %v3779
      %v3802 = vsub.f32 %v3733, %v3782
      %v3803 = vsub.f32 %v3736, %v3785
      %v3804 = vsub.f32 %v3739, %v3788
      %v3805 = vmul.f32 %v3789, 1.442695
      %v3806 = vpow.pop %v3805
      %v3807 = vmul.f32 %v3790, 1.442695
      %v3808 = vpow.pop %v3807
      %v3809 = vmul.f32 %v3791, 1.442695
      %v3810 = vpow.pop %v3809
      %v3811 = vmul.f32 %v3792, 1.442695
      %v3812 = vpow.pop %v3811
      %v3813 = vmul.f32 %v3793, 1.442695
      %v3814 = vpow.pop %v3813
      %v3815 = vmul.f32 %v3794, 1.442695
      %v3816 = vpow.pop %v3815
      %v3817 = vmul.f32 %v3795, 1.442695
      %v3818 = vpow.pop %v3817
      %v3819 = vmul.f32 %v3796, 1.442695
      %v3820 = vpow.pop %v3819
      %v3821 = vmul.f32 %v3797, 1.442695
      %v3822 = vpow.pop %v3821
      %v3823 = vmul.f32 %v3798, 1.442695
      %v3824 = vpow.pop %v3823
      %v3825 = vmul.f32 %v3799, 1.442695
      %v3826 = vpow.pop %v3825
      %v3827 = vmul.f32 %v3800, 1.442695
      %v3828 = vpow.pop %v3827
      %v3829 = vmul.f32 %v3801, 1.442695
      %v3830 = vpow.pop %v3829
      %v3831 = vmul.f32 %v3802, 1.442695
      %v3832 = vpow.pop %v3831
      %v3833 = vmul.f32 %v3803, 1.442695
      %v3834 = vpow.pop %v3833
      %v3835 = vmul.f32 %v3804, 1.442695
      %v3836 = vpow.pop %v3835
      %v3837 = vsel %vm1424, %v3806, 0.0
      %3838 = vadd.xlane.f32.xlu0 %v3837
      %v3839 = vpop.xlane.xlu0 %3838
      %v3840 = vsel %vm1424, %v3808, 0.0
      %3841 = vadd.xlane.f32.xlu0 %v3840
      %v3842 = vpop.xlane.xlu0 %3841
      %v3843 = vsel %vm1424, %v3810, 0.0
      %3844 = vadd.xlane.f32.xlu0 %v3843
      %v3845 = vpop.xlane.xlu0 %3844
      %v3846 = vsel %vm1424, %v3812, 0.0
      %3847 = vadd.xlane.f32.xlu0 %v3846
      %v3848 = vpop.xlane.xlu0 %3847
      %v3849 = vsel %vm1424, %v3814, 0.0
      %3850 = vadd.xlane.f32.xlu0 %v3849
      %v3851 = vpop.xlane.xlu0 %3850
      %v3852 = vsel %vm1424, %v3816, 0.0
      %3853 = vadd.xlane.f32.xlu0 %v3852
      %v3854 = vpop.xlane.xlu0 %3853
      %v3855 = vsel %vm1424, %v3818, 0.0
      %3856 = vadd.xlane.f32.xlu0 %v3855
      %v3857 = vpop.xlane.xlu0 %3856
      %v3858 = vsel %vm1424, %v3820, 0.0
      %3859 = vadd.xlane.f32.xlu0 %v3858
      %v3860 = vpop.xlane.xlu0 %3859
      %v3861 = vsel %vm1424, %v3822, 0.0
      %3862 = vadd.xlane.f32.xlu0 %v3861
      %v3863 = vpop.xlane.xlu0 %3862
      %v3864 = vsel %vm1424, %v3824, 0.0
      %3865 = vadd.xlane.f32.xlu0 %v3864
      %v3866 = vpop.xlane.xlu0 %3865
      %v3867 = vsel %vm1424, %v3826, 0.0
      %3868 = vadd.xlane.f32.xlu0 %v3867
      %v3869 = vpop.xlane.xlu0 %3868
      %v3870 = vsel %vm1424, %v3828, 0.0
      %3871 = vadd.xlane.f32.xlu0 %v3870
      %v3872 = vpop.xlane.xlu0 %3871
      %v3873 = vsel %vm1424, %v3830, 0.0
      %3874 = vadd.xlane.f32.xlu0 %v3873
      %v3875 = vpop.xlane.xlu0 %3874
      %v3876 = vsel %vm1424, %v3832, 0.0
      %3877 = vadd.xlane.f32.xlu0 %v3876
      %v3878 = vpop.xlane.xlu0 %3877
      %v3879 = vsel %vm1424, %v3834, 0.0
      %3880 = vadd.xlane.f32.xlu0 %v3879
      %v3881 = vpop.xlane.xlu0 %3880
      %v3882 = vsel %vm1424, %v3836, 0.0
      %3883 = vadd.xlane.f32.xlu0 %v3882
      %v3884 = vpop.xlane.xlu0 %3883
      %v3885 = vrcp.pop %v3839
      %v3886 = vmul.f32 %v3839, %v3885
      %v3887 = vsub.f32 1.0, %v3886
      %v3888 = vmul.f32 %v3885, %v3887
      %v3889 = vadd.f32 %v3885, %v3888
      %vm3890 = vweird.f32 %v3839
      %vm3891 = vweird.f32 %v3885
      %vm3892 = vmor %vm3890, %vm3891
      %v3893 = vsel %vm3892, %v3885, %v3889
      %v3894 = vand.u32 2147483647, %v3839
      %vm3895 = vcmp.eq.f32.partialorder %v3894, 8.507059e+37
      %v3896 = vand.u32 %v3839, 2147483648
      %v3897 = vor.u32 1.1754944e-38, %v3896
      %v3898 = vsel %vm3895, %v3897, %v3893
      %v3899 = vrcp.pop %v3842
      %v3900 = vmul.f32 %v3842, %v3899
      %v3901 = vsub.f32 1.0, %v3900
      %v3902 = vmul.f32 %v3899, %v3901
      %v3903 = vadd.f32 %v3899, %v3902
      %vm3904 = vweird.f32 %v3842
      %vm3905 = vweird.f32 %v3899
      %vm3906 = vmor %vm3904, %vm3905
      %v3907 = vsel %vm3906, %v3899, %v3903
      %v3908 = vand.u32 2147483647, %v3842
      %vm3909 = vcmp.eq.f32.partialorder %v3908, 8.507059e+37
      %v3910 = vand.u32 %v3842, 2147483648
      %v3911 = vor.u32 1.1754944e-38, %v3910
      %v3912 = vsel %vm3909, %v3911, %v3907
      %v3913 = vrcp.pop %v3845
      %v3914 = vmul.f32 %v3845, %v3913
      %v3915 = vsub.f32 1.0, %v3914
      %v3916 = vmul.f32 %v3913, %v3915
      %v3917 = vadd.f32 %v3913, %v3916
      %vm3918 = vweird.f32 %v3845
      %vm3919 = vweird.f32 %v3913
      %vm3920 = vmor %vm3918, %vm3919
      %v3921 = vsel %vm3920, %v3913, %v3917
      %v3922 = vand.u32 2147483647, %v3845
      %vm3923 = vcmp.eq.f32.partialorder %v3922, 8.507059e+37
      %v3924 = vand.u32 %v3845, 2147483648
      %v3925 = vor.u32 1.1754944e-38, %v3924
      %v3926 = vsel %vm3923, %v3925, %v3921
      %v3927 = vrcp.pop %v3848
      %v3928 = vmul.f32 %v3848, %v3927
      %v3929 = vsub.f32 1.0, %v3928
      %v3930 = vmul.f32 %v3927, %v3929
      %v3931 = vadd.f32 %v3927, %v3930
      %vm3932 = vweird.f32 %v3848
      %vm3933 = vweird.f32 %v3927
      %vm3934 = vmor %vm3932, %vm3933
      %v3935 = vsel %vm3934, %v3927, %v3931
      %v3936 = vand.u32 2147483647, %v3848
      %vm3937 = vcmp.eq.f32.partialorder %v3936, 8.507059e+37
      %v3938 = vand.u32 %v3848, 2147483648
      %v3939 = vor.u32 1.1754944e-38, %v3938
      %v3940 = vsel %vm3937, %v3939, %v3935
      %v3941 = vrcp.pop %v3851
      %v3942 = vmul.f32 %v3851, %v3941
      %v3943 = vsub.f32 1.0, %v3942
      %v3944 = vmul.f32 %v3941, %v3943
      %v3945 = vadd.f32 %v3941, %v3944
      %vm3946 = vweird.f32 %v3851
      %vm3947 = vweird.f32 %v3941
      %vm3948 = vmor %vm3946, %vm3947
      %v3949 = vsel %vm3948, %v3941, %v3945
      %v3950 = vand.u32 2147483647, %v3851
      %vm3951 = vcmp.eq.f32.partialorder %v3950, 8.507059e+37
      %v3952 = vand.u32 %v3851, 2147483648
      %v3953 = vor.u32 1.1754944e-38, %v3952
      %v3954 = vsel %vm3951, %v3953, %v3949
      %v3955 = vrcp.pop %v3854
      %v3956 = vmul.f32 %v3854, %v3955
      %v3957 = vsub.f32 1.0, %v3956
      %v3958 = vmul.f32 %v3955, %v3957
      %v3959 = vadd.f32 %v3955, %v3958
      %vm3960 = vweird.f32 %v3854
      %vm3961 = vweird.f32 %v3955
      %vm3962 = vmor %vm3960, %vm3961
      %v3963 = vsel %vm3962, %v3955, %v3959
      %v3964 = vand.u32 2147483647, %v3854
      %vm3965 = vcmp.eq.f32.partialorder %v3964, 8.507059e+37
      %v3966 = vand.u32 %v3854, 2147483648
      %v3967 = vor.u32 1.1754944e-38, %v3966
      %v3968 = vsel %vm3965, %v3967, %v3963
      %v3969 = vrcp.pop %v3857
      %v3970 = vmul.f32 %v3857, %v3969
      %v3971 = vsub.f32 1.0, %v3970
      %v3972 = vmul.f32 %v3969, %v3971
      %v3973 = vadd.f32 %v3969, %v3972
      %vm3974 = vweird.f32 %v3857
      %vm3975 = vweird.f32 %v3969
      %vm3976 = vmor %vm3974, %vm3975
      %v3977 = vsel %vm3976, %v3969, %v3973
      %v3978 = vand.u32 2147483647, %v3857
      %vm3979 = vcmp.eq.f32.partialorder %v3978, 8.507059e+37
      %v3980 = vand.u32 %v3857, 2147483648
      %v3981 = vor.u32 1.1754944e-38, %v3980
      %v3982 = vsel %vm3979, %v3981, %v3977
      %v3983 = vrcp.pop %v3860
      %v3984 = vmul.f32 %v3860, %v3983
      %v3985 = vsub.f32 1.0, %v3984
      %v3986 = vmul.f32 %v3983, %v3985
      %v3987 = vadd.f32 %v3983, %v3986
      %vm3988 = vweird.f32 %v3860
      %vm3989 = vweird.f32 %v3983
      %vm3990 = vmor %vm3988, %vm3989
      %v3991 = vsel %vm3990, %v3983, %v3987
      %v3992 = vand.u32 2147483647, %v3860
      %vm3993 = vcmp.eq.f32.partialorder %v3992, 8.507059e+37
      %v3994 = vand.u32 %v3860, 2147483648
      %v3995 = vor.u32 1.1754944e-38, %v3994
      %v3996 = vsel %vm3993, %v3995, %v3991
      %v3997 = vrcp.pop %v3863
      %v3998 = vmul.f32 %v3863, %v3997
      %v3999 = vsub.f32 1.0, %v3998
      %v4000 = vmul.f32 %v3997, %v3999
      %v4001 = vadd.f32 %v3997, %v4000
      %vm4002 = vweird.f32 %v3863
      %vm4003 = vweird.f32 %v3997
      %vm4004 = vmor %vm4002, %vm4003
      %v4005 = vsel %vm4004, %v3997, %v4001
      %v4006 = vand.u32 2147483647, %v3863
      %vm4007 = vcmp.eq.f32.partialorder %v4006, 8.507059e+37
      %v4008 = vand.u32 %v3863, 2147483648
      %v4009 = vor.u32 1.1754944e-38, %v4008
      %v4010 = vsel %vm4007, %v4009, %v4005
      %v4011 = vrcp.pop %v3866
      %v4012 = vmul.f32 %v3866, %v4011
      %v4013 = vsub.f32 1.0, %v4012
      %v4014 = vmul.f32 %v4011, %v4013
      %v4015 = vadd.f32 %v4011, %v4014
      %vm4016 = vweird.f32 %v3866
      %vm4017 = vweird.f32 %v4011
      %vm4018 = vmor %vm4016, %vm4017
      %v4019 = vsel %vm4018, %v4011, %v4015
      %v4020 = vand.u32 2147483647, %v3866
      %vm4021 = vcmp.eq.f32.partialorder %v4020, 8.507059e+37
      %v4022 = vand.u32 %v3866, 2147483648
      %v4023 = vor.u32 1.1754944e-38, %v4022
      %v4024 = vsel %vm4021, %v4023, %v4019
      %v4025 = vrcp.pop %v3869
      %v4026 = vmul.f32 %v3869, %v4025
      %v4027 = vsub.f32 1.0, %v4026
      %v4028 = vmul.f32 %v4025, %v4027
      %v4029 = vadd.f32 %v4025, %v4028
      %vm4030 = vweird.f32 %v3869
      %vm4031 = vweird.f32 %v4025
      %vm4032 = vmor %vm4030, %vm4031
      %v4033 = vsel %vm4032, %v4025, %v4029
      %v4034 = vand.u32 2147483647, %v3869
      %vm4035 = vcmp.eq.f32.partialorder %v4034, 8.507059e+37
      %v4036 = vand.u32 %v3869, 2147483648
      %v4037 = vor.u32 1.1754944e-38, %v4036
      %v4038 = vsel %vm4035, %v4037, %v4033
      %v4039 = vrcp.pop %v3872
      %v4040 = vmul.f32 %v3872, %v4039
      %v4041 = vsub.f32 1.0, %v4040
      %v4042 = vmul.f32 %v4039, %v4041
      %v4043 = vadd.f32 %v4039, %v4042
      %vm4044 = vweird.f32 %v3872
      %vm4045 = vweird.f32 %v4039
      %vm4046 = vmor %vm4044, %vm4045
      %v4047 = vsel %vm4046, %v4039, %v4043
      %v4048 = vand.u32 2147483647, %v3872
      %vm4049 = vcmp.eq.f32.partialorder %v4048, 8.507059e+37
      %v4050 = vand.u32 %v3872, 2147483648
      %v4051 = vor.u32 1.1754944e-38, %v4050
      %v4052 = vsel %vm4049, %v4051, %v4047
      %v4053 = vrcp.pop %v3875
      %v4054 = vmul.f32 %v3875, %v4053
      %v4055 = vsub.f32 1.0, %v4054
      %v4056 = vmul.f32 %v4053, %v4055
      %v4057 = vadd.f32 %v4053, %v4056
      %vm4058 = vweird.f32 %v3875
      %vm4059 = vweird.f32 %v4053
      %vm4060 = vmor %vm4058, %vm4059
      %v4061 = vsel %vm4060, %v4053, %v4057
      %v4062 = vand.u32 2147483647, %v3875
      %vm4063 = vcmp.eq.f32.partialorder %v4062, 8.507059e+37
      %v4064 = vand.u32 %v3875, 2147483648
      %v4065 = vor.u32 1.1754944e-38, %v4064
      %v4066 = vsel %vm4063, %v4065, %v4061
      %v4067 = vrcp.pop %v3878
      %v4068 = vmul.f32 %v3878, %v4067
      %v4069 = vsub.f32 1.0, %v4068
      %v4070 = vmul.f32 %v4067, %v4069
      %v4071 = vadd.f32 %v4067, %v4070
      %vm4072 = vweird.f32 %v3878
      %vm4073 = vweird.f32 %v4067
      %vm4074 = vmor %vm4072, %vm4073
      %v4075 = vsel %vm4074, %v4067, %v4071
      %v4076 = vand.u32 2147483647, %v3878
      %vm4077 = vcmp.eq.f32.partialorder %v4076, 8.507059e+37
      %v4078 = vand.u32 %v3878, 2147483648
      %v4079 = vor.u32 1.1754944e-38, %v4078
      %v4080 = vsel %vm4077, %v4079, %v4075
      %v4081 = vrcp.pop %v3881
      %v4082 = vmul.f32 %v3881, %v4081
      %v4083 = vsub.f32 1.0, %v4082
      %v4084 = vmul.f32 %v4081, %v4083
      %v4085 = vadd.f32 %v4081, %v4084
      %vm4086 = vweird.f32 %v3881
      %vm4087 = vweird.f32 %v4081
      %vm4088 = vmor %vm4086, %vm4087
      %v4089 = vsel %vm4088, %v4081, %v4085
      %v4090 = vand.u32 2147483647, %v3881
      %vm4091 = vcmp.eq.f32.partialorder %v4090, 8.507059e+37
      %v4092 = vand.u32 %v3881, 2147483648
      %v4093 = vor.u32 1.1754944e-38, %v4092
      %v4094 = vsel %vm4091, %v4093, %v4089
      %v4095 = vrcp.pop %v3884
      %v4096 = vmul.f32 %v3884, %v4095
      %v4097 = vsub.f32 1.0, %v4096
      %v4098 = vmul.f32 %v4095, %v4097
      %v4099 = vadd.f32 %v4095, %v4098
      %vm4100 = vweird.f32 %v3884
      %vm4101 = vweird.f32 %v4095
      %vm4102 = vmor %vm4100, %vm4101
      %v4103 = vsel %vm4102, %v4095, %v4099
      %v4104 = vand.u32 2147483647, %v3884
      %vm4105 = vcmp.eq.f32.partialorder %v4104, 8.507059e+37
      %v4106 = vand.u32 %v3884, 2147483648
      %v4107 = vor.u32 1.1754944e-38, %v4106
      %v4108 = vsel %vm4105, %v4107, %v4103
      %v4109 = vmul.f32 %v3806, %v3898
      %v4110 = vmul.f32 %v3808, %v3912
      %v4111 = vmul.f32 %v3810, %v3926
      %v4112 = vmul.f32 %v3812, %v3940
      %v4113 = vmul.f32 %v3814, %v3954
      %v4114 = vmul.f32 %v3816, %v3968
      %v4115 = vmul.f32 %v3818, %v3982
      %v4116 = vmul.f32 %v3820, %v3996
      %v4117 = vmul.f32 %v3822, %v4010
      %v4118 = vmul.f32 %v3824, %v4024
      %v4119 = vmul.f32 %v3826, %v4038
      %v4120 = vmul.f32 %v3828, %v4052
      %v4121 = vmul.f32 %v3830, %v4066
      %v4122 = vmul.f32 %v3832, %v4080
      %v4123 = vmul.f32 %v3834, %v4094
      %v4124 = vmul.f32 %v3836, %v4108
      %4125 = vrot.lane.b32.xlu0 %v1182, 40
      %v4126 = vpop.permute.xlu0 %4125
      %4127 = vrot.lane.b32.xlu0 %v1185, 40
      %v4128 = vpop.permute.xlu0 %4127
      %4129 = vrot.lane.b32.xlu0 %v1188, 40
      %v4130 = vpop.permute.xlu0 %4129
      %4131 = vrot.lane.b32.xlu0 %v1191, 40
      %v4132 = vpop.permute.xlu0 %4131
      %4133 = vrot.lane.b32.xlu0 %v1194, 40
      %v4134 = vpop.permute.xlu0 %4133
      %4135 = vrot.lane.b32.xlu0 %v1197, 40
      %v4136 = vpop.permute.xlu0 %4135
      %4137 = vrot.lane.b32.xlu0 %v1200, 40
      %v4138 = vpop.permute.xlu0 %4137
      %4139 = vrot.lane.b32.xlu0 %v1203, 40
      %v4140 = vpop.permute.xlu0 %4139
      %v4150 = vsel %vm1424, %v4109, 0
      %v4153 = vsel %vm1424, %v4110, 0
      %v4156 = vsel %vm1424, %v4111, 0
      %v4159 = vsel %vm1424, %v4112, 0
      %v4162 = vsel %vm1424, %v4113, 0
      %v4165 = vsel %vm1424, %v4114, 0
      %v4168 = vsel %vm1424, %v4115, 0
      %v4171 = vsel %vm1424, %v4116, 0
      %4173 = vmatpush.msra.mxu0 0.0
      %4174 = vmatpush.msra.mxu0 0.0
      %4175 = vmatpush.msra.mxu0 0.0
      %4176 = vmatpush.msra.mxu0 0.0
      %4177 = vmatpush.msra.mxu0 0.0
      %4178 = vmatpush.msra.mxu0 0.0
      %4179 = vmatpush.msra.mxu0 0.0
      %4180 = vmatpush.msra.mxu0 0.0
      %4181 = vmatpush.msra.mxu0 %v4140
      %4182 = vmatpush.msra.mxu0 %v4138
      %4183 = vmatpush.msra.mxu0 %v4136
      %4184 = vmatpush.msra.mxu0 %v4134
      %4185 = vmatpush.msra.mxu0 %v4132
      %4186 = vmatpush.msra.mxu0 %v4130
      %4187 = vmatpush.msra.mxu0 %v4128
      %4188 = vmatpush.msra.mxu0 %v4126
      %4189 = vmatmul.f32.gmra.mxu0 %v4150
      %v4190 = vpop.f32.mrf.mxu0
      %v4191 = vadd.f32 0.0, %v4190
      %4192 = vmatmul.f32.gmra.mxu0 %v4153
      %v4193 = vpop.f32.mrf.mxu0
      %v4194 = vadd.f32 0.0, %v4193
      %4195 = vmatmul.f32.gmra.mxu0 %v4156
      %v4196 = vpop.f32.mrf.mxu0
      %v4197 = vadd.f32 0.0, %v4196
      %4198 = vmatmul.f32.gmra.mxu0 %v4159
      %v4199 = vpop.f32.mrf.mxu0
      %v4200 = vadd.f32 0.0, %v4199
      %4201 = vmatmul.f32.gmra.mxu0 %v4162
      %v4202 = vpop.f32.mrf.mxu0
      %v4203 = vadd.f32 0.0, %v4202
      %4204 = vmatmul.f32.gmra.mxu0 %v4165
      %v4205 = vpop.f32.mrf.mxu0
      %v4206 = vadd.f32 0.0, %v4205
      %4207 = vmatmul.f32.gmra.mxu0 %v4168
      %v4208 = vpop.f32.mrf.mxu0
      %v4209 = vadd.f32 0.0, %v4208
      %4210 = vmatmul.f32.gmra.mxu0 %v4171
      %v4211 = vpop.f32.mrf.mxu0
      %v4212 = vadd.f32 0.0, %v4211
      %4213 = vdwg.mxu0
      %4214 = vrot.lane.b32.xlu0 %v1206, 40
      %v4215 = vpop.permute.xlu0 %4214
      %4216 = vrot.lane.b32.xlu0 %v1209, 40
      %v4217 = vpop.permute.xlu0 %4216
      %4218 = vrot.lane.b32.xlu0 %v1212, 40
      %v4219 = vpop.permute.xlu0 %4218
      %4220 = vrot.lane.b32.xlu0 %v1215, 40
      %v4221 = vpop.permute.xlu0 %4220
      %4222 = vrot.lane.b32.xlu0 %v1218, 40
      %v4223 = vpop.permute.xlu0 %4222
      %4224 = vrot.lane.b32.xlu0 %v1221, 40
      %v4225 = vpop.permute.xlu0 %4224
      %4226 = vrot.lane.b32.xlu0 %v1224, 40
      %v4227 = vpop.permute.xlu0 %4226
      %4228 = vrot.lane.b32.xlu0 %v1227, 40
      %v4229 = vpop.permute.xlu0 %4228
      %v4239 = vsel %vm1424, %v4117, 0
      %v4242 = vsel %vm1424, %v4118, 0
      %v4245 = vsel %vm1424, %v4119, 0
      %v4248 = vsel %vm1424, %v4120, 0
      %v4251 = vsel %vm1424, %v4121, 0
      %v4254 = vsel %vm1424, %v4122, 0
      %v4257 = vsel %vm1424, %v4123, 0
      %v4260 = vsel %vm1424, %v4124, 0
      %4262 = vmatpush.msra.mxu0 0.0
      %4263 = vmatpush.msra.mxu0 0.0
      %4264 = vmatpush.msra.mxu0 0.0
      %4265 = vmatpush.msra.mxu0 0.0
      %4266 = vmatpush.msra.mxu0 0.0
      %4267 = vmatpush.msra.mxu0 0.0
      %4268 = vmatpush.msra.mxu0 0.0
      %4269 = vmatpush.msra.mxu0 0.0
      %4270 = vmatpush.msra.mxu0 %v4229
      %4271 = vmatpush.msra.mxu0 %v4227
      %4272 = vmatpush.msra.mxu0 %v4225
      %4273 = vmatpush.msra.mxu0 %v4223
      %4274 = vmatpush.msra.mxu0 %v4221
      %4275 = vmatpush.msra.mxu0 %v4219
      %4276 = vmatpush.msra.mxu0 %v4217
      %4277 = vmatpush.msra.mxu0 %v4215
      %4278 = vmatmul.f32.gmra.mxu0 %v4239
      %v4279 = vpop.f32.mrf.mxu0
      %v4280 = vadd.f32 0.0, %v4279
      %4281 = vmatmul.f32.gmra.mxu0 %v4242
      %v4282 = vpop.f32.mrf.mxu0
      %v4283 = vadd.f32 0.0, %v4282
      %4284 = vmatmul.f32.gmra.mxu0 %v4245
      %v4285 = vpop.f32.mrf.mxu0
      %v4286 = vadd.f32 0.0, %v4285
      %4287 = vmatmul.f32.gmra.mxu0 %v4248
      %v4288 = vpop.f32.mrf.mxu0
      %v4289 = vadd.f32 0.0, %v4288
      %4290 = vmatmul.f32.gmra.mxu0 %v4251
      %v4291 = vpop.f32.mrf.mxu0
      %v4292 = vadd.f32 0.0, %v4291
      %4293 = vmatmul.f32.gmra.mxu0 %v4254
      %v4294 = vpop.f32.mrf.mxu0
      %v4295 = vadd.f32 0.0, %v4294
      %4296 = vmatmul.f32.gmra.mxu0 %v4257
      %v4297 = vpop.f32.mrf.mxu0
      %v4298 = vadd.f32 0.0, %v4297
      %4299 = vmatmul.f32.gmra.mxu0 %v4260
      %v4300 = vpop.f32.mrf.mxu0
      %v4301 = vadd.f32 0.0, %v4300
      %4302 = vdwg.mxu0
      %4319 = vrot.lane.b32.xlu0 %v2647, 8
      %v4320 = vpop.permute.xlu0 %4319
      %4321 = vrot.lane.b32.xlu0 %v2650, 8
      %v4322 = vpop.permute.xlu0 %4321
      %4323 = vrot.lane.b32.xlu0 %v2653, 8
      %v4324 = vpop.permute.xlu0 %4323
      %4325 = vrot.lane.b32.xlu0 %v2656, 8
      %v4326 = vpop.permute.xlu0 %4325
      %4327 = vrot.lane.b32.xlu0 %v2659, 8
      %v4328 = vpop.permute.xlu0 %4327
      %4329 = vrot.lane.b32.xlu0 %v2662, 8
      %v4330 = vpop.permute.xlu0 %4329
      %4331 = vrot.lane.b32.xlu0 %v2665, 8
      %v4332 = vpop.permute.xlu0 %4331
      %4333 = vrot.lane.b32.xlu0 %v2668, 8
      %v4334 = vpop.permute.xlu0 %4333
      %4335 = vrot.lane.b32.xlu0 %v2736, 8
      %v4336 = vpop.permute.xlu0 %4335
      %4337 = vrot.lane.b32.xlu0 %v2739, 8
      %v4338 = vpop.permute.xlu0 %4337
      %4339 = vrot.lane.b32.xlu0 %v2742, 8
      %v4340 = vpop.permute.xlu0 %4339
      %4341 = vrot.lane.b32.xlu0 %v2745, 8
      %v4342 = vpop.permute.xlu0 %4341
      %4343 = vrot.lane.b32.xlu0 %v2748, 8
      %v4344 = vpop.permute.xlu0 %4343
      %4345 = vrot.lane.b32.xlu0 %v2751, 8
      %v4346 = vpop.permute.xlu0 %4345
      %4347 = vrot.lane.b32.xlu0 %v2754, 8
      %v4348 = vpop.permute.xlu0 %4347
      %4349 = vrot.lane.b32.xlu0 %v2757, 8
      %v4350 = vpop.permute.xlu0 %4349
      %4383 = vrot.lane.b32.xlu0 %v3419, 16
      %v4384 = vpop.permute.xlu0 %4383
      %4385 = vrot.lane.b32.xlu0 %v3422, 16
      %v4386 = vpop.permute.xlu0 %4385
      %4387 = vrot.lane.b32.xlu0 %v3425, 16
      %v4388 = vpop.permute.xlu0 %4387
      %4389 = vrot.lane.b32.xlu0 %v3428, 16
      %v4390 = vpop.permute.xlu0 %4389
      %4391 = vrot.lane.b32.xlu0 %v3431, 16
      %v4392 = vpop.permute.xlu0 %4391
      %4393 = vrot.lane.b32.xlu0 %v3434, 16
      %v4394 = vpop.permute.xlu0 %4393
      %4395 = vrot.lane.b32.xlu0 %v3437, 16
      %v4396 = vpop.permute.xlu0 %4395
      %4397 = vrot.lane.b32.xlu0 %v3440, 16
      %v4398 = vpop.permute.xlu0 %4397
      %4399 = vrot.lane.b32.xlu0 %v3508, 16
      %v4400 = vpop.permute.xlu0 %4399
      %4401 = vrot.lane.b32.xlu0 %v3511, 16
      %v4402 = vpop.permute.xlu0 %4401
      %4403 = vrot.lane.b32.xlu0 %v3514, 16
      %v4404 = vpop.permute.xlu0 %4403
      %4405 = vrot.lane.b32.xlu0 %v3517, 16
      %v4406 = vpop.permute.xlu0 %4405
      %4407 = vrot.lane.b32.xlu0 %v3520, 16
      %v4408 = vpop.permute.xlu0 %4407
      %4409 = vrot.lane.b32.xlu0 %v3523, 16
      %v4410 = vpop.permute.xlu0 %4409
      %4411 = vrot.lane.b32.xlu0 %v3526, 16
      %v4412 = vpop.permute.xlu0 %4411
      %4413 = vrot.lane.b32.xlu0 %v3529, 16
      %v4414 = vpop.permute.xlu0 %4413
      %4447 = vrot.lane.b32.xlu0 %v4191, 24
      %v4448 = vpop.permute.xlu0 %4447
      %4449 = vrot.lane.b32.xlu0 %v4194, 24
      %v4450 = vpop.permute.xlu0 %4449
      %4451 = vrot.lane.b32.xlu0 %v4197, 24
      %v4452 = vpop.permute.xlu0 %4451
      %4453 = vrot.lane.b32.xlu0 %v4200, 24
      %v4454 = vpop.permute.xlu0 %4453
      %4455 = vrot.lane.b32.xlu0 %v4203, 24
      %v4456 = vpop.permute.xlu0 %4455
      %4457 = vrot.lane.b32.xlu0 %v4206, 24
      %v4458 = vpop.permute.xlu0 %4457
      %4459 = vrot.lane.b32.xlu0 %v4209, 24
      %v4460 = vpop.permute.xlu0 %4459
      %4461 = vrot.lane.b32.xlu0 %v4212, 24
      %v4462 = vpop.permute.xlu0 %4461
      %4463 = vrot.lane.b32.xlu0 %v4280, 24
      %v4464 = vpop.permute.xlu0 %4463
      %4465 = vrot.lane.b32.xlu0 %v4283, 24
      %v4466 = vpop.permute.xlu0 %4465
      %4467 = vrot.lane.b32.xlu0 %v4286, 24
      %v4468 = vpop.permute.xlu0 %4467
      %4469 = vrot.lane.b32.xlu0 %v4289, 24
      %v4470 = vpop.permute.xlu0 %4469
      %4471 = vrot.lane.b32.xlu0 %v4292, 24
      %v4472 = vpop.permute.xlu0 %4471
      %4473 = vrot.lane.b32.xlu0 %v4295, 24
      %v4474 = vpop.permute.xlu0 %4473
      %4475 = vrot.lane.b32.xlu0 %v4298, 24
      %v4476 = vpop.permute.xlu0 %4475
      %4477 = vrot.lane.b32.xlu0 %v4301, 24
      %v4478 = vpop.permute.xlu0 %4477
      %v4495 = vsel %vm1253, %v1875, %v4320
      %v4496 = vsel %vm1253, %v1878, %v4322
      %v4497 = vsel %vm1253, %v1881, %v4324
      %v4498 = vsel %vm1253, %v1884, %v4326
      %v4499 = vsel %vm1253, %v1887, %v4328
      %v4500 = vsel %vm1253, %v1890, %v4330
      %v4501 = vsel %vm1253, %v1893, %v4332
      %v4502 = vsel %vm1253, %v1896, %v4334
      %v4503 = vsel %vm1253, %v1964, %v4336
      %v4504 = vsel %vm1253, %v1967, %v4338
      %v4505 = vsel %vm1253, %v1970, %v4340
      %v4506 = vsel %vm1253, %v1973, %v4342
      %v4507 = vsel %vm1253, %v1976, %v4344
      %v4508 = vsel %vm1253, %v1979, %v4346
      %v4509 = vsel %vm1253, %v1982, %v4348
      %v4510 = vsel %vm1253, %v1985, %v4350
      %vm4511 = vcmask 130048
      %v4512 = vsel %vm4511, %v4495, %v4384
      %v4513 = vsel %vm4511, %v4496, %v4386
      %v4514 = vsel %vm4511, %v4497, %v4388
      %v4515 = vsel %vm4511, %v4498, %v4390
      %v4516 = vsel %vm4511, %v4499, %v4392
      %v4517 = vsel %vm4511, %v4500, %v4394
      %v4518 = vsel %vm4511, %v4501, %v4396
      %v4519 = vsel %vm4511, %v4502, %v4398
      %v4520 = vsel %vm4511, %v4503, %v4400
      %v4521 = vsel %vm4511, %v4504, %v4402
      %v4522 = vsel %vm4511, %v4505, %v4404
      %v4523 = vsel %vm4511, %v4506, %v4406
      %v4524 = vsel %vm4511, %v4507, %v4408
      %v4525 = vsel %vm4511, %v4508, %v4410
      %v4526 = vsel %vm4511, %v4509, %v4412
      %v4527 = vsel %vm4511, %v4510, %v4414
      %vm4528 = vcmask 195584
      %v4529 = vsel %vm4528, %v4512, %v4448
      %v4530 = vsel %vm4528, %v4513, %v4450
      %v4531 = vsel %vm4528, %v4514, %v4452
      %v4532 = vsel %vm4528, %v4515, %v4454
      %v4533 = vsel %vm4528, %v4516, %v4456
      %v4534 = vsel %vm4528, %v4517, %v4458
      %v4535 = vsel %vm4528, %v4518, %v4460
      %v4536 = vsel %vm4528, %v4519, %v4462
      %v4537 = vsel %vm4528, %v4520, %v4464
      %v4538 = vsel %vm4528, %v4521, %v4466
      %v4539 = vsel %vm4528, %v4522, %v4468
      %v4540 = vsel %vm4528, %v4523, %v4470
      %v4541 = vsel %vm4528, %v4524, %v4472
      %v4542 = vsel %vm4528, %v4525, %v4474
      %v4543 = vsel %vm4528, %v4526, %v4476
      %v4544 = vsel %vm4528, %v4527, %v4478
      %v4545 = vld [vmem:[%s572] sm:$0xff]
      %v4546 = vld [vmem:[%s572 + $0x8] sm:$0xff]
      %v4547 = vld [vmem:[%s572 + $0x10] sm:$0xff]
      %v4548 = vld [vmem:[%s572 + $0x18] sm:$0xff]
      %v4549 = vld [vmem:[%s575] sm:$0x1]
      %v4551 = vperm.slane %v4549, 0
      %v4554 = vsel %vm710, %v4529, 0
      %v4557 = vsel %vm710, %v4530, 0
      %v4560 = vsel %vm710, %v4531, 0
      %v4563 = vsel %vm710, %v4532, 0
      %v4566 = vsel %vm710, %v4533, 0
      %v4569 = vsel %vm710, %v4534, 0
      %v4572 = vsel %vm710, %v4535, 0
      %v4575 = vsel %vm710, %v4536, 0
      %v4578 = vsel %vm710, %v4537, 0
      %v4581 = vsel %vm710, %v4538, 0
      %v4584 = vsel %vm710, %v4539, 0
      %v4587 = vsel %vm710, %v4540, 0
      %v4590 = vsel %vm710, %v4541, 0
      %v4593 = vsel %vm710, %v4542, 0
      %v4596 = vsel %vm710, %v4543, 0
      %v4599 = vsel %vm710, %v4544, 0
      %4601 = vmatpush.msra.mxu0 0.0
      %4602 = vmatpush.msra.mxu0 0.0
      %4603 = vmatpush.msra.mxu0 0.0
      %4604 = vmatpush.msra.mxu0 0.0
      %4605 = vmatpush.msra.mxu0 0.0
      %4606 = vmatpush.msra.mxu0 0.0
      %4607 = vmatpush.msra.mxu0 0.0
      %4608 = vmatpush.msra.mxu0 0.0
      %4609 = vmatpush.msra.mxu0 0.0
      %4610 = vmatpush.msra.mxu0 0.0
      %4611 = vmatpush.msra.mxu0 0.0
      %4612 = vmatpush.msra.mxu0 0.0
      %4613 = vmatpush.msra.mxu0 %v4548
      %4614 = vmatpush.msra.mxu0 %v4547
      %4615 = vmatpush.msra.mxu0 %v4546
      %4616 = vmatpush.msra.mxu0 %v4545
      %4617 = vmatmul.f32.gmra.mxu0 %v4554
      %v4618 = vpop.f32.mrf.mxu0
      %v4619 = vadd.f32 %v4551, %v4618
      %4620 = vmatmul.f32.gmra.mxu0 %v4557
      %v4621 = vpop.f32.mrf.mxu0
      %v4622 = vadd.f32 %v4551, %v4621
      %4623 = vmatmul.f32.gmra.mxu0 %v4560
      %v4624 = vpop.f32.mrf.mxu0
      %v4625 = vadd.f32 %v4551, %v4624
      %4626 = vmatmul.f32.gmra.mxu0 %v4563
      %v4627 = vpop.f32.mrf.mxu0
      %v4628 = vadd.f32 %v4551, %v4627
      %4629 = vmatmul.f32.gmra.mxu0 %v4566
      %v4630 = vpop.f32.mrf.mxu0
      %v4631 = vadd.f32 %v4551, %v4630
      %4632 = vmatmul.f32.gmra.mxu0 %v4569
      %v4633 = vpop.f32.mrf.mxu0
      %v4634 = vadd.f32 %v4551, %v4633
      %4635 = vmatmul.f32.gmra.mxu0 %v4572
      %v4636 = vpop.f32.mrf.mxu0
      %v4637 = vadd.f32 %v4551, %v4636
      %4638 = vmatmul.f32.gmra.mxu0 %v4575
      %v4639 = vpop.f32.mrf.mxu0
      %v4640 = vadd.f32 %v4551, %v4639
      %4641 = vmatmul.f32.gmra.mxu0 %v4578
      %v4642 = vpop.f32.mrf.mxu0
      %v4643 = vadd.f32 %v4551, %v4642
      %4644 = vmatmul.f32.gmra.mxu0 %v4581
      %v4645 = vpop.f32.mrf.mxu0
      %v4646 = vadd.f32 %v4551, %v4645
      %4647 = vmatmul.f32.gmra.mxu0 %v4584
      %v4648 = vpop.f32.mrf.mxu0
      %v4649 = vadd.f32 %v4551, %v4648
      %4650 = vmatmul.f32.gmra.mxu0 %v4587
      %v4651 = vpop.f32.mrf.mxu0
      %v4652 = vadd.f32 %v4551, %v4651
      %4653 = vmatmul.f32.gmra.mxu0 %v4590
      %v4654 = vpop.f32.mrf.mxu0
      %v4655 = vadd.f32 %v4551, %v4654
      %4656 = vmatmul.f32.gmra.mxu0 %v4593
      %v4657 = vpop.f32.mrf.mxu0
      %v4658 = vadd.f32 %v4551, %v4657
      %4659 = vmatmul.f32.gmra.mxu0 %v4596
      %v4660 = vpop.f32.mrf.mxu0
      %v4661 = vadd.f32 %v4551, %v4660
      %4662 = vmatmul.f32.gmra.mxu0 %v4599
      %v4663 = vpop.f32.mrf.mxu0
      %v4664 = vadd.f32 %v4551, %v4663
      %4665 = vdwg.mxu0
      %v4666 = vadd.f32 %v692, %v4619
      %v4667 = vadd.f32 %v693, %v4622
      %v4668 = vadd.f32 %v694, %v4625
      %v4669 = vadd.f32 %v695, %v4628
      %v4670 = vadd.f32 %v696, %v4631
      %v4671 = vadd.f32 %v697, %v4634
      %v4672 = vadd.f32 %v698, %v4637
      %v4673 = vadd.f32 %v699, %v4640
      %v4674 = vadd.f32 %v700, %v4643
      %v4675 = vadd.f32 %v701, %v4646
      %v4676 = vadd.f32 %v702, %v4649
      %v4677 = vadd.f32 %v703, %v4652
      %v4678 = vadd.f32 %v704, %v4655
      %v4679 = vadd.f32 %v705, %v4658
      %v4680 = vadd.f32 %v706, %v4661
      %v4681 = vadd.f32 %v707, %v4664
      %v4682 = vld [vmem:[%s578] sm:$0x1]
      %v4683 = vld [vmem:[%s581] sm:$0x1]
      %v4684 = vsel %vm710, %v4666, 0.0
      %4685 = vadd.xlane.f32.xlu0 %v4684
      %v4686 = vpop.xlane.xlu0 %4685
      %v4687 = vsel %vm710, %v4667, 0.0
      %4688 = vadd.xlane.f32.xlu0 %v4687
      %v4689 = vpop.xlane.xlu0 %4688
      %v4690 = vsel %vm710, %v4668, 0.0
      %4691 = vadd.xlane.f32.xlu0 %v4690
      %v4692 = vpop.xlane.xlu0 %4691
      %v4693 = vsel %vm710, %v4669, 0.0
      %4694 = vadd.xlane.f32.xlu0 %v4693
      %v4695 = vpop.xlane.xlu0 %4694
      %v4696 = vsel %vm710, %v4670, 0.0
      %4697 = vadd.xlane.f32.xlu0 %v4696
      %v4698 = vpop.xlane.xlu0 %4697
      %v4699 = vsel %vm710, %v4671, 0.0
      %4700 = vadd.xlane.f32.xlu0 %v4699
      %v4701 = vpop.xlane.xlu0 %4700
      %v4702 = vsel %vm710, %v4672, 0.0
      %4703 = vadd.xlane.f32.xlu0 %v4702
      %v4704 = vpop.xlane.xlu0 %4703
      %v4705 = vsel %vm710, %v4673, 0.0
      %4706 = vadd.xlane.f32.xlu0 %v4705
      %v4707 = vpop.xlane.xlu0 %4706
      %v4708 = vsel %vm710, %v4674, 0.0
      %4709 = vadd.xlane.f32.xlu0 %v4708
      %v4710 = vpop.xlane.xlu0 %4709
      %v4711 = vsel %vm710, %v4675, 0.0
      %4712 = vadd.xlane.f32.xlu0 %v4711
      %v4713 = vpop.xlane.xlu0 %4712
      %v4714 = vsel %vm710, %v4676, 0.0
      %4715 = vadd.xlane.f32.xlu0 %v4714
      %v4716 = vpop.xlane.xlu0 %4715
      %v4717 = vsel %vm710, %v4677, 0.0
      %4718 = vadd.xlane.f32.xlu0 %v4717
      %v4719 = vpop.xlane.xlu0 %4718
      %v4720 = vsel %vm710, %v4678, 0.0
      %4721 = vadd.xlane.f32.xlu0 %v4720
      %v4722 = vpop.xlane.xlu0 %4721
      %v4723 = vsel %vm710, %v4679, 0.0
      %4724 = vadd.xlane.f32.xlu0 %v4723
      %v4725 = vpop.xlane.xlu0 %4724
      %v4726 = vsel %vm710, %v4680, 0.0
      %4727 = vadd.xlane.f32.xlu0 %v4726
      %v4728 = vpop.xlane.xlu0 %4727
      %v4729 = vsel %vm710, %v4681, 0.0
      %4730 = vadd.xlane.f32.xlu0 %v4729
      %v4731 = vpop.xlane.xlu0 %4730
      %v4732 = vmul.f32 %v4686, %v765
      %v4733 = vmul.f32 %v4689, %v765
      %v4734 = vmul.f32 %v4692, %v765
      %v4735 = vmul.f32 %v4695, %v765
      %v4736 = vmul.f32 %v4698, %v765
      %v4737 = vmul.f32 %v4701, %v765
      %v4738 = vmul.f32 %v4704, %v765
      %v4739 = vmul.f32 %v4707, %v765
      %v4740 = vmul.f32 %v4710, %v765
      %v4741 = vmul.f32 %v4713, %v765
      %v4742 = vmul.f32 %v4716, %v765
      %v4743 = vmul.f32 %v4719, %v765
      %v4744 = vmul.f32 %v4722, %v765
      %v4745 = vmul.f32 %v4725, %v765
      %v4746 = vmul.f32 %v4728, %v765
      %v4747 = vmul.f32 %v4731, %v765
      %v4748 = vsub.f32 %v4666, %v4732
      %v4749 = vsub.f32 %v4667, %v4733
      %v4750 = vsub.f32 %v4668, %v4734
      %v4751 = vsub.f32 %v4669, %v4735
      %v4752 = vsub.f32 %v4670, %v4736
      %v4753 = vsub.f32 %v4671, %v4737
      %v4754 = vsub.f32 %v4672, %v4738
      %v4755 = vsub.f32 %v4673, %v4739
      %v4756 = vsub.f32 %v4674, %v4740
      %v4757 = vsub.f32 %v4675, %v4741
      %v4758 = vsub.f32 %v4676, %v4742
      %v4759 = vsub.f32 %v4677, %v4743
      %v4760 = vsub.f32 %v4678, %v4744
      %v4761 = vsub.f32 %v4679, %v4745
      %v4762 = vsub.f32 %v4680, %v4746
      %v4763 = vsub.f32 %v4681, %v4747
      %v4764 = vmul.f32 %v4748, %v4748
      %v4765 = vmul.f32 %v4749, %v4749
      %v4766 = vmul.f32 %v4750, %v4750
      %v4767 = vmul.f32 %v4751, %v4751
      %v4768 = vmul.f32 %v4752, %v4752
      %v4769 = vmul.f32 %v4753, %v4753
      %v4770 = vmul.f32 %v4754, %v4754
      %v4771 = vmul.f32 %v4755, %v4755
      %v4772 = vmul.f32 %v4756, %v4756
      %v4773 = vmul.f32 %v4757, %v4757
      %v4774 = vmul.f32 %v4758, %v4758
      %v4775 = vmul.f32 %v4759, %v4759
      %v4776 = vmul.f32 %v4760, %v4760
      %v4777 = vmul.f32 %v4761, %v4761
      %v4778 = vmul.f32 %v4762, %v4762
      %v4779 = vmul.f32 %v4763, %v4763
      %v4780 = vsel %vm710, %v4764, 0.0
      %4781 = vadd.xlane.f32.xlu0 %v4780
      %v4782 = vpop.xlane.xlu0 %4781
      %v4783 = vsel %vm710, %v4765, 0.0
      %4784 = vadd.xlane.f32.xlu0 %v4783
      %v4785 = vpop.xlane.xlu0 %4784
      %v4786 = vsel %vm710, %v4766, 0.0
      %4787 = vadd.xlane.f32.xlu0 %v4786
      %v4788 = vpop.xlane.xlu0 %4787
      %v4789 = vsel %vm710, %v4767, 0.0
      %4790 = vadd.xlane.f32.xlu0 %v4789
      %v4791 = vpop.xlane.xlu0 %4790
      %v4792 = vsel %vm710, %v4768, 0.0
      %4793 = vadd.xlane.f32.xlu0 %v4792
      %v4794 = vpop.xlane.xlu0 %4793
      %v4795 = vsel %vm710, %v4769, 0.0
      %4796 = vadd.xlane.f32.xlu0 %v4795
      %v4797 = vpop.xlane.xlu0 %4796
      %v4798 = vsel %vm710, %v4770, 0.0
      %4799 = vadd.xlane.f32.xlu0 %v4798
      %v4800 = vpop.xlane.xlu0 %4799
      %v4801 = vsel %vm710, %v4771, 0.0
      %4802 = vadd.xlane.f32.xlu0 %v4801
      %v4803 = vpop.xlane.xlu0 %4802
      %v4804 = vsel %vm710, %v4772, 0.0
      %4805 = vadd.xlane.f32.xlu0 %v4804
      %v4806 = vpop.xlane.xlu0 %4805
      %v4807 = vsel %vm710, %v4773, 0.0
      %4808 = vadd.xlane.f32.xlu0 %v4807
      %v4809 = vpop.xlane.xlu0 %4808
      %v4810 = vsel %vm710, %v4774, 0.0
      %4811 = vadd.xlane.f32.xlu0 %v4810
      %v4812 = vpop.xlane.xlu0 %4811
      %v4813 = vsel %vm710, %v4775, 0.0
      %4814 = vadd.xlane.f32.xlu0 %v4813
      %v4815 = vpop.xlane.xlu0 %4814
      %v4816 = vsel %vm710, %v4776, 0.0
      %4817 = vadd.xlane.f32.xlu0 %v4816
      %v4818 = vpop.xlane.xlu0 %4817
      %v4819 = vsel %vm710, %v4777, 0.0
      %4820 = vadd.xlane.f32.xlu0 %v4819
      %v4821 = vpop.xlane.xlu0 %4820
      %v4822 = vsel %vm710, %v4778, 0.0
      %4823 = vadd.xlane.f32.xlu0 %v4822
      %v4824 = vpop.xlane.xlu0 %4823
      %v4825 = vsel %vm710, %v4779, 0.0
      %4826 = vadd.xlane.f32.xlu0 %v4825
      %v4827 = vpop.xlane.xlu0 %4826
      %v4828 = vmul.f32 %v4782, %v765
      %v4829 = vmul.f32 %v4785, %v765
      %v4830 = vmul.f32 %v4788, %v765
      %v4831 = vmul.f32 %v4791, %v765
      %v4832 = vmul.f32 %v4794, %v765
      %v4833 = vmul.f32 %v4797, %v765
      %v4834 = vmul.f32 %v4800, %v765
      %v4835 = vmul.f32 %v4803, %v765
      %v4836 = vmul.f32 %v4806, %v765
      %v4837 = vmul.f32 %v4809, %v765
      %v4838 = vmul.f32 %v4812, %v765
      %v4839 = vmul.f32 %v4815, %v765
      %v4840 = vmul.f32 %v4818, %v765
      %v4841 = vmul.f32 %v4821, %v765
      %v4842 = vmul.f32 %v4824, %v765
      %v4843 = vmul.f32 %v4827, %v765
      %v4844 = vadd.f32 %v4828, 1e-05
      %v4845 = vadd.f32 %v4829, 1e-05
      %v4846 = vadd.f32 %v4830, 1e-05
      %v4847 = vadd.f32 %v4831, 1e-05
      %v4848 = vadd.f32 %v4832, 1e-05
      %v4849 = vadd.f32 %v4833, 1e-05
      %v4850 = vadd.f32 %v4834, 1e-05
      %v4851 = vadd.f32 %v4835, 1e-05
      %v4852 = vadd.f32 %v4836, 1e-05
      %v4853 = vadd.f32 %v4837, 1e-05
      %v4854 = vadd.f32 %v4838, 1e-05
      %v4855 = vadd.f32 %v4839, 1e-05
      %v4856 = vadd.f32 %v4840, 1e-05
      %v4857 = vadd.f32 %v4841, 1e-05
      %v4858 = vadd.f32 %v4842, 1e-05
      %v4859 = vadd.f32 %v4843, 1e-05
      %v4860 = vrsqrt.pop %v4844
      %v4861 = vmul.f32 %v4860, %v4844
      %v4862 = vmul.f32 %v4861, %v4860
      %v4863 = vmul.f32 0.5, %v4862
      %v4864 = vsub.f32 1.5, %v4863
      %v4865 = vmul.f32 %v4860, %v4864
      %vm4866 = vweird.f32 %v4844
      %vm4867 = vweird.f32 %v4860
      %vm4868 = vmor %vm4866, %vm4867
      %v4869 = vsel %vm4868, %v4860, %v4865
      %v4870 = vrsqrt.pop %v4845
      %v4871 = vmul.f32 %v4870, %v4845
      %v4872 = vmul.f32 %v4871, %v4870
      %v4873 = vmul.f32 0.5, %v4872
      %v4874 = vsub.f32 1.5, %v4873
      %v4875 = vmul.f32 %v4870, %v4874
      %vm4876 = vweird.f32 %v4845
      %vm4877 = vweird.f32 %v4870
      %vm4878 = vmor %vm4876, %vm4877
      %v4879 = vsel %vm4878, %v4870, %v4875
      %v4880 = vrsqrt.pop %v4846
      %v4881 = vmul.f32 %v4880, %v4846
      %v4882 = vmul.f32 %v4881, %v4880
      %v4883 = vmul.f32 0.5, %v4882
      %v4884 = vsub.f32 1.5, %v4883
      %v4885 = vmul.f32 %v4880, %v4884
      %vm4886 = vweird.f32 %v4846
      %vm4887 = vweird.f32 %v4880
      %vm4888 = vmor %vm4886, %vm4887
      %v4889 = vsel %vm4888, %v4880, %v4885
      %v4890 = vrsqrt.pop %v4847
      %v4891 = vmul.f32 %v4890, %v4847
      %v4892 = vmul.f32 %v4891, %v4890
      %v4893 = vmul.f32 0.5, %v4892
      %v4894 = vsub.f32 1.5, %v4893
      %v4895 = vmul.f32 %v4890, %v4894
      %vm4896 = vweird.f32 %v4847
      %vm4897 = vweird.f32 %v4890
      %vm4898 = vmor %vm4896, %vm4897
      %v4899 = vsel %vm4898, %v4890, %v4895
      %v4900 = vrsqrt.pop %v4848
      %v4901 = vmul.f32 %v4900, %v4848
      %v4902 = vmul.f32 %v4901, %v4900
      %v4903 = vmul.f32 0.5, %v4902
      %v4904 = vsub.f32 1.5, %v4903
      %v4905 = vmul.f32 %v4900, %v4904
      %vm4906 = vweird.f32 %v4848
      %vm4907 = vweird.f32 %v4900
      %vm4908 = vmor %vm4906, %vm4907
      %v4909 = vsel %vm4908, %v4900, %v4905
      %v4910 = vrsqrt.pop %v4849
      %v4911 = vmul.f32 %v4910, %v4849
      %v4912 = vmul.f32 %v4911, %v4910
      %v4913 = vmul.f32 0.5, %v4912
      %v4914 = vsub.f32 1.5, %v4913
      %v4915 = vmul.f32 %v4910, %v4914
      %vm4916 = vweird.f32 %v4849
      %vm4917 = vweird.f32 %v4910
      %vm4918 = vmor %vm4916, %vm4917
      %v4919 = vsel %vm4918, %v4910, %v4915
      %v4920 = vrsqrt.pop %v4850
      %v4921 = vmul.f32 %v4920, %v4850
      %v4922 = vmul.f32 %v4921, %v4920
      %v4923 = vmul.f32 0.5, %v4922
      %v4924 = vsub.f32 1.5, %v4923
      %v4925 = vmul.f32 %v4920, %v4924
      %vm4926 = vweird.f32 %v4850
      %vm4927 = vweird.f32 %v4920
      %vm4928 = vmor %vm4926, %vm4927
      %v4929 = vsel %vm4928, %v4920, %v4925
      %v4930 = vrsqrt.pop %v4851
      %v4931 = vmul.f32 %v4930, %v4851
      %v4932 = vmul.f32 %v4931, %v4930
      %v4933 = vmul.f32 0.5, %v4932
      %v4934 = vsub.f32 1.5, %v4933
      %v4935 = vmul.f32 %v4930, %v4934
      %vm4936 = vweird.f32 %v4851
      %vm4937 = vweird.f32 %v4930
      %vm4938 = vmor %vm4936, %vm4937
      %v4939 = vsel %vm4938, %v4930, %v4935
      %v4940 = vrsqrt.pop %v4852
      %v4941 = vmul.f32 %v4940, %v4852
      %v4942 = vmul.f32 %v4941, %v4940
      %v4943 = vmul.f32 0.5, %v4942
      %v4944 = vsub.f32 1.5, %v4943
      %v4945 = vmul.f32 %v4940, %v4944
      %vm4946 = vweird.f32 %v4852
      %vm4947 = vweird.f32 %v4940
      %vm4948 = vmor %vm4946, %vm4947
      %v4949 = vsel %vm4948, %v4940, %v4945
      %v4950 = vrsqrt.pop %v4853
      %v4951 = vmul.f32 %v4950, %v4853
      %v4952 = vmul.f32 %v4951, %v4950
      %v4953 = vmul.f32 0.5, %v4952
      %v4954 = vsub.f32 1.5, %v4953
      %v4955 = vmul.f32 %v4950, %v4954
      %vm4956 = vweird.f32 %v4853
      %vm4957 = vweird.f32 %v4950
      %vm4958 = vmor %vm4956, %vm4957
      %v4959 = vsel %vm4958, %v4950, %v4955
      %v4960 = vrsqrt.pop %v4854
      %v4961 = vmul.f32 %v4960, %v4854
      %v4962 = vmul.f32 %v4961, %v4960
      %v4963 = vmul.f32 0.5, %v4962
      %v4964 = vsub.f32 1.5, %v4963
      %v4965 = vmul.f32 %v4960, %v4964
      %vm4966 = vweird.f32 %v4854
      %vm4967 = vweird.f32 %v4960
      %vm4968 = vmor %vm4966, %vm4967
      %v4969 = vsel %vm4968, %v4960, %v4965
      %v4970 = vrsqrt.pop %v4855
      %v4971 = vmul.f32 %v4970, %v4855
      %v4972 = vmul.f32 %v4971, %v4970
      %v4973 = vmul.f32 0.5, %v4972
      %v4974 = vsub.f32 1.5, %v4973
      %v4975 = vmul.f32 %v4970, %v4974
      %vm4976 = vweird.f32 %v4855
      %vm4977 = vweird.f32 %v4970
      %vm4978 = vmor %vm4976, %vm4977
      %v4979 = vsel %vm4978, %v4970, %v4975
      %v4980 = vrsqrt.pop %v4856
      %v4981 = vmul.f32 %v4980, %v4856
      %v4982 = vmul.f32 %v4981, %v4980
      %v4983 = vmul.f32 0.5, %v4982
      %v4984 = vsub.f32 1.5, %v4983
      %v4985 = vmul.f32 %v4980, %v4984
      %vm4986 = vweird.f32 %v4856
      %vm4987 = vweird.f32 %v4980
      %vm4988 = vmor %vm4986, %vm4987
      %v4989 = vsel %vm4988, %v4980, %v4985
      %v4990 = vrsqrt.pop %v4857
      %v4991 = vmul.f32 %v4990, %v4857
      %v4992 = vmul.f32 %v4991, %v4990
      %v4993 = vmul.f32 0.5, %v4992
      %v4994 = vsub.f32 1.5, %v4993
      %v4995 = vmul.f32 %v4990, %v4994
      %vm4996 = vweird.f32 %v4857
      %vm4997 = vweird.f32 %v4990
      %vm4998 = vmor %vm4996, %vm4997
      %v4999 = vsel %vm4998, %v4990, %v4995
      %v5000 = vrsqrt.pop %v4858
      %v5001 = vmul.f32 %v5000, %v4858
      %v5002 = vmul.f32 %v5001, %v5000
      %v5003 = vmul.f32 0.5, %v5002
      %v5004 = vsub.f32 1.5, %v5003
      %v5005 = vmul.f32 %v5000, %v5004
      %vm5006 = vweird.f32 %v4858
      %vm5007 = vweird.f32 %v5000
      %vm5008 = vmor %vm5006, %vm5007
      %v5009 = vsel %vm5008, %v5000, %v5005
      %v5010 = vrsqrt.pop %v4859
      %v5011 = vmul.f32 %v5010, %v4859
      %v5012 = vmul.f32 %v5011, %v5010
      %v5013 = vmul.f32 0.5, %v5012
      %v5014 = vsub.f32 1.5, %v5013
      %v5015 = vmul.f32 %v5010, %v5014
      %vm5016 = vweird.f32 %v4859
      %vm5017 = vweird.f32 %v5010
      %vm5018 = vmor %vm5016, %vm5017
      %v5019 = vsel %vm5018, %v5010, %v5015
      %v5020 = vmul.f32 %v4748, %v4869
      %v5021 = vmul.f32 %v4749, %v4879
      %v5022 = vmul.f32 %v4750, %v4889
      %v5023 = vmul.f32 %v4751, %v4899
      %v5024 = vmul.f32 %v4752, %v4909
      %v5025 = vmul.f32 %v4753, %v4919
      %v5026 = vmul.f32 %v4754, %v4929
      %v5027 = vmul.f32 %v4755, %v4939
      %v5028 = vmul.f32 %v4756, %v4949
      %v5029 = vmul.f32 %v4757, %v4959
      %v5030 = vmul.f32 %v4758, %v4969
      %v5031 = vmul.f32 %v4759, %v4979
      %v5032 = vmul.f32 %v4760, %v4989
      %v5033 = vmul.f32 %v4761, %v4999
      %v5034 = vmul.f32 %v4762, %v5009
      %v5035 = vmul.f32 %v4763, %v5019
      %v5037 = vperm.slane %v4682, 0
      %v5039 = vmul.f32 %v5020, %v5037
      %v5040 = vmul.f32 %v5021, %v5037
      %v5041 = vmul.f32 %v5022, %v5037
      %v5042 = vmul.f32 %v5023, %v5037
      %v5043 = vmul.f32 %v5024, %v5037
      %v5044 = vmul.f32 %v5025, %v5037
      %v5045 = vmul.f32 %v5026, %v5037
      %v5046 = vmul.f32 %v5027, %v5037
      %v5047 = vmul.f32 %v5028, %v5037
      %v5048 = vmul.f32 %v5029, %v5037
      %v5049 = vmul.f32 %v5030, %v5037
      %v5050 = vmul.f32 %v5031, %v5037
      %v5051 = vmul.f32 %v5032, %v5037
      %v5052 = vmul.f32 %v5033, %v5037
      %v5053 = vmul.f32 %v5034, %v5037
      %v5054 = vmul.f32 %v5035, %v5037
      %v5056 = vperm.slane %v4683, 0
      %v5058 = vadd.f32 %v5039, %v5056
      %v5059 = vadd.f32 %v5040, %v5056
      %v5060 = vadd.f32 %v5041, %v5056
      %v5061 = vadd.f32 %v5042, %v5056
      %v5062 = vadd.f32 %v5043, %v5056
      %v5063 = vadd.f32 %v5044, %v5056
      %v5064 = vadd.f32 %v5045, %v5056
      %v5065 = vadd.f32 %v5046, %v5056
      %v5066 = vadd.f32 %v5047, %v5056
      %v5067 = vadd.f32 %v5048, %v5056
      %v5068 = vadd.f32 %v5049, %v5056
      %v5069 = vadd.f32 %v5050, %v5056
      %v5070 = vadd.f32 %v5051, %v5056
      %v5071 = vadd.f32 %v5052, %v5056
      %v5072 = vadd.f32 %v5053, %v5056
      %v5073 = vadd.f32 %v5054, %v5056
      %v5074 = vld [vmem:[%s586] sm:$0xff]
      %v5075 = vld [vmem:[%s586 + $0x8] sm:$0xff]
      %v5076 = vld [vmem:[%s586 + $0x10] sm:$0xff]
      %v5077 = vld [vmem:[%s586 + $0x18] sm:$0xff]
      %v5078 = vld [vmem:[%s589] sm:$0x1]
      %v5080 = vperm.slane %v5078, 0
      %v5083 = vsel %vm710, %v5058, 0
      %v5086 = vsel %vm710, %v5059, 0
      %v5089 = vsel %vm710, %v5060, 0
      %v5092 = vsel %vm710, %v5061, 0
      %v5095 = vsel %vm710, %v5062, 0
      %v5098 = vsel %vm710, %v5063, 0
      %v5101 = vsel %vm710, %v5064, 0
      %v5104 = vsel %vm710, %v5065, 0
      %v5107 = vsel %vm710, %v5066, 0
      %v5110 = vsel %vm710, %v5067, 0
      %v5113 = vsel %vm710, %v5068, 0
      %v5116 = vsel %vm710, %v5069, 0
      %v5119 = vsel %vm710, %v5070, 0
      %v5122 = vsel %vm710, %v5071, 0
      %v5125 = vsel %vm710, %v5072, 0
      %v5128 = vsel %vm710, %v5073, 0
      %5130 = vmatpush.msra.mxu0 0.0
      %5131 = vmatpush.msra.mxu0 0.0
      %5132 = vmatpush.msra.mxu0 0.0
      %5133 = vmatpush.msra.mxu0 0.0
      %5134 = vmatpush.msra.mxu0 0.0
      %5135 = vmatpush.msra.mxu0 0.0
      %5136 = vmatpush.msra.mxu0 0.0
      %5137 = vmatpush.msra.mxu0 0.0
      %5138 = vmatpush.msra.mxu0 0.0
      %5139 = vmatpush.msra.mxu0 0.0
      %5140 = vmatpush.msra.mxu0 0.0
      %5141 = vmatpush.msra.mxu0 0.0
      %5142 = vmatpush.msra.mxu0 %v5077
      %5143 = vmatpush.msra.mxu0 %v5076
      %5144 = vmatpush.msra.mxu0 %v5075
      %5145 = vmatpush.msra.mxu0 %v5074
      %5146 = vmatmul.f32.gmra.mxu0 %v5083
      %v5147 = vpop.f32.mrf.mxu0
      %v5148 = vadd.f32 %v5080, %v5147
      %5149 = vmatmul.f32.gmra.mxu0 %v5086
      %v5150 = vpop.f32.mrf.mxu0
      %v5151 = vadd.f32 %v5080, %v5150
      %5152 = vmatmul.f32.gmra.mxu0 %v5089
      %v5153 = vpop.f32.mrf.mxu0
      %v5154 = vadd.f32 %v5080, %v5153
      %5155 = vmatmul.f32.gmra.mxu0 %v5092
      %v5156 = vpop.f32.mrf.mxu0
      %v5157 = vadd.f32 %v5080, %v5156
      %5158 = vmatmul.f32.gmra.mxu0 %v5095
      %v5159 = vpop.f32.mrf.mxu0
      %v5160 = vadd.f32 %v5080, %v5159
      %5161 = vmatmul.f32.gmra.mxu0 %v5098
      %v5162 = vpop.f32.mrf.mxu0
      %v5163 = vadd.f32 %v5080, %v5162
      %5164 = vmatmul.f32.gmra.mxu0 %v5101
      %v5165 = vpop.f32.mrf.mxu0
      %v5166 = vadd.f32 %v5080, %v5165
      %5167 = vmatmul.f32.gmra.mxu0 %v5104
      %v5168 = vpop.f32.mrf.mxu0
      %v5169 = vadd.f32 %v5080, %v5168
      %5170 = vmatmul.f32.gmra.mxu0 %v5107
      %v5171 = vpop.f32.mrf.mxu0
      %v5172 = vadd.f32 %v5080, %v5171
      %5173 = vmatmul.f32.gmra.mxu0 %v5110
      %v5174 = vpop.f32.mrf.mxu0
      %v5175 = vadd.f32 %v5080, %v5174
      %5176 = vmatmul.f32.gmra.mxu0 %v5113
      %v5177 = vpop.f32.mrf.mxu0
      %v5178 = vadd.f32 %v5080, %v5177
      %5179 = vmatmul.f32.gmra.mxu0 %v5116
      %v5180 = vpop.f32.mrf.mxu0
      %v5181 = vadd.f32 %v5080, %v5180
      %5182 = vmatmul.f32.gmra.mxu0 %v5119
      %v5183 = vpop.f32.mrf.mxu0
      %v5184 = vadd.f32 %v5080, %v5183
      %5185 = vmatmul.f32.gmra.mxu0 %v5122
      %v5186 = vpop.f32.mrf.mxu0
      %v5187 = vadd.f32 %v5080, %v5186
      %5188 = vmatmul.f32.gmra.mxu0 %v5125
      %v5189 = vpop.f32.mrf.mxu0
      %v5190 = vadd.f32 %v5080, %v5189
      %5191 = vmatmul.f32.gmra.mxu0 %v5128
      %v5192 = vpop.f32.mrf.mxu0
      %v5193 = vadd.f32 %v5080, %v5192
      %5194 = vdwg.mxu0
      %v5195 = vmul.f32 %v5148, 0.5
      %v5196 = vmul.f32 %v5151, 0.5
      %v5197 = vmul.f32 %v5154, 0.5
      %v5198 = vmul.f32 %v5157, 0.5
      %v5199 = vmul.f32 %v5160, 0.5
      %v5200 = vmul.f32 %v5163, 0.5
      %v5201 = vmul.f32 %v5166, 0.5
      %v5202 = vmul.f32 %v5169, 0.5
      %v5203 = vmul.f32 %v5172, 0.5
      %v5204 = vmul.f32 %v5175, 0.5
      %v5205 = vmul.f32 %v5178, 0.5
      %v5206 = vmul.f32 %v5181, 0.5
      %v5207 = vmul.f32 %v5184, 0.5
      %v5208 = vmul.f32 %v5187, 0.5
      %v5209 = vmul.f32 %v5190, 0.5
      %v5210 = vmul.f32 %v5193, 0.5
      %v5211 = vmul.f32 %v5148, 0.70710677
      %v5212 = vmul.f32 %v5151, 0.70710677
      %v5213 = vmul.f32 %v5154, 0.70710677
      %v5214 = vmul.f32 %v5157, 0.70710677
      %v5215 = vmul.f32 %v5160, 0.70710677
      %v5216 = vmul.f32 %v5163, 0.70710677
      %v5217 = vmul.f32 %v5166, 0.70710677
      %v5218 = vmul.f32 %v5169, 0.70710677
      %v5219 = vmul.f32 %v5172, 0.70710677
      %v5220 = vmul.f32 %v5175, 0.70710677
      %v5221 = vmul.f32 %v5178, 0.70710677
      %v5222 = vmul.f32 %v5181, 0.70710677
      %v5223 = vmul.f32 %v5184, 0.70710677
      %v5224 = vmul.f32 %v5187, 0.70710677
      %v5225 = vmul.f32 %v5190, 0.70710677
      %v5226 = vmul.f32 %v5193, 0.70710677
      %vm5227 = vcmp.ge.f32.partialorder %v5211, 0.0
      %vm5228 = vcmp.ge.f32.partialorder %v5212, 0.0
      %vm5229 = vcmp.ge.f32.partialorder %v5213, 0.0
      %vm5230 = vcmp.ge.f32.partialorder %v5214, 0.0
      %vm5231 = vcmp.ge.f32.partialorder %v5215, 0.0
      %vm5232 = vcmp.ge.f32.partialorder %v5216, 0.0
      %vm5233 = vcmp.ge.f32.partialorder %v5217, 0.0
      %vm5234 = vcmp.ge.f32.partialorder %v5218, 0.0
      %vm5235 = vcmp.ge.f32.partialorder %v5219, 0.0
      %vm5236 = vcmp.ge.f32.partialorder %v5220, 0.0
      %vm5237 = vcmp.ge.f32.partialorder %v5221, 0.0
      %vm5238 = vcmp.ge.f32.partialorder %v5222, 0.0
      %vm5239 = vcmp.ge.f32.partialorder %v5223, 0.0
      %vm5240 = vcmp.ge.f32.partialorder %v5224, 0.0
      %vm5241 = vcmp.ge.f32.partialorder %v5225, 0.0
      %vm5242 = vcmp.ge.f32.partialorder %v5226, 0.0
      %v5243 = vsel %vm5227, 1.0, -1.0
      %v5244 = vsel %vm5228, 1.0, -1.0
      %v5245 = vsel %vm5229, 1.0, -1.0
      %v5246 = vsel %vm5230, 1.0, -1.0
      %v5247 = vsel %vm5231, 1.0, -1.0
      %v5248 = vsel %vm5232, 1.0, -1.0
      %v5249 = vsel %vm5233, 1.0, -1.0
      %v5250 = vsel %vm5234, 1.0, -1.0
      %v5251 = vsel %vm5235, 1.0, -1.0
      %v5252 = vsel %vm5236, 1.0, -1.0
      %v5253 = vsel %vm5237, 1.0, -1.0
      %v5254 = vsel %vm5238, 1.0, -1.0
      %v5255 = vsel %vm5239, 1.0, -1.0
      %v5256 = vsel %vm5240, 1.0, -1.0
      %v5257 = vsel %vm5241, 1.0, -1.0
      %v5258 = vsel %vm5242, 1.0, -1.0
      %v5259 = vand.u32 2147483647, %v5211
      %v5260 = vand.u32 2147483647, %v5212
      %v5261 = vand.u32 2147483647, %v5213
      %v5262 = vand.u32 2147483647, %v5214
      %v5263 = vand.u32 2147483647, %v5215
      %v5264 = vand.u32 2147483647, %v5216
      %v5265 = vand.u32 2147483647, %v5217
      %v5266 = vand.u32 2147483647, %v5218
      %v5267 = vand.u32 2147483647, %v5219
      %v5268 = vand.u32 2147483647, %v5220
      %v5269 = vand.u32 2147483647, %v5221
      %v5270 = vand.u32 2147483647, %v5222
      %v5271 = vand.u32 2147483647, %v5223
      %v5272 = vand.u32 2147483647, %v5224
      %v5273 = vand.u32 2147483647, %v5225
      %v5274 = vand.u32 2147483647, %v5226
      %v5275 = vmul.f32 %v5259, 0.3275911
      %v5276 = vmul.f32 %v5260, 0.3275911
      %v5277 = vmul.f32 %v5261, 0.3275911
      %v5278 = vmul.f32 %v5262, 0.3275911
      %v5279 = vmul.f32 %v5263, 0.3275911
      %v5280 = vmul.f32 %v5264, 0.3275911
      %v5281 = vmul.f32 %v5265, 0.3275911
      %v5282 = vmul.f32 %v5266, 0.3275911
      %v5283 = vmul.f32 %v5267, 0.3275911
      %v5284 = vmul.f32 %v5268, 0.3275911
      %v5285 = vmul.f32 %v5269, 0.3275911
      %v5286 = vmul.f32 %v5270, 0.3275911
      %v5287 = vmul.f32 %v5271, 0.3275911
      %v5288 = vmul.f32 %v5272, 0.3275911
      %v5289 = vmul.f32 %v5273, 0.3275911
      %v5290 = vmul.f32 %v5274, 0.3275911
      %v5291 = vadd.f32 %v5275, 1.0
      %v5292 = vadd.f32 %v5276, 1.0
      %v5293 = vadd.f32 %v5277, 1.0
      %v5294 = vadd.f32 %v5278, 1.0
      %v5295 = vadd.f32 %v5279, 1.0
      %v5296 = vadd.f32 %v5280, 1.0
      %v5297 = vadd.f32 %v5281, 1.0
      %v5298 = vadd.f32 %v5282, 1.0
      %v5299 = vadd.f32 %v5283, 1.0
      %v5300 = vadd.f32 %v5284, 1.0
      %v5301 = vadd.f32 %v5285, 1.0
      %v5302 = vadd.f32 %v5286, 1.0
      %v5303 = vadd.f32 %v5287, 1.0
      %v5304 = vadd.f32 %v5288, 1.0
      %v5305 = vadd.f32 %v5289, 1.0
      %v5306 = vadd.f32 %v5290, 1.0
      %v5307 = vrcp.pop %v5291
      %v5308 = vmul.f32 %v5291, %v5307
      %v5309 = vsub.f32 1.0, %v5308
      %v5310 = vmul.f32 %v5307, %v5309
      %v5311 = vadd.f32 %v5307, %v5310
      %vm5312 = vweird.f32 %v5291
      %vm5313 = vweird.f32 %v5307
      %vm5314 = vmor %vm5312, %vm5313
      %v5315 = vsel %vm5314, %v5307, %v5311
      %v5316 = vand.u32 2147483647, %v5291
      %vm5317 = vcmp.eq.f32.partialorder %v5316, 8.507059e+37
      %v5318 = vand.u32 %v5291, 2147483648
      %v5319 = vor.u32 1.1754944e-38, %v5318
      %v5320 = vsel %vm5317, %v5319, %v5315
      %v5321 = vmul.f32 1.0, %v5320
      %v5322 = vrcp.pop %v5292
      %v5323 = vmul.f32 %v5292, %v5322
      %v5324 = vsub.f32 1.0, %v5323
      %v5325 = vmul.f32 %v5322, %v5324
      %v5326 = vadd.f32 %v5322, %v5325
      %vm5327 = vweird.f32 %v5292
      %vm5328 = vweird.f32 %v5322
      %vm5329 = vmor %vm5327, %vm5328
      %v5330 = vsel %vm5329, %v5322, %v5326
      %v5331 = vand.u32 2147483647, %v5292
      %vm5332 = vcmp.eq.f32.partialorder %v5331, 8.507059e+37
      %v5333 = vand.u32 %v5292, 2147483648
      %v5334 = vor.u32 1.1754944e-38, %v5333
      %v5335 = vsel %vm5332, %v5334, %v5330
      %v5336 = vmul.f32 1.0, %v5335
      %v5337 = vrcp.pop %v5293
      %v5338 = vmul.f32 %v5293, %v5337
      %v5339 = vsub.f32 1.0, %v5338
      %v5340 = vmul.f32 %v5337, %v5339
      %v5341 = vadd.f32 %v5337, %v5340
      %vm5342 = vweird.f32 %v5293
      %vm5343 = vweird.f32 %v5337
      %vm5344 = vmor %vm5342, %vm5343
      %v5345 = vsel %vm5344, %v5337, %v5341
      %v5346 = vand.u32 2147483647, %v5293
      %vm5347 = vcmp.eq.f32.partialorder %v5346, 8.507059e+37
      %v5348 = vand.u32 %v5293, 2147483648
      %v5349 = vor.u32 1.1754944e-38, %v5348
      %v5350 = vsel %vm5347, %v5349, %v5345
      %v5351 = vmul.f32 1.0, %v5350
      %v5352 = vrcp.pop %v5294
      %v5353 = vmul.f32 %v5294, %v5352
      %v5354 = vsub.f32 1.0, %v5353
      %v5355 = vmul.f32 %v5352, %v5354
      %v5356 = vadd.f32 %v5352, %v5355
      %vm5357 = vweird.f32 %v5294
      %vm5358 = vweird.f32 %v5352
      %vm5359 = vmor %vm5357, %vm5358
      %v5360 = vsel %vm5359, %v5352, %v5356
      %v5361 = vand.u32 2147483647, %v5294
      %vm5362 = vcmp.eq.f32.partialorder %v5361, 8.507059e+37
      %v5363 = vand.u32 %v5294, 2147483648
      %v5364 = vor.u32 1.1754944e-38, %v5363
      %v5365 = vsel %vm5362, %v5364, %v5360
      %v5366 = vmul.f32 1.0, %v5365
      %v5367 = vrcp.pop %v5295
      %v5368 = vmul.f32 %v5295, %v5367
      %v5369 = vsub.f32 1.0, %v5368
      %v5370 = vmul.f32 %v5367, %v5369
      %v5371 = vadd.f32 %v5367, %v5370
      %vm5372 = vweird.f32 %v5295
      %vm5373 = vweird.f32 %v5367
      %vm5374 = vmor %vm5372, %vm5373
      %v5375 = vsel %vm5374, %v5367, %v5371
      %v5376 = vand.u32 2147483647, %v5295
      %vm5377 = vcmp.eq.f32.partialorder %v5376, 8.507059e+37
      %v5378 = vand.u32 %v5295, 2147483648
      %v5379 = vor.u32 1.1754944e-38, %v5378
      %v5380 = vsel %vm5377, %v5379, %v5375
      %v5381 = vmul.f32 1.0, %v5380
      %v5382 = vrcp.pop %v5296
      %v5383 = vmul.f32 %v5296, %v5382
      %v5384 = vsub.f32 1.0, %v5383
      %v5385 = vmul.f32 %v5382, %v5384
      %v5386 = vadd.f32 %v5382, %v5385
      %vm5387 = vweird.f32 %v5296
      %vm5388 = vweird.f32 %v5382
      %vm5389 = vmor %vm5387, %vm5388
      %v5390 = vsel %vm5389, %v5382, %v5386
      %v5391 = vand.u32 2147483647, %v5296
      %vm5392 = vcmp.eq.f32.partialorder %v5391, 8.507059e+37
      %v5393 = vand.u32 %v5296, 2147483648
      %v5394 = vor.u32 1.1754944e-38, %v5393
      %v5395 = vsel %vm5392, %v5394, %v5390
      %v5396 = vmul.f32 1.0, %v5395
      %v5397 = vrcp.pop %v5297
      %v5398 = vmul.f32 %v5297, %v5397
      %v5399 = vsub.f32 1.0, %v5398
      %v5400 = vmul.f32 %v5397, %v5399
      %v5401 = vadd.f32 %v5397, %v5400
      %vm5402 = vweird.f32 %v5297
      %vm5403 = vweird.f32 %v5397
      %vm5404 = vmor %vm5402, %vm5403
      %v5405 = vsel %vm5404, %v5397, %v5401
      %v5406 = vand.u32 2147483647, %v5297
      %vm5407 = vcmp.eq.f32.partialorder %v5406, 8.507059e+37
      %v5408 = vand.u32 %v5297, 2147483648
      %v5409 = vor.u32 1.1754944e-38, %v5408
      %v5410 = vsel %vm5407, %v5409, %v5405
      %v5411 = vmul.f32 1.0, %v5410
      %v5412 = vrcp.pop %v5298
      %v5413 = vmul.f32 %v5298, %v5412
      %v5414 = vsub.f32 1.0, %v5413
      %v5415 = vmul.f32 %v5412, %v5414
      %v5416 = vadd.f32 %v5412, %v5415
      %vm5417 = vweird.f32 %v5298
      %vm5418 = vweird.f32 %v5412
      %vm5419 = vmor %vm5417, %vm5418
      %v5420 = vsel %vm5419, %v5412, %v5416
      %v5421 = vand.u32 2147483647, %v5298
      %vm5422 = vcmp.eq.f32.partialorder %v5421, 8.507059e+37
      %v5423 = vand.u32 %v5298, 2147483648
      %v5424 = vor.u32 1.1754944e-38, %v5423
      %v5425 = vsel %vm5422, %v5424, %v5420
      %v5426 = vmul.f32 1.0, %v5425
      %v5427 = vrcp.pop %v5299
      %v5428 = vmul.f32 %v5299, %v5427
      %v5429 = vsub.f32 1.0, %v5428
      %v5430 = vmul.f32 %v5427, %v5429
      %v5431 = vadd.f32 %v5427, %v5430
      %vm5432 = vweird.f32 %v5299
      %vm5433 = vweird.f32 %v5427
      %vm5434 = vmor %vm5432, %vm5433
      %v5435 = vsel %vm5434, %v5427, %v5431
      %v5436 = vand.u32 2147483647, %v5299
      %vm5437 = vcmp.eq.f32.partialorder %v5436, 8.507059e+37
      %v5438 = vand.u32 %v5299, 2147483648
      %v5439 = vor.u32 1.1754944e-38, %v5438
      %v5440 = vsel %vm5437, %v5439, %v5435
      %v5441 = vmul.f32 1.0, %v5440
      %v5442 = vrcp.pop %v5300
      %v5443 = vmul.f32 %v5300, %v5442
      %v5444 = vsub.f32 1.0, %v5443
      %v5445 = vmul.f32 %v5442, %v5444
      %v5446 = vadd.f32 %v5442, %v5445
      %vm5447 = vweird.f32 %v5300
      %vm5448 = vweird.f32 %v5442
      %vm5449 = vmor %vm5447, %vm5448
      %v5450 = vsel %vm5449, %v5442, %v5446
      %v5451 = vand.u32 2147483647, %v5300
      %vm5452 = vcmp.eq.f32.partialorder %v5451, 8.507059e+37
      %v5453 = vand.u32 %v5300, 2147483648
      %v5454 = vor.u32 1.1754944e-38, %v5453
      %v5455 = vsel %vm5452, %v5454, %v5450
      %v5456 = vmul.f32 1.0, %v5455
      %v5457 = vrcp.pop %v5301
      %v5458 = vmul.f32 %v5301, %v5457
      %v5459 = vsub.f32 1.0, %v5458
      %v5460 = vmul.f32 %v5457, %v5459
      %v5461 = vadd.f32 %v5457, %v5460
      %vm5462 = vweird.f32 %v5301
      %vm5463 = vweird.f32 %v5457
      %vm5464 = vmor %vm5462, %vm5463
      %v5465 = vsel %vm5464, %v5457, %v5461
      %v5466 = vand.u32 2147483647, %v5301
      %vm5467 = vcmp.eq.f32.partialorder %v5466, 8.507059e+37
      %v5468 = vand.u32 %v5301, 2147483648
      %v5469 = vor.u32 1.1754944e-38, %v5468
      %v5470 = vsel %vm5467, %v5469, %v5465
      %v5471 = vmul.f32 1.0, %v5470
      %v5472 = vrcp.pop %v5302
      %v5473 = vmul.f32 %v5302, %v5472
      %v5474 = vsub.f32 1.0, %v5473
      %v5475 = vmul.f32 %v5472, %v5474
      %v5476 = vadd.f32 %v5472, %v5475
      %vm5477 = vweird.f32 %v5302
      %vm5478 = vweird.f32 %v5472
      %vm5479 = vmor %vm5477, %vm5478
      %v5480 = vsel %vm5479, %v5472, %v5476
      %v5481 = vand.u32 2147483647, %v5302
      %vm5482 = vcmp.eq.f32.partialorder %v5481, 8.507059e+37
      %v5483 = vand.u32 %v5302, 2147483648
      %v5484 = vor.u32 1.1754944e-38, %v5483
      %v5485 = vsel %vm5482, %v5484, %v5480
      %v5486 = vmul.f32 1.0, %v5485
      %v5487 = vrcp.pop %v5303
      %v5488 = vmul.f32 %v5303, %v5487
      %v5489 = vsub.f32 1.0, %v5488
      %v5490 = vmul.f32 %v5487, %v5489
      %v5491 = vadd.f32 %v5487, %v5490
      %vm5492 = vweird.f32 %v5303
      %vm5493 = vweird.f32 %v5487
      %vm5494 = vmor %vm5492, %vm5493
      %v5495 = vsel %vm5494, %v5487, %v5491
      %v5496 = vand.u32 2147483647, %v5303
      %vm5497 = vcmp.eq.f32.partialorder %v5496, 8.507059e+37
      %v5498 = vand.u32 %v5303, 2147483648
      %v5499 = vor.u32 1.1754944e-38, %v5498
      %v5500 = vsel %vm5497, %v5499, %v5495
      %v5501 = vmul.f32 1.0, %v5500
      %v5502 = vrcp.pop %v5304
      %v5503 = vmul.f32 %v5304, %v5502
      %v5504 = vsub.f32 1.0, %v5503
      %v5505 = vmul.f32 %v5502, %v5504
      %v5506 = vadd.f32 %v5502, %v5505
      %vm5507 = vweird.f32 %v5304
      %vm5508 = vweird.f32 %v5502
      %vm5509 = vmor %vm5507, %vm5508
      %v5510 = vsel %vm5509, %v5502, %v5506
      %v5511 = vand.u32 2147483647, %v5304
      %vm5512 = vcmp.eq.f32.partialorder %v5511, 8.507059e+37
      %v5513 = vand.u32 %v5304, 2147483648
      %v5514 = vor.u32 1.1754944e-38, %v5513
      %v5515 = vsel %vm5512, %v5514, %v5510
      %v5516 = vmul.f32 1.0, %v5515
      %v5517 = vrcp.pop %v5305
      %v5518 = vmul.f32 %v5305, %v5517
      %v5519 = vsub.f32 1.0, %v5518
      %v5520 = vmul.f32 %v5517, %v5519
      %v5521 = vadd.f32 %v5517, %v5520
      %vm5522 = vweird.f32 %v5305
      %vm5523 = vweird.f32 %v5517
      %vm5524 = vmor %vm5522, %vm5523
      %v5525 = vsel %vm5524, %v5517, %v5521
      %v5526 = vand.u32 2147483647, %v5305
      %vm5527 = vcmp.eq.f32.partialorder %v5526, 8.507059e+37
      %v5528 = vand.u32 %v5305, 2147483648
      %v5529 = vor.u32 1.1754944e-38, %v5528
      %v5530 = vsel %vm5527, %v5529, %v5525
      %v5531 = vmul.f32 1.0, %v5530
      %v5532 = vrcp.pop %v5306
      %v5533 = vmul.f32 %v5306, %v5532
      %v5534 = vsub.f32 1.0, %v5533
      %v5535 = vmul.f32 %v5532, %v5534
      %v5536 = vadd.f32 %v5532, %v5535
      %vm5537 = vweird.f32 %v5306
      %vm5538 = vweird.f32 %v5532
      %vm5539 = vmor %vm5537, %vm5538
      %v5540 = vsel %vm5539, %v5532, %v5536
      %v5541 = vand.u32 2147483647, %v5306
      %vm5542 = vcmp.eq.f32.partialorder %v5541, 8.507059e+37
      %v5543 = vand.u32 %v5306, 2147483648
      %v5544 = vor.u32 1.1754944e-38, %v5543
      %v5545 = vsel %vm5542, %v5544, %v5540
      %v5546 = vmul.f32 1.0, %v5545
      %v5547 = vmul.f32 %v5321, 1.0614054
      %v5548 = vmul.f32 %v5336, 1.0614054
      %v5549 = vmul.f32 %v5351, 1.0614054
      %v5550 = vmul.f32 %v5366, 1.0614054
      %v5551 = vmul.f32 %v5381, 1.0614054
      %v5552 = vmul.f32 %v5396, 1.0614054
      %v5553 = vmul.f32 %v5411, 1.0614054
      %v5554 = vmul.f32 %v5426, 1.0614054
      %v5555 = vmul.f32 %v5441, 1.0614054
      %v5556 = vmul.f32 %v5456, 1.0614054
      %v5557 = vmul.f32 %v5471, 1.0614054
      %v5558 = vmul.f32 %v5486, 1.0614054
      %v5559 = vmul.f32 %v5501, 1.0614054
      %v5560 = vmul.f32 %v5516, 1.0614054
      %v5561 = vmul.f32 %v5531, 1.0614054
      %v5562 = vmul.f32 %v5546, 1.0614054
      %v5563 = vadd.f32 %v5547, -1.4531521
      %v5564 = vadd.f32 %v5548, -1.4531521
      %v5565 = vadd.f32 %v5549, -1.4531521
      %v5566 = vadd.f32 %v5550, -1.4531521
      %v5567 = vadd.f32 %v5551, -1.4531521
      %v5568 = vadd.f32 %v5552, -1.4531521
      %v5569 = vadd.f32 %v5553, -1.4531521
      %v5570 = vadd.f32 %v5554, -1.4531521
      %v5571 = vadd.f32 %v5555, -1.4531521
      %v5572 = vadd.f32 %v5556, -1.4531521
      %v5573 = vadd.f32 %v5557, -1.4531521
      %v5574 = vadd.f32 %v5558, -1.4531521
      %v5575 = vadd.f32 %v5559, -1.4531521
      %v5576 = vadd.f32 %v5560, -1.4531521
      %v5577 = vadd.f32 %v5561, -1.4531521
      %v5578 = vadd.f32 %v5562, -1.4531521
      %v5579 = vmul.f32 %v5563, %v5321
      %v5580 = vmul.f32 %v5564, %v5336
      %v5581 = vmul.f32 %v5565, %v5351
      %v5582 = vmul.f32 %v5566, %v5366
      %v5583 = vmul.f32 %v5567, %v5381
      %v5584 = vmul.f32 %v5568, %v5396
      %v5585 = vmul.f32 %v5569, %v5411
      %v5586 = vmul.f32 %v5570, %v5426
      %v5587 = vmul.f32 %v5571, %v5441
      %v5588 = vmul.f32 %v5572, %v5456
      %v5589 = vmul.f32 %v5573, %v5471
      %v5590 = vmul.f32 %v5574, %v5486
      %v5591 = vmul.f32 %v5575, %v5501
      %v5592 = vmul.f32 %v5576, %v5516
      %v5593 = vmul.f32 %v5577, %v5531
      %v5594 = vmul.f32 %v5578, %v5546
      %v5595 = vadd.f32 %v5579, 1.4214138
      %v5596 = vadd.f32 %v5580, 1.4214138
      %v5597 = vadd.f32 %v5581, 1.4214138
      %v5598 = vadd.f32 %v5582, 1.4214138
      %v5599 = vadd.f32 %v5583, 1.4214138
      %v5600 = vadd.f32 %v5584, 1.4214138
      %v5601 = vadd.f32 %v5585, 1.4214138
      %v5602 = vadd.f32 %v5586, 1.4214138
      %v5603 = vadd.f32 %v5587, 1.4214138
      %v5604 = vadd.f32 %v5588, 1.4214138
      %v5605 = vadd.f32 %v5589, 1.4214138
      %v5606 = vadd.f32 %v5590, 1.4214138
      %v5607 = vadd.f32 %v5591, 1.4214138
      %v5608 = vadd.f32 %v5592, 1.4214138
      %v5609 = vadd.f32 %v5593, 1.4214138
      %v5610 = vadd.f32 %v5594, 1.4214138
      %v5611 = vmul.f32 %v5595, %v5321
      %v5612 = vmul.f32 %v5596, %v5336
      %v5613 = vmul.f32 %v5597, %v5351
      %v5614 = vmul.f32 %v5598, %v5366
      %v5615 = vmul.f32 %v5599, %v5381
      %v5616 = vmul.f32 %v5600, %v5396
      %v5617 = vmul.f32 %v5601, %v5411
      %v5618 = vmul.f32 %v5602, %v5426
      %v5619 = vmul.f32 %v5603, %v5441
      %v5620 = vmul.f32 %v5604, %v5456
      %v5621 = vmul.f32 %v5605, %v5471
      %v5622 = vmul.f32 %v5606, %v5486
      %v5623 = vmul.f32 %v5607, %v5501
      %v5624 = vmul.f32 %v5608, %v5516
      %v5625 = vmul.f32 %v5609, %v5531
      %v5626 = vmul.f32 %v5610, %v5546
      %v5627 = vadd.f32 %v5611, -0.28449672
      %v5628 = vadd.f32 %v5612, -0.28449672
      %v5629 = vadd.f32 %v5613, -0.28449672
      %v5630 = vadd.f32 %v5614, -0.28449672
      %v5631 = vadd.f32 %v5615, -0.28449672
      %v5632 = vadd.f32 %v5616, -0.28449672
      %v5633 = vadd.f32 %v5617, -0.28449672
      %v5634 = vadd.f32 %v5618, -0.28449672
      %v5635 = vadd.f32 %v5619, -0.28449672
      %v5636 = vadd.f32 %v5620, -0.28449672
      %v5637 = vadd.f32 %v5621, -0.28449672
      %v5638 = vadd.f32 %v5622, -0.28449672
      %v5639 = vadd.f32 %v5623, -0.28449672
      %v5640 = vadd.f32 %v5624, -0.28449672
      %v5641 = vadd.f32 %v5625, -0.28449672
      %v5642 = vadd.f32 %v5626, -0.28449672
      %v5643 = vmul.f32 %v5627, %v5321
      %v5644 = vmul.f32 %v5628, %v5336
      %v5645 = vmul.f32 %v5629, %v5351
      %v5646 = vmul.f32 %v5630, %v5366
      %v5647 = vmul.f32 %v5631, %v5381
      %v5648 = vmul.f32 %v5632, %v5396
      %v5649 = vmul.f32 %v5633, %v5411
      %v5650 = vmul.f32 %v5634, %v5426
      %v5651 = vmul.f32 %v5635, %v5441
      %v5652 = vmul.f32 %v5636, %v5456
      %v5653 = vmul.f32 %v5637, %v5471
      %v5654 = vmul.f32 %v5638, %v5486
      %v5655 = vmul.f32 %v5639, %v5501
      %v5656 = vmul.f32 %v5640, %v5516
      %v5657 = vmul.f32 %v5641, %v5531
      %v5658 = vmul.f32 %v5642, %v5546
      %v5659 = vadd.f32 %v5643, 0.2548296
      %v5660 = vadd.f32 %v5644, 0.2548296
      %v5661 = vadd.f32 %v5645, 0.2548296
      %v5662 = vadd.f32 %v5646, 0.2548296
      %v5663 = vadd.f32 %v5647, 0.2548296
      %v5664 = vadd.f32 %v5648, 0.2548296
      %v5665 = vadd.f32 %v5649, 0.2548296
      %v5666 = vadd.f32 %v5650, 0.2548296
      %v5667 = vadd.f32 %v5651, 0.2548296
      %v5668 = vadd.f32 %v5652, 0.2548296
      %v5669 = vadd.f32 %v5653, 0.2548296
      %v5670 = vadd.f32 %v5654, 0.2548296
      %v5671 = vadd.f32 %v5655, 0.2548296
      %v5672 = vadd.f32 %v5656, 0.2548296
      %v5673 = vadd.f32 %v5657, 0.2548296
      %v5674 = vadd.f32 %v5658, 0.2548296
      %v5675 = vmul.f32 %v5659, %v5321
      %v5676 = vmul.f32 %v5660, %v5336
      %v5677 = vmul.f32 %v5661, %v5351
      %v5678 = vmul.f32 %v5662, %v5366
      %v5679 = vmul.f32 %v5663, %v5381
      %v5680 = vmul.f32 %v5664, %v5396
      %v5681 = vmul.f32 %v5665, %v5411
      %v5682 = vmul.f32 %v5666, %v5426
      %v5683 = vmul.f32 %v5667, %v5441
      %v5684 = vmul.f32 %v5668, %v5456
      %v5685 = vmul.f32 %v5669, %v5471
      %v5686 = vmul.f32 %v5670, %v5486
      %v5687 = vmul.f32 %v5671, %v5501
      %v5688 = vmul.f32 %v5672, %v5516
      %v5689 = vmul.f32 %v5673, %v5531
      %v5690 = vmul.f32 %v5674, %v5546
      %v5691 = vsub.f32 0.0, %v5259
      %v5692 = vsub.f32 0.0, %v5260
      %v5693 = vsub.f32 0.0, %v5261
      %v5694 = vsub.f32 0.0, %v5262
      %v5695 = vsub.f32 0.0, %v5263
      %v5696 = vsub.f32 0.0, %v5264
      %v5697 = vsub.f32 0.0, %v5265
      %v5698 = vsub.f32 0.0, %v5266
      %v5699 = vsub.f32 0.0, %v5267
      %v5700 = vsub.f32 0.0, %v5268
      %v5701 = vsub.f32 0.0, %v5269
      %v5702 = vsub.f32 0.0, %v5270
      %v5703 = vsub.f32 0.0, %v5271
      %v5704 = vsub.f32 0.0, %v5272
      %v5705 = vsub.f32 0.0, %v5273
      %v5706 = vsub.f32 0.0, %v5274
      %v5707 = vmul.f32 %v5691, %v5259
      %v5708 = vmul.f32 %v5692, %v5260
      %v5709 = vmul.f32 %v5693, %v5261
      %v5710 = vmul.f32 %v5694, %v5262
      %v5711 = vmul.f32 %v5695, %v5263
      %v5712 = vmul.f32 %v5696, %v5264
      %v5713 = vmul.f32 %v5697, %v5265
      %v5714 = vmul.f32 %v5698, %v5266
      %v5715 = vmul.f32 %v5699, %v5267
      %v5716 = vmul.f32 %v5700, %v5268
      %v5717 = vmul.f32 %v5701, %v5269
      %v5718 = vmul.f32 %v5702, %v5270
      %v5719 = vmul.f32 %v5703, %v5271
      %v5720 = vmul.f32 %v5704, %v5272
      %v5721 = vmul.f32 %v5705, %v5273
      %v5722 = vmul.f32 %v5706, %v5274
      %v5723 = vmul.f32 %v5707, 1.442695
      %v5724 = vpow.pop %v5723
      %v5725 = vmul.f32 %v5708, 1.442695
      %v5726 = vpow.pop %v5725
      %v5727 = vmul.f32 %v5709, 1.442695
      %v5728 = vpow.pop %v5727
      %v5729 = vmul.f32 %v5710, 1.442695
      %v5730 = vpow.pop %v5729
      %v5731 = vmul.f32 %v5711, 1.442695
      %v5732 = vpow.pop %v5731
      %v5733 = vmul.f32 %v5712, 1.442695
      %v5734 = vpow.pop %v5733
      %v5735 = vmul.f32 %v5713, 1.442695
      %v5736 = vpow.pop %v5735
      %v5737 = vmul.f32 %v5714, 1.442695
      %v5738 = vpow.pop %v5737
      %v5739 = vmul.f32 %v5715, 1.442695
      %v5740 = vpow.pop %v5739
      %v5741 = vmul.f32 %v5716, 1.442695
      %v5742 = vpow.pop %v5741
      %v5743 = vmul.f32 %v5717, 1.442695
      %v5744 = vpow.pop %v5743
      %v5745 = vmul.f32 %v5718, 1.442695
      %v5746 = vpow.pop %v5745
      %v5747 = vmul.f32 %v5719, 1.442695
      %v5748 = vpow.pop %v5747
      %v5749 = vmul.f32 %v5720, 1.442695
      %v5750 = vpow.pop %v5749
      %v5751 = vmul.f32 %v5721, 1.442695
      %v5752 = vpow.pop %v5751
      %v5753 = vmul.f32 %v5722, 1.442695
      %v5754 = vpow.pop %v5753
      %v5755 = vmul.f32 %v5675, %v5724
      %v5756 = vmul.f32 %v5676, %v5726
      %v5757 = vmul.f32 %v5677, %v5728
      %v5758 = vmul.f32 %v5678, %v5730
      %v5759 = vmul.f32 %v5679, %v5732
      %v5760 = vmul.f32 %v5680, %v5734
      %v5761 = vmul.f32 %v5681, %v5736
      %v5762 = vmul.f32 %v5682, %v5738
      %v5763 = vmul.f32 %v5683, %v5740
      %v5764 = vmul.f32 %v5684, %v5742
      %v5765 = vmul.f32 %v5685, %v5744
      %v5766 = vmul.f32 %v5686, %v5746
      %v5767 = vmul.f32 %v5687, %v5748
      %v5768 = vmul.f32 %v5688, %v5750
      %v5769 = vmul.f32 %v5689, %v5752
      %v5770 = vmul.f32 %v5690, %v5754
      %v5771 = vsub.f32 1.0, %v5755
      %v5772 = vsub.f32 1.0, %v5756
      %v5773 = vsub.f32 1.0, %v5757
      %v5774 = vsub.f32 1.0, %v5758
      %v5775 = vsub.f32 1.0, %v5759
      %v5776 = vsub.f32 1.0, %v5760
      %v5777 = vsub.f32 1.0, %v5761
      %v5778 = vsub.f32 1.0, %v5762
      %v5779 = vsub.f32 1.0, %v5763
      %v5780 = vsub.f32 1.0, %v5764
      %v5781 = vsub.f32 1.0, %v5765
      %v5782 = vsub.f32 1.0, %v5766
      %v5783 = vsub.f32 1.0, %v5767
      %v5784 = vsub.f32 1.0, %v5768
      %v5785 = vsub.f32 1.0, %v5769
      %v5786 = vsub.f32 1.0, %v5770
      %v5787 = vmul.f32 %v5243, %v5771
      %v5788 = vmul.f32 %v5244, %v5772
      %v5789 = vmul.f32 %v5245, %v5773
      %v5790 = vmul.f32 %v5246, %v5774
      %v5791 = vmul.f32 %v5247, %v5775
      %v5792 = vmul.f32 %v5248, %v5776
      %v5793 = vmul.f32 %v5249, %v5777
      %v5794 = vmul.f32 %v5250, %v5778
      %v5795 = vmul.f32 %v5251, %v5779
      %v5796 = vmul.f32 %v5252, %v5780
      %v5797 = vmul.f32 %v5253, %v5781
      %v5798 = vmul.f32 %v5254, %v5782
      %v5799 = vmul.f32 %v5255, %v5783
      %v5800 = vmul.f32 %v5256, %v5784
      %v5801 = vmul.f32 %v5257, %v5785
      %v5802 = vmul.f32 %v5258, %v5786
      %v5803 = vadd.f32 %v5787, 1.0
      %v5804 = vadd.f32 %v5788, 1.0
      %v5805 = vadd.f32 %v5789, 1.0
      %v5806 = vadd.f32 %v5790, 1.0
      %v5807 = vadd.f32 %v5791, 1.0
      %v5808 = vadd.f32 %v5792, 1.0
      %v5809 = vadd.f32 %v5793, 1.0
      %v5810 = vadd.f32 %v5794, 1.0
      %v5811 = vadd.f32 %v5795, 1.0
      %v5812 = vadd.f32 %v5796, 1.0
      %v5813 = vadd.f32 %v5797, 1.0
      %v5814 = vadd.f32 %v5798, 1.0
      %v5815 = vadd.f32 %v5799, 1.0
      %v5816 = vadd.f32 %v5800, 1.0
      %v5817 = vadd.f32 %v5801, 1.0
      %v5818 = vadd.f32 %v5802, 1.0
      %v5819 = vmul.f32 %v5195, %v5803
      %v5820 = vmul.f32 %v5196, %v5804
      %v5821 = vmul.f32 %v5197, %v5805
      %v5822 = vmul.f32 %v5198, %v5806
      %v5823 = vmul.f32 %v5199, %v5807
      %v5824 = vmul.f32 %v5200, %v5808
      %v5825 = vmul.f32 %v5201, %v5809
      %v5826 = vmul.f32 %v5202, %v5810
      %v5827 = vmul.f32 %v5203, %v5811
      %v5828 = vmul.f32 %v5204, %v5812
      %v5829 = vmul.f32 %v5205, %v5813
      %v5830 = vmul.f32 %v5206, %v5814
      %v5831 = vmul.f32 %v5207, %v5815
      %v5832 = vmul.f32 %v5208, %v5816
      %v5833 = vmul.f32 %v5209, %v5817
      %v5834 = vmul.f32 %v5210, %v5818
      %v5835 = vld [vmem:[%s594] sm:$0xff]
      %v5836 = vld [vmem:[%s594 + $0x8] sm:$0xff]
      %v5837 = vld [vmem:[%s594 + $0x10] sm:$0xff]
      %v5838 = vld [vmem:[%s594 + $0x18] sm:$0xff]
      %v5839 = vld [vmem:[%s594 + $0x20] sm:$0xff]
      %v5840 = vld [vmem:[%s594 + $0x28] sm:$0xff]
      %v5841 = vld [vmem:[%s594 + $0x30] sm:$0xff]
      %v5842 = vld [vmem:[%s594 + $0x38] sm:$0xff]
      %v5843 = vld [vmem:[%s594 + $0x40] sm:$0xff]
      %v5844 = vld [vmem:[%s594 + $0x48] sm:$0xff]
      %v5845 = vld [vmem:[%s594 + $0x50] sm:$0xff]
      %v5846 = vld [vmem:[%s594 + $0x58] sm:$0xff]
      %v5847 = vld [vmem:[%s594 + $0x60] sm:$0xff]
      %v5848 = vld [vmem:[%s594 + $0x68] sm:$0xff]
      %v5849 = vld [vmem:[%s594 + $0x70] sm:$0xff]
      %v5850 = vld [vmem:[%s594 + $0x78] sm:$0xff]
      %v5851 = vld [vmem:[%s597] sm:$0x1]
      %v5853 = vperm.slane %v5851, 0
      %5855 = vmatpush.msra.mxu0 %v5850
      %5856 = vmatpush.msra.mxu0 %v5849
      %5857 = vmatpush.msra.mxu0 %v5848
      %5858 = vmatpush.msra.mxu0 %v5847
      %5859 = vmatpush.msra.mxu0 %v5846
      %5860 = vmatpush.msra.mxu0 %v5845
      %5861 = vmatpush.msra.mxu0 %v5844
      %5862 = vmatpush.msra.mxu0 %v5843
      %5863 = vmatpush.msra.mxu0 %v5842
      %5864 = vmatpush.msra.mxu0 %v5841
      %5865 = vmatpush.msra.mxu0 %v5840
      %5866 = vmatpush.msra.mxu0 %v5839
      %5867 = vmatpush.msra.mxu0 %v5838
      %5868 = vmatpush.msra.mxu0 %v5837
      %5869 = vmatpush.msra.mxu0 %v5836
      %5870 = vmatpush.msra.mxu0 %v5835
      %5871 = vmatmul.f32.gmra.mxu0 %v5819
      %v5872 = vpop.f32.mrf.mxu0
      %v5873 = vadd.f32 %v5853, %v5872
      %5874 = vmatmul.f32.gmra.mxu0 %v5820
      %v5875 = vpop.f32.mrf.mxu0
      %v5876 = vadd.f32 %v5853, %v5875
      %5877 = vmatmul.f32.gmra.mxu0 %v5821
      %v5878 = vpop.f32.mrf.mxu0
      %v5879 = vadd.f32 %v5853, %v5878
      %5880 = vmatmul.f32.gmra.mxu0 %v5822
      %v5881 = vpop.f32.mrf.mxu0
      %v5882 = vadd.f32 %v5853, %v5881
      %5883 = vmatmul.f32.gmra.mxu0 %v5823
      %v5884 = vpop.f32.mrf.mxu0
      %v5885 = vadd.f32 %v5853, %v5884
      %5886 = vmatmul.f32.gmra.mxu0 %v5824
      %v5887 = vpop.f32.mrf.mxu0
      %v5888 = vadd.f32 %v5853, %v5887
      %5889 = vmatmul.f32.gmra.mxu0 %v5825
      %v5890 = vpop.f32.mrf.mxu0
      %v5891 = vadd.f32 %v5853, %v5890
      %5892 = vmatmul.f32.gmra.mxu0 %v5826
      %v5893 = vpop.f32.mrf.mxu0
      %v5894 = vadd.f32 %v5853, %v5893
      %5895 = vmatmul.f32.gmra.mxu0 %v5827
      %v5896 = vpop.f32.mrf.mxu0
      %v5897 = vadd.f32 %v5853, %v5896
      %5898 = vmatmul.f32.gmra.mxu0 %v5828
      %v5899 = vpop.f32.mrf.mxu0
      %v5900 = vadd.f32 %v5853, %v5899
      %5901 = vmatmul.f32.gmra.mxu0 %v5829
      %v5902 = vpop.f32.mrf.mxu0
      %v5903 = vadd.f32 %v5853, %v5902
      %5904 = vmatmul.f32.gmra.mxu0 %v5830
      %v5905 = vpop.f32.mrf.mxu0
      %v5906 = vadd.f32 %v5853, %v5905
      %5907 = vmatmul.f32.gmra.mxu0 %v5831
      %v5908 = vpop.f32.mrf.mxu0
      %v5909 = vadd.f32 %v5853, %v5908
      %5910 = vmatmul.f32.gmra.mxu0 %v5832
      %v5911 = vpop.f32.mrf.mxu0
      %v5912 = vadd.f32 %v5853, %v5911
      %5913 = vmatmul.f32.gmra.mxu0 %v5833
      %v5914 = vpop.f32.mrf.mxu0
      %v5915 = vadd.f32 %v5853, %v5914
      %5916 = vmatmul.f32.gmra.mxu0 %v5834
      %v5917 = vpop.f32.mrf.mxu0
      %v5918 = vadd.f32 %v5853, %v5917
      %5919 = vdwg.mxu0
      %v5920 = vadd.f32 %v4666, %v5873
      %v5921 = vadd.f32 %v4667, %v5876
      %v5922 = vadd.f32 %v4668, %v5879
      %v5923 = vadd.f32 %v4669, %v5882
      %v5924 = vadd.f32 %v4670, %v5885
      %v5925 = vadd.f32 %v4671, %v5888
      %v5926 = vadd.f32 %v4672, %v5891
      %v5927 = vadd.f32 %v4673, %v5894
      %v5928 = vadd.f32 %v4674, %v5897
      %v5929 = vadd.f32 %v4675, %v5900
      %v5930 = vadd.f32 %v4676, %v5903
      %v5931 = vadd.f32 %v4677, %v5906
      %v5932 = vadd.f32 %v4678, %v5909
      %v5933 = vadd.f32 %v4679, %v5912
      %v5934 = vadd.f32 %v4680, %v5915
      %v5935 = vadd.f32 %v4681, %v5918
      %5936 = vst.msk [vmem:[#allocation2] sm:$0xff] %vm710, %v5920
      %5937 = vst.msk [vmem:[#allocation2 + $0x8] sm:$0xff] %vm710, %v5921
      %5938 = vst.msk [vmem:[#allocation2 + $0x10] sm:$0xff] %vm710, %v5922
      %5939 = vst.msk [vmem:[#allocation2 + $0x18] sm:$0xff] %vm710, %v5923
      %5940 = vst.msk [vmem:[#allocation2 + $0x20] sm:$0xff] %vm710, %v5924
      %5941 = vst.msk [vmem:[#allocation2 + $0x28] sm:$0xff] %vm710, %v5925
      %5942 = vst.msk [vmem:[#allocation2 + $0x30] sm:$0xff] %vm710, %v5926
      %5943 = vst.msk [vmem:[#allocation2 + $0x38] sm:$0xff] %vm710, %v5927
      %5944 = vst.msk [vmem:[#allocation2 + $0x40] sm:$0xff] %vm710, %v5928
      %5945 = vst.msk [vmem:[#allocation2 + $0x48] sm:$0xff] %vm710, %v5929
      %5946 = vst.msk [vmem:[#allocation2 + $0x50] sm:$0xff] %vm710, %v5930
      %5947 = vst.msk [vmem:[#allocation2 + $0x58] sm:$0xff] %vm710, %v5931
      %5948 = vst.msk [vmem:[#allocation2 + $0x60] sm:$0xff] %vm710, %v5932
      %5949 = vst.msk [vmem:[#allocation2 + $0x68] sm:$0xff] %vm710, %v5933
      %5950 = vst.msk [vmem:[#allocation2 + $0x70] sm:$0xff] %vm710, %v5934
      %5951 = vst.msk [vmem:[#allocation2 + $0x78] sm:$0xff] %vm710, %v5935
      %p5952 = scmp.eq.s32.totalorder %s24, 1
      // Predicated region
      $region77: #{_lambda_.1} parent=71 // pred_check
        %p5953 = pneg %p5952
      $region78: #{_lambda_.1} parent=71 // pred_check_branch
        %5955 = sbr.rel (%p5953) target = $region80
      $region79: #{_lambda_.1} parent=71 // pred_region
        %5956 = vxpose.xlu0.b32.start [1/16] %v5920, 128
        %5957 = vxpose.xlu0.b32.cont [2/16] %v5921, 128
        %5958 = vxpose.xlu0.b32.cont [3/16] %v5922, 128
        %5959 = vxpose.xlu0.b32.cont [4/16] %v5923, 128
        %5960 = vxpose.xlu0.b32.cont [5/16] %v5924, 128
        %5961 = vxpose.xlu0.b32.cont [6/16] %v5925, 128
        %5962 = vxpose.xlu0.b32.cont [7/16] %v5926, 128
        %5963 = vxpose.xlu0.b32.cont [8/16] %v5927, 128
        %5964 = vxpose.xlu0.b32.cont [9/16] 0.0, 128
        %5965 = vxpose.xlu0.b32.cont [10/16] 0.0, 128
        %5966 = vxpose.xlu0.b32.cont [11/16] 0.0, 128
        %5967 = vxpose.xlu0.b32.cont [12/16] 0.0, 128
        %5968 = vxpose.xlu0.b32.cont [13/16] 0.0, 128
        %5969 = vxpose.xlu0.b32.cont [14/16] 0.0, 128
        %5970 = vxpose.xlu0.b32.cont [15/16] 0.0, 128
        %5971 = vxpose.xlu0.b32.end [16/16] 0.0, 128
        %v5972 = vpop.trf.xlu0
        %v5973 = vpop.trf.xlu0
        %v5974 = vpop.trf.xlu0
        %v5975 = vpop.trf.xlu0
        %v5976 = vpop.trf.xlu0
        %v5977 = vpop.trf.xlu0
        %v5978 = vpop.trf.xlu0
        %v5979 = vpop.trf.xlu0
        %v5980 = vpop.trf.xlu0
        %v5981 = vpop.trf.xlu0
        %v5982 = vpop.trf.xlu0
        %v5983 = vpop.trf.xlu0
        %v5984 = vpop.trf.xlu0
        %v5985 = vpop.trf.xlu0
        %v5986 = vpop.trf.xlu0
        %v5987 = vpop.trf.xlu0
        %5988 = vst.msk [vmem:[%s13] sm:$0xff] %vm1424, %v5972
        %5989 = vst.msk [vmem:[%s13 + $0x8] sm:$0xff] %vm1424, %v5973
        %5990 = vst.msk [vmem:[%s13 + $0x10] sm:$0xff] %vm1424, %v5974
        %5991 = vst.msk [vmem:[%s13 + $0x18] sm:$0xff] %vm1424, %v5975
        %5992 = vxpose.xlu0.b32.start [1/16] %v5928, 128
        %5993 = vxpose.xlu0.b32.cont [2/16] %v5929, 128
        %5994 = vxpose.xlu0.b32.cont [3/16] %v5930, 128
        %5995 = vxpose.xlu0.b32.cont [4/16] %v5931, 128
        %5996 = vxpose.xlu0.b32.cont [5/16] %v5932, 128
        %5997 = vxpose.xlu0.b32.cont [6/16] %v5933, 128
        %5998 = vxpose.xlu0.b32.cont [7/16] %v5934, 128
        %5999 = vxpose.xlu0.b32.cont [8/16] %v5935, 128
        %6000 = vxpose.xlu0.b32.cont [9/16] 0.0, 128
        %6001 = vxpose.xlu0.b32.cont [10/16] 0.0, 128
        %6002 = vxpose.xlu0.b32.cont [11/16] 0.0, 128
        %6003 = vxpose.xlu0.b32.cont [12/16] 0.0, 128
        %6004 = vxpose.xlu0.b32.cont [13/16] 0.0, 128
        %6005 = vxpose.xlu0.b32.cont [14/16] 0.0, 128
        %6006 = vxpose.xlu0.b32.cont [15/16] 0.0, 128
        %6007 = vxpose.xlu0.b32.end [16/16] 0.0, 128
        %v6008 = vpop.trf.xlu0
        %v6009 = vpop.trf.xlu0
        %v6010 = vpop.trf.xlu0
        %v6011 = vpop.trf.xlu0
        %v6012 = vpop.trf.xlu0
        %v6013 = vpop.trf.xlu0
        %v6014 = vpop.trf.xlu0
        %v6015 = vpop.trf.xlu0
        %v6016 = vpop.trf.xlu0
        %v6017 = vpop.trf.xlu0
        %v6018 = vpop.trf.xlu0
        %v6019 = vpop.trf.xlu0
        %v6020 = vpop.trf.xlu0
        %v6021 = vpop.trf.xlu0
        %v6022 = vpop.trf.xlu0
        %v6023 = vpop.trf.xlu0
        %s6024 = scalar_lea.vmem %s13, 32
        %6025 = vst.msk [vmem:[%s6024] sm:$0xff] %vm1424, %v6008
        %6026 = vst.msk [vmem:[%s6024 + $0x8] sm:$0xff] %vm1424, %v6009
        %6027 = vst.msk [vmem:[%s6024 + $0x10] sm:$0xff] %vm1424, %v6010
        %6028 = vst.msk [vmem:[%s6024 + $0x18] sm:$0xff] %vm1424, %v6011
      $region80: #{_lambda_.1} parent=71 // pred_fallthru
        _
      // Predicated region
      $region81: #{_lambda_.1} parent=71 // pred_check
        %p6029 = pneg %p370
      $region82: #{_lambda_.1} parent=71 // pred_check_branch
        %6031 = sbr.rel (%p6029) target = $region84
      $region83: #{_lambda_.1} parent=71 // pred_region
        _
      $region84: #{_lambda_.1} parent=71 // pred_fallthru
        _
      // Predicated region
      $region85: #{_lambda_.1} parent=71 // pred_check
        %p6032 = pneg %p370
      $region86: #{_lambda_.1} parent=71 // pred_check_branch
        %6034 = sbr.rel (%p6032) target = $region88
      $region87: #{_lambda_.1} parent=71 // pred_region
        _
      $region88: #{_lambda_.1} parent=71 // pred_fallthru
        _
    $region72: #{_lambda_.1} parent=5 // pred_fallthru
      _
    %p6035 = scmp.le.s32.totalorder 2, %s19
    // Predicated region
    $region89: #{_lambda_.1} parent=5 // pred_check
      %p6036 = pneg %p6035
    $region90: #{_lambda_.1} parent=5 // pred_check_branch
      %6038 = sbr.rel (%p6036) target = $region92
    $region91: #{_lambda_.1} parent=5 // pred_region
      %s6039 = ssub.s32 %s19, 2
    $region92: #{_lambda_.1} parent=5 // pred_fallthru
      _
  $region6: #{_lambda_.1} parent=0 // loop_footer
    %s23 = sadd.s32 1, %s19
  $region7: #{_lambda_.1} parent=0 // loop_footer_branch
    %18 = sbr.rel target = $region3
  $region8: #{_lambda_.1} parent=0 // loop_exit
    _

</llo_original>
